<compile_context>
chip_gen: v7x
topology: tpu7x:2x2x1
jax: 0.10.0
libtpu: 0.0.40
codegen_flags: <defaults>
</compile_context>

<pallas_src>
import jax
import jax.numpy as jnp
from jax.experimental import pallas as pl
from jax.experimental.pallas import tpu as pltpu

# ----------------------------- model config ---------------------------------
VOCAB_SIZE = 100
MAX_POS = 16
TYPE_VOCAB = 2
HIDDEN = 32
NUM_HEADS = 4
HEAD_DIM = HIDDEN // NUM_HEADS
INTERMEDIATE = 64
NUM_LAYERS = 2
NUM_LABELS = 2
LN_EPS = 1e-12
LANE_PAD = 128          # lane-dense padded width (classifier output + bias slab)

BATCH = 2
SEQ = 8
TOKENS = BATCH * SEQ

# ---- row layout of the packed "small params" slab (biases + LayerNorm) -----
ROW_EMB_LN_G = 0
ROW_EMB_LN_B = 1
ROW_POOL_B = 2
ROW_CLS_B = 3
ROW_LAYER_BASE = 4
ROWS_PER_LAYER = 8      # qkv_b, ao_b, ln1_g, ln1_b, i_b, o_b, ln2_g, ln2_b
SMALL_ROWS = ROW_LAYER_BASE + NUM_LAYERS * ROWS_PER_LAYER   # 20


# ------------------------------ kernel helpers -------------------------------
def _layer_norm(x, g, b):
    mean = jnp.mean(x, axis=-1, keepdims=True)
    var = jnp.mean((x - mean) ** 2, axis=-1, keepdims=True)
    return (x - mean) * jax.lax.rsqrt(var + LN_EPS) * g + b


def _gelu(x):
    # TODO(synk): HF/PyTorch BERT "gelu" is erf-based; tanh approximation deviates ~1e-3.
    c = jnp.float32(0.7978845608028654)  # sqrt(2/pi)
    return 0.5 * x * (1.0 + jnp.tanh(c * (x + 0.044715 * x * x * x)))


# ------------------------------ fused kernel ---------------------------------
def _fused_bert_kernel(ids_ref, mask_ref,
                       word_ref, pos_ref, type_ref,
                       qkvw_ref, aow_ref, iw_ref, ow_ref,
                       pw_ref, cw_ref, small_ref,
                       out_ref, emb_scr, ctx_scr):
    H = HIDDEN
    bf16 = jnp.bfloat16

    small = small_ref[...]                       # (SMALL_ROWS, 128) f32, load once

    def srow(r, width=H):
        return small[r:r + 1, :width]            # (1, width) static slice

    # ---- fused embedding gather + sum (token_type_ids == 0) -----------------
    type_row = type_ref[0:1, :]                  # (1, H), hoisted
    for b in range(BATCH):
        for s in range(SEQ):
            tok = ids_ref[b, s]                  # scalar from SMEM
            r = b * SEQ + s
            emb_scr[r:r + 1, :] = (word_ref[pl.ds(tok, 1), :]
                                   + pos_ref[s:s + 1, :] + type_row)

    # embedding LayerNorm over the fused (B*S, H) token slab
    h = _layer_norm(emb_scr[...], srow(ROW_EMB_LN_G), srow(ROW_EMB_LN_B))

    # additive key mask, broadcast ONCE per batch element (hoisted out of the
    # layer/head loops; JAX does not CSE broadcast_in_dim)
    mask2d = [jnp.broadcast_to(mask_ref[b:b + 1, :], (SEQ, SEQ))
              for b in range(BATCH)]

    # encoder layers (unrolled; per-layer weights are static ref indices)
    for l in range(NUM_LAYERS):
        base = ROW_LAYER_BASE + l * ROWS_PER_LAYER
        qkv_b = srow(base + 0, 3 * H)
        ao_b = srow(base + 1)
        ln1_g = srow(base + 2)
        ln1_b = srow(base + 3)
        i_b = srow(base + 4, INTERMEDIATE)
        o_b = srow(base + 5)
        ln2_g = srow(base + 6)
        ln2_b = srow(base + 7)

        # fused QKV projection over all B*S tokens; 1/sqrt(Dh) folded into q.
        qkv = jnp.dot(h.astype(bf16), qkvw_ref[l],
                      preferred_element_type=jnp.float32) + qkv_b    # (BS, 3H)
        q = qkv[:, 0 * H:1 * H]
        k = qkv[:, 1 * H:2 * H]
        v = qkv[:, 2 * H:3 * H]

        # per-(batch, head) attention; each head context is written at its lane
        # offset into a VMEM scratch (no lane-axis concatenate).
        for b in range(BATCH):
            rs = slice(b * SEQ, (b + 1) * SEQ)
            for hd in range(NUM_HEADS):
                cs = slice(hd * HEAD_DIM, (hd + 1) * HEAD_DIM)
                qh = q[rs, cs].astype(bf16)
                kh = k[rs, cs].astype(bf16)
                vh = v[rs, cs].astype(bf16)
                s = jax.lax.dot_general(qh, kh, (((1,), (1,)), ((), ())),
                                        preferred_element_type=jnp.float32)
                s = s + mask2d[b]
                s = s - jnp.max(s, axis=-1, keepdims=True)
                e = jnp.exp(s)
                p = e * pl.reciprocal(jnp.sum(e, axis=-1, keepdims=True),
                                      approx=True)
                ctx_scr[rs, cs] = jnp.dot(p.astype(bf16), vh,
                                          preferred_element_type=jnp.float32)

        # fused attention-output projection over the whole token slab
        attn = jnp.dot(ctx_scr[...].astype(bf16), aow_ref[l],
                       preferred_element_type=jnp.float32) + ao_b
        h = _layer_norm(attn + h, ln1_g, ln1_b)

        # feed-forward
        inter = _gelu(jnp.dot(h.astype(bf16), iw_ref[l],
                              preferred_element_type=jnp.float32) + i_b)
        ffn = jnp.dot(inter.astype(bf16), ow_ref[l],
                      preferred_element_type=jnp.float32) + o_b
        h = _layer_norm(ffn + h, ln2_g, ln2_b)

    # pooler + classifier fused.  Applied to all B*S tokens (same tiny MXU
    # cost as CLS-only); the wrapper reads only row 0 of each batch element.
    pooled = jnp.tanh(jnp.dot(h.astype(bf16), pw_ref[...],
                              preferred_element_type=jnp.float32)
                      + srow(ROW_POOL_B))
    logits = (jnp.dot(pooled.astype(bf16), cw_ref[...],
                      preferred_element_type=jnp.float32)
              + small[ROW_CLS_B:ROW_CLS_B + 1, :])                   # (BS, 128)
    out_ref[...] = logits.astype(out_ref.dtype)


# ------------------------------ parameter init -------------------------------
def init_params(key):
    def nrm(k, shape):
        return 0.02 * jax.random.normal(k, shape, dtype=jnp.float32)

    keys = iter(jax.random.split(key, 8 + NUM_LAYERS * 8))
    p = {
        "word_emb": nrm(next(keys), (VOCAB_SIZE, HIDDEN)),
        "pos_emb": nrm(next(keys), (MAX_POS, HIDDEN)),
        "type_emb": nrm(next(keys), (TYPE_VOCAB, HIDDEN)),
        "emb_ln_g": jnp.ones((HIDDEN,), jnp.float32),
        "emb_ln_b": jnp.zeros((HIDDEN,), jnp.float32),
        "pool_w": nrm(next(keys), (HIDDEN, HIDDEN)),
        "pool_b": jnp.zeros((HIDDEN,), jnp.float32),
        "cls_w": nrm(next(keys), (HIDDEN, NUM_LABELS)),
        "cls_b": jnp.zeros((NUM_LABELS,), jnp.float32),
        "layers": [],
    }
    for _ in range(NUM_LAYERS):
        layer = {
            "q_w": nrm(next(keys), (HIDDEN, HIDDEN)),
            "q_b": jnp.zeros((HIDDEN,), jnp.float32),
            "k_w": nrm(next(keys), (HIDDEN, HIDDEN)),
            "k_b": jnp.zeros((HIDDEN,), jnp.float32),
            "v_w": nrm(next(keys), (HIDDEN, HIDDEN)),
            "v_b": jnp.zeros((HIDDEN,), jnp.float32),
            "ao_w": nrm(next(keys), (HIDDEN, HIDDEN)),
            "ao_b": jnp.zeros((HIDDEN,), jnp.float32),
            "ln1_g": jnp.ones((HIDDEN,), jnp.float32),
            "ln1_b": jnp.zeros((HIDDEN,), jnp.float32),
            "i_w": nrm(next(keys), (HIDDEN, INTERMEDIATE)),
            "i_b": jnp.zeros((INTERMEDIATE,), jnp.float32),
            "o_w": nrm(next(keys), (INTERMEDIATE, HIDDEN)),
            "o_b": jnp.zeros((HIDDEN,), jnp.float32),
            "ln2_g": jnp.ones((HIDDEN,), jnp.float32),
            "ln2_b": jnp.zeros((HIDDEN,), jnp.float32),
        }
        p["layers"].append(layer)
    return p


def pack_params(p):
    """One-time packing (run OUTSIDE the jitted forward):
       QKV merged + q-scale folded, weight matrices cast to bf16, classifier
       lane-padded to 128, and all bias/LayerNorm vectors packed into a single
       (SMALL_ROWS, 128) f32 slab."""
    scale = 1.0 / float(HEAD_DIM) ** 0.5
    bf16 = jnp.bfloat16

    small = jnp.zeros((SMALL_ROWS, LANE_PAD), jnp.float32)
    small = small.at[ROW_EMB_LN_G, :HIDDEN].set(p["emb_ln_g"])
    small = small.at[ROW_EMB_LN_B, :HIDDEN].set(p["emb_ln_b"])
    small = small.at[ROW_POOL_B, :HIDDEN].set(p["pool_b"])
    small = small.at[ROW_CLS_B, :NUM_LABELS].set(p["cls_b"])

    qkv_w, ao_w, i_w, o_w = [], [], [], []
    for l, layer in enumerate(p["layers"]):
        base = ROW_LAYER_BASE + l * ROWS_PER_LAYER
        qkv_w.append(jnp.concatenate(
            [layer["q_w"] * scale, layer["k_w"], layer["v_w"]], axis=1))
        qkv_b = jnp.concatenate(
            [layer["q_b"] * scale, layer["k_b"], layer["v_b"]])
        small = small.at[base + 0, :3 * HIDDEN].set(qkv_b)
        small = small.at[base + 1, :HIDDEN].set(layer["ao_b"])
        small = small.at[base + 2, :HIDDEN].set(layer["ln1_g"])
        small = small.at[base + 3, :HIDDEN].set(layer["ln1_b"])
        small = small.at[base + 4, :INTERMEDIATE].set(layer["i_b"])
        small = small.at[base + 5, :HIDDEN].set(layer["o_b"])
        small = small.at[base + 6, :HIDDEN].set(layer["ln2_g"])
        small = small.at[base + 7, :HIDDEN].set(layer["ln2_b"])
        ao_w.append(layer["ao_w"])
        i_w.append(layer["i_w"])
        o_w.append(layer["o_w"])

    cls_w_pad = jnp.zeros((HIDDEN, LANE_PAD), jnp.float32
                          ).at[:, :NUM_LABELS].set(p["cls_w"])
    return {
        # embedding tables stay f32 (they feed adds + LayerNorm, not the MXU)
        "word_emb": p["word_emb"].astype(jnp.float32),
        "pos_emb": p["pos_emb"].astype(jnp.float32),
        "type_emb": p["type_emb"].astype(jnp.float32),
        # matmul operands pre-cast to bf16 (f32 accumulation in-kernel)
        "qkv_w": jnp.stack(qkv_w).astype(bf16),
        "ao_w": jnp.stack(ao_w).astype(bf16),
        "i_w": jnp.stack(i_w).astype(bf16),
        "o_w": jnp.stack(o_w).astype(bf16),
        "pool_w": p["pool_w"].astype(bf16),
        "cls_w": cls_w_pad.astype(bf16),
        "small": small,
    }


WEIGHT_ORDER = ("word_emb", "pos_emb", "type_emb", "qkv_w", "ao_w",
                "i_w", "o_w", "pool_w", "cls_w", "small")


# ------------------------------ forward pass ---------------------------------
def sentiment_classifier_forward(packed, input_ids, attention_mask):
    B, S = input_ids.shape

    # HF additive key mask, kept tiny: (B, S); broadcast inside the kernel.
    add_mask = (1.0 - attention_mask.astype(jnp.float32)) * -10000.0

    weights = [packed[name] for name in WEIGHT_ORDER]
    vmem = pltpu.MemorySpace.VMEM
    smem = pltpu.MemorySpace.SMEM

    out = pl.pallas_call(
        _fused_bert_kernel,
        # single invocation: batch folded into one (B*S, .) token slab
        out_shape=jax.ShapeDtypeStruct((TOKENS, LANE_PAD), jnp.float32),
        in_specs=[pl.BlockSpec(memory_space=smem),        # input_ids (scalar reads)
                  pl.BlockSpec(memory_space=vmem)]        # additive mask
                 + [pl.BlockSpec(memory_space=vmem) for _ in weights],
        out_specs=pl.BlockSpec(memory_space=vmem),
        scratch_shapes=[pltpu.VMEM((TOKENS, HIDDEN), jnp.float32),   # embedding sum
                        pltpu.VMEM((TOKENS, HIDDEN), jnp.float32)],  # attn context
    )(input_ids, add_mask, *weights)

    # dropout(p=0.3) is identity in eval mode; row 0 of each batch element is
    # the CLS token; drop the lane padding.
    return out.reshape(B, S, LANE_PAD)[:, 0, :NUM_LABELS]


# ------------------------------------ main ------------------------------------
if __name__ == "__main__":
    key = jax.random.PRNGKey(0)
    pkey, ikey = jax.random.split(key)
    params = init_params(pkey)
    packed = pack_params(params)   # packed ONCE, outside the jitted forward

    input_ids = jax.random.randint(ikey, (BATCH, SEQ), 0, VOCAB_SIZE,
                                   dtype=jnp.int32)
    attention_mask = jnp.array(
        [[1, 1, 1, 1, 1, 1, 0, 0],
         [1, 1, 1, 1, 1, 1, 1, 1]], dtype=jnp.int32)

    forward = jax.jit(sentiment_classifier_forward)
    logits = forward(packed, input_ids, attention_mask)
    logits = jax.block_until_ready(logits)
    assert logits.shape == (BATCH, NUM_LABELS)
    assert bool(jnp.all(jnp.isfinite(logits)))
    print("KERNEL_OK")
</pallas_src>

<mosaic_0001>
module attributes {stable_mosaic.version = 11 : i64} {
  func.func @_fused_bert_kernel(%arg0: memref<2x8xi32, #tpu.memory_space<smem>>, %arg1: memref<2x8xf32, #tpu.memory_space<vmem>>, %arg2: memref<100x32xf32, #tpu.memory_space<vmem>>, %arg3: memref<16x32xf32, #tpu.memory_space<vmem>>, %arg4: memref<2x32xf32, #tpu.memory_space<vmem>>, %arg5: memref<2x32x96xbf16, #tpu.memory_space<vmem>>, %arg6: memref<2x32x32xbf16, #tpu.memory_space<vmem>>, %arg7: memref<2x32x64xbf16, #tpu.memory_space<vmem>>, %arg8: memref<2x64x32xbf16, #tpu.memory_space<vmem>>, %arg9: memref<32x32xbf16, #tpu.memory_space<vmem>>, %arg10: memref<32x128xbf16, #tpu.memory_space<vmem>>, %arg11: memref<20x128xf32, #tpu.memory_space<vmem>>, %arg12: memref<16x128xf32, #tpu.memory_space<vmem>>, %arg13: memref<16x32xf32, #tpu.memory_space<vmem>>, %arg14: memref<16x32xf32, #tpu.memory_space<vmem>>) attributes {dimension_semantics = [], scalar_prefetch = 0 : i64, scratch_operands = 2 : i64, tpu.core_type = #tpu.core_type<tc>} {
    %c0 = arith.constant 0 : index
    %c0_0 = arith.constant 0 : index
    %0 = vector.load %arg11[%c0, %c0_0] : memref<20x128xf32, #tpu.memory_space<vmem>>, vector<20x128xf32>
    %c0_1 = arith.constant 0 : index
    %c0_2 = arith.constant 0 : index
    %1 = vector.load %arg4[%c0_1, %c0_2] : memref<2x32xf32, #tpu.memory_space<vmem>>, vector<1x32xf32>
    %c0_3 = arith.constant 0 : index
    %c0_4 = arith.constant 0 : index
    %2 = memref.load %arg0[%c0_3, %c0_4] : memref<2x8xi32, #tpu.memory_space<smem>>
    %3 = arith.index_cast %2 : i32 to index
    %c0_5 = arith.constant 0 : index
    %4 = vector.load %arg2[%3, %c0_5] : memref<100x32xf32, #tpu.memory_space<vmem>>, vector<1x32xf32>
    %c0_6 = arith.constant 0 : index
    %c0_7 = arith.constant 0 : index
    %5 = vector.load %arg3[%c0_6, %c0_7] : memref<16x32xf32, #tpu.memory_space<vmem>>, vector<1x32xf32>
    %6 = arith.addf %4, %5 : vector<1x32xf32>
    %7 = arith.addf %6, %1 : vector<1x32xf32>
    %c0_8 = arith.constant 0 : index
    %c0_9 = arith.constant 0 : index
    %8 = vector.load %arg13[%c0_8, %c0_9] : memref<16x32xf32, #tpu.memory_space<vmem>>, vector<1x32xf32>
    tpu.vector_store %arg13[%c0_8, %c0_9], %7 {strides = array<i32>} : memref<16x32xf32, #tpu.memory_space<vmem>>, vector<1x32xf32>,
    %c0_10 = arith.constant 0 : index
    %c1 = arith.constant 1 : index
    %9 = memref.load %arg0[%c0_10, %c1] : memref<2x8xi32, #tpu.memory_space<smem>>
    %10 = arith.index_cast %9 : i32 to index
    %c0_11 = arith.constant 0 : index
    %11 = vector.load %arg2[%10, %c0_11] : memref<100x32xf32, #tpu.memory_space<vmem>>, vector<1x32xf32>
    %c1_12 = arith.constant 1 : index
    %c0_13 = arith.constant 0 : index
    %12 = vector.load %arg3[%c1_12, %c0_13] : memref<16x32xf32, #tpu.memory_space<vmem>>, vector<1x32xf32>
    %13 = arith.addf %11, %12 : vector<1x32xf32>
    %14 = arith.addf %13, %1 : vector<1x32xf32>
    %c1_14 = arith.constant 1 : index
    %c0_15 = arith.constant 0 : index
    %15 = vector.load %arg13[%c1_14, %c0_15] : memref<16x32xf32, #tpu.memory_space<vmem>>, vector<1x32xf32>
    tpu.vector_store %arg13[%c1_14, %c0_15], %14 {strides = array<i32>} : memref<16x32xf32, #tpu.memory_space<vmem>>, vector<1x32xf32>,
    %c0_16 = arith.constant 0 : index
    %c2 = arith.constant 2 : index
    %16 = memref.load %arg0[%c0_16, %c2] : memref<2x8xi32, #tpu.memory_space<smem>>
    %17 = arith.index_cast %16 : i32 to index
    %c0_17 = arith.constant 0 : index
    %18 = vector.load %arg2[%17, %c0_17] : memref<100x32xf32, #tpu.memory_space<vmem>>, vector<1x32xf32>
    %c2_18 = arith.constant 2 : index
    %c0_19 = arith.constant 0 : index
    %19 = vector.load %arg3[%c2_18, %c0_19] : memref<16x32xf32, #tpu.memory_space<vmem>>, vector<1x32xf32>
    %20 = arith.addf %18, %19 : vector<1x32xf32>
    %21 = arith.addf %20, %1 : vector<1x32xf32>
    %c2_20 = arith.constant 2 : index
    %c0_21 = arith.constant 0 : index
    %22 = vector.load %arg13[%c2_20, %c0_21] : memref<16x32xf32, #tpu.memory_space<vmem>>, vector<1x32xf32>
    tpu.vector_store %arg13[%c2_20, %c0_21], %21 {strides = array<i32>} : memref<16x32xf32, #tpu.memory_space<vmem>>, vector<1x32xf32>,
    %c0_22 = arith.constant 0 : index
    %c3 = arith.constant 3 : index
    %23 = memref.load %arg0[%c0_22, %c3] : memref<2x8xi32, #tpu.memory_space<smem>>
    %24 = arith.index_cast %23 : i32 to index
    %c0_23 = arith.constant 0 : index
    %25 = vector.load %arg2[%24, %c0_23] : memref<100x32xf32, #tpu.memory_space<vmem>>, vector<1x32xf32>
    %c3_24 = arith.constant 3 : index
    %c0_25 = arith.constant 0 : index
    %26 = vector.load %arg3[%c3_24, %c0_25] : memref<16x32xf32, #tpu.memory_space<vmem>>, vector<1x32xf32>
    %27 = arith.addf %25, %26 : vector<1x32xf32>
    %28 = arith.addf %27, %1 : vector<1x32xf32>
    %c3_26 = arith.constant 3 : index
    %c0_27 = arith.constant 0 : index
    %29 = vector.load %arg13[%c3_26, %c0_27] : memref<16x32xf32, #tpu.memory_space<vmem>>, vector<1x32xf32>
    tpu.vector_store %arg13[%c3_26, %c0_27], %28 {strides = array<i32>} : memref<16x32xf32, #tpu.memory_space<vmem>>, vector<1x32xf32>,
    %c0_28 = arith.constant 0 : index
    %c4 = arith.constant 4 : index
    %30 = memref.load %arg0[%c0_28, %c4] : memref<2x8xi32, #tpu.memory_space<smem>>
    %31 = arith.index_cast %30 : i32 to index
    %c0_29 = arith.constant 0 : index
    %32 = vector.load %arg2[%31, %c0_29] : memref<100x32xf32, #tpu.memory_space<vmem>>, vector<1x32xf32>
    %c4_30 = arith.constant 4 : index
    %c0_31 = arith.constant 0 : index
    %33 = vector.load %arg3[%c4_30, %c0_31] : memref<16x32xf32, #tpu.memory_space<vmem>>, vector<1x32xf32>
    %34 = arith.addf %32, %33 : vector<1x32xf32>
    %35 = arith.addf %34, %1 : vector<1x32xf32>
    %c4_32 = arith.constant 4 : index
    %c0_33 = arith.constant 0 : index
    %36 = vector.load %arg13[%c4_32, %c0_33] : memref<16x32xf32, #tpu.memory_space<vmem>>, vector<1x32xf32>
    tpu.vector_store %arg13[%c4_32, %c0_33], %35 {strides = array<i32>} : memref<16x32xf32, #tpu.memory_space<vmem>>, vector<1x32xf32>,
    %c0_34 = arith.constant 0 : index
    %c5 = arith.constant 5 : index
    %37 = memref.load %arg0[%c0_34, %c5] : memref<2x8xi32, #tpu.memory_space<smem>>
    %38 = arith.index_cast %37 : i32 to index
    %c0_35 = arith.constant 0 : index
    %39 = vector.load %arg2[%38, %c0_35] : memref<100x32xf32, #tpu.memory_space<vmem>>, vector<1x32xf32>
    %c5_36 = arith.constant 5 : index
    %c0_37 = arith.constant 0 : index
    %40 = vector.load %arg3[%c5_36, %c0_37] : memref<16x32xf32, #tpu.memory_space<vmem>>, vector<1x32xf32>
    %41 = arith.addf %39, %40 : vector<1x32xf32>
    %42 = arith.addf %41, %1 : vector<1x32xf32>
    %c5_38 = arith.constant 5 : index
    %c0_39 = arith.constant 0 : index
    %43 = vector.load %arg13[%c5_38, %c0_39] : memref<16x32xf32, #tpu.memory_space<vmem>>, vector<1x32xf32>
    tpu.vector_store %arg13[%c5_38, %c0_39], %42 {strides = array<i32>} : memref<16x32xf32, #tpu.memory_space<vmem>>, vector<1x32xf32>,
    %c0_40 = arith.constant 0 : index
    %c6 = arith.constant 6 : index
    %44 = memref.load %arg0[%c0_40, %c6] : memref<2x8xi32, #tpu.memory_space<smem>>
    %45 = arith.index_cast %44 : i32 to index
    %c0_41 = arith.constant 0 : index
    %46 = vector.load %arg2[%45, %c0_41] : memref<100x32xf32, #tpu.memory_space<vmem>>, vector<1x32xf32>
    %c6_42 = arith.constant 6 : index
    %c0_43 = arith.constant 0 : index
    %47 = vector.load %arg3[%c6_42, %c0_43] : memref<16x32xf32, #tpu.memory_space<vmem>>, vector<1x32xf32>
    %48 = arith.addf %46, %47 : vector<1x32xf32>
    %49 = arith.addf %48, %1 : vector<1x32xf32>
    %c6_44 = arith.constant 6 : index
    %c0_45 = arith.constant 0 : index
    %50 = vector.load %arg13[%c6_44, %c0_45] : memref<16x32xf32, #tpu.memory_space<vmem>>, vector<1x32xf32>
    tpu.vector_store %arg13[%c6_44, %c0_45], %49 {strides = array<i32>} : memref<16x32xf32, #tpu.memory_space<vmem>>, vector<1x32xf32>,
    %c0_46 = arith.constant 0 : index
    %c7 = arith.constant 7 : index
    %51 = memref.load %arg0[%c0_46, %c7] : memref<2x8xi32, #tpu.memory_space<smem>>
    %52 = arith.index_cast %51 : i32 to index
    %c0_47 = arith.constant 0 : index
    %53 = vector.load %arg2[%52, %c0_47] : memref<100x32xf32, #tpu.memory_space<vmem>>, vector<1x32xf32>
    %c7_48 = arith.constant 7 : index
    %c0_49 = arith.constant 0 : index
    %54 = vector.load %arg3[%c7_48, %c0_49] : memref<16x32xf32, #tpu.memory_space<vmem>>, vector<1x32xf32>
    %55 = arith.addf %53, %54 : vector<1x32xf32>
    %56 = arith.addf %55, %1 : vector<1x32xf32>
    %c7_50 = arith.constant 7 : index
    %c0_51 = arith.constant 0 : index
    %57 = vector.load %arg13[%c7_50, %c0_51] : memref<16x32xf32, #tpu.memory_space<vmem>>, vector<1x32xf32>
    tpu.vector_store %arg13[%c7_50, %c0_51], %56 {strides = array<i32>} : memref<16x32xf32, #tpu.memory_space<vmem>>, vector<1x32xf32>,
    %c1_52 = arith.constant 1 : index
    %c0_53 = arith.constant 0 : index
    %58 = memref.load %arg0[%c1_52, %c0_53] : memref<2x8xi32, #tpu.memory_space<smem>>
    %59 = arith.index_cast %58 : i32 to index
    %c0_54 = arith.constant 0 : index
    %60 = vector.load %arg2[%59, %c0_54] : memref<100x32xf32, #tpu.memory_space<vmem>>, vector<1x32xf32>
    %c0_55 = arith.constant 0 : index
    %c0_56 = arith.constant 0 : index
    %61 = vector.load %arg3[%c0_55, %c0_56] : memref<16x32xf32, #tpu.memory_space<vmem>>, vector<1x32xf32>
    %62 = arith.addf %60, %61 : vector<1x32xf32>
    %63 = arith.addf %62, %1 : vector<1x32xf32>
    %c8 = arith.constant 8 : index
    %c0_57 = arith.constant 0 : index
    %64 = vector.load %arg13[%c8, %c0_57] : memref<16x32xf32, #tpu.memory_space<vmem>>, vector<1x32xf32>
    tpu.vector_store %arg13[%c8, %c0_57], %63 {strides = array<i32>} : memref<16x32xf32, #tpu.memory_space<vmem>>, vector<1x32xf32>,
    %c1_58 = arith.constant 1 : index
    %c1_59 = arith.constant 1 : index
    %65 = memref.load %arg0[%c1_58, %c1_59] : memref<2x8xi32, #tpu.memory_space<smem>>
    %66 = arith.index_cast %65 : i32 to index
    %c0_60 = arith.constant 0 : index
    %67 = vector.load %arg2[%66, %c0_60] : memref<100x32xf32, #tpu.memory_space<vmem>>, vector<1x32xf32>
    %c1_61 = arith.constant 1 : index
    %c0_62 = arith.constant 0 : index
    %68 = vector.load %arg3[%c1_61, %c0_62] : memref<16x32xf32, #tpu.memory_space<vmem>>, vector<1x32xf32>
    %69 = arith.addf %67, %68 : vector<1x32xf32>
    %70 = arith.addf %69, %1 : vector<1x32xf32>
    %c9 = arith.constant 9 : index
    %c0_63 = arith.constant 0 : index
    %71 = vector.load %arg13[%c9, %c0_63] : memref<16x32xf32, #tpu.memory_space<vmem>>, vector<1x32xf32>
    tpu.vector_store %arg13[%c9, %c0_63], %70 {strides = array<i32>} : memref<16x32xf32, #tpu.memory_space<vmem>>, vector<1x32xf32>,
    %c1_64 = arith.constant 1 : index
    %c2_65 = arith.constant 2 : index
    %72 = memref.load %arg0[%c1_64, %c2_65] : memref<2x8xi32, #tpu.memory_space<smem>>
    %73 = arith.index_cast %72 : i32 to index
    %c0_66 = arith.constant 0 : index
    %74 = vector.load %arg2[%73, %c0_66] : memref<100x32xf32, #tpu.memory_space<vmem>>, vector<1x32xf32>
    %c2_67 = arith.constant 2 : index
    %c0_68 = arith.constant 0 : index
    %75 = vector.load %arg3[%c2_67, %c0_68] : memref<16x32xf32, #tpu.memory_space<vmem>>, vector<1x32xf32>
    %76 = arith.addf %74, %75 : vector<1x32xf32>
    %77 = arith.addf %76, %1 : vector<1x32xf32>
    %c10 = arith.constant 10 : index
    %c0_69 = arith.constant 0 : index
    %78 = vector.load %arg13[%c10, %c0_69] : memref<16x32xf32, #tpu.memory_space<vmem>>, vector<1x32xf32>
    tpu.vector_store %arg13[%c10, %c0_69], %77 {strides = array<i32>} : memref<16x32xf32, #tpu.memory_space<vmem>>, vector<1x32xf32>,
    %c1_70 = arith.constant 1 : index
    %c3_71 = arith.constant 3 : index
    %79 = memref.load %arg0[%c1_70, %c3_71] : memref<2x8xi32, #tpu.memory_space<smem>>
    %80 = arith.index_cast %79 : i32 to index
    %c0_72 = arith.constant 0 : index
    %81 = vector.load %arg2[%80, %c0_72] : memref<100x32xf32, #tpu.memory_space<vmem>>, vector<1x32xf32>
    %c3_73 = arith.constant 3 : index
    %c0_74 = arith.constant 0 : index
    %82 = vector.load %arg3[%c3_73, %c0_74] : memref<16x32xf32, #tpu.memory_space<vmem>>, vector<1x32xf32>
    %83 = arith.addf %81, %82 : vector<1x32xf32>
    %84 = arith.addf %83, %1 : vector<1x32xf32>
    %c11 = arith.constant 11 : index
    %c0_75 = arith.constant 0 : index
    %85 = vector.load %arg13[%c11, %c0_75] : memref<16x32xf32, #tpu.memory_space<vmem>>, vector<1x32xf32>
    tpu.vector_store %arg13[%c11, %c0_75], %84 {strides = array<i32>} : memref<16x32xf32, #tpu.memory_space<vmem>>, vector<1x32xf32>,
    %c1_76 = arith.constant 1 : index
    %c4_77 = arith.constant 4 : index
    %86 = memref.load %arg0[%c1_76, %c4_77] : memref<2x8xi32, #tpu.memory_space<smem>>
    %87 = arith.index_cast %86 : i32 to index
    %c0_78 = arith.constant 0 : index
    %88 = vector.load %arg2[%87, %c0_78] : memref<100x32xf32, #tpu.memory_space<vmem>>, vector<1x32xf32>
    %c4_79 = arith.constant 4 : index
    %c0_80 = arith.constant 0 : index
    %89 = vector.load %arg3[%c4_79, %c0_80] : memref<16x32xf32, #tpu.memory_space<vmem>>, vector<1x32xf32>
    %90 = arith.addf %88, %89 : vector<1x32xf32>
    %91 = arith.addf %90, %1 : vector<1x32xf32>
    %c12 = arith.constant 12 : index
    %c0_81 = arith.constant 0 : index
    %92 = vector.load %arg13[%c12, %c0_81] : memref<16x32xf32, #tpu.memory_space<vmem>>, vector<1x32xf32>
    tpu.vector_store %arg13[%c12, %c0_81], %91 {strides = array<i32>} : memref<16x32xf32, #tpu.memory_space<vmem>>, vector<1x32xf32>,
    %c1_82 = arith.constant 1 : index
    %c5_83 = arith.constant 5 : index
    %93 = memref.load %arg0[%c1_82, %c5_83] : memref<2x8xi32, #tpu.memory_space<smem>>
    %94 = arith.index_cast %93 : i32 to index
    %c0_84 = arith.constant 0 : index
    %95 = vector.load %arg2[%94, %c0_84] : memref<100x32xf32, #tpu.memory_space<vmem>>, vector<1x32xf32>
    %c5_85 = arith.constant 5 : index
    %c0_86 = arith.constant 0 : index
    %96 = vector.load %arg3[%c5_85, %c0_86] : memref<16x32xf32, #tpu.memory_space<vmem>>, vector<1x32xf32>
    %97 = arith.addf %95, %96 : vector<1x32xf32>
    %98 = arith.addf %97, %1 : vector<1x32xf32>
    %c13 = arith.constant 13 : index
    %c0_87 = arith.constant 0 : index
    %99 = vector.load %arg13[%c13, %c0_87] : memref<16x32xf32, #tpu.memory_space<vmem>>, vector<1x32xf32>
    tpu.vector_store %arg13[%c13, %c0_87], %98 {strides = array<i32>} : memref<16x32xf32, #tpu.memory_space<vmem>>, vector<1x32xf32>,
    %c1_88 = arith.constant 1 : index
    %c6_89 = arith.constant 6 : index
    %100 = memref.load %arg0[%c1_88, %c6_89] : memref<2x8xi32, #tpu.memory_space<smem>>
    %101 = arith.index_cast %100 : i32 to index
    %c0_90 = arith.constant 0 : index
    %102 = vector.load %arg2[%101, %c0_90] : memref<100x32xf32, #tpu.memory_space<vmem>>, vector<1x32xf32>
    %c6_91 = arith.constant 6 : index
    %c0_92 = arith.constant 0 : index
    %103 = vector.load %arg3[%c6_91, %c0_92] : memref<16x32xf32, #tpu.memory_space<vmem>>, vector<1x32xf32>
    %104 = arith.addf %102, %103 : vector<1x32xf32>
    %105 = arith.addf %104, %1 : vector<1x32xf32>
    %c14 = arith.constant 14 : index
    %c0_93 = arith.constant 0 : index
    %106 = vector.load %arg13[%c14, %c0_93] : memref<16x32xf32, #tpu.memory_space<vmem>>, vector<1x32xf32>
    tpu.vector_store %arg13[%c14, %c0_93], %105 {strides = array<i32>} : memref<16x32xf32, #tpu.memory_space<vmem>>, vector<1x32xf32>,
    %c1_94 = arith.constant 1 : index
    %c7_95 = arith.constant 7 : index
    %107 = memref.load %arg0[%c1_94, %c7_95] : memref<2x8xi32, #tpu.memory_space<smem>>
    %108 = arith.index_cast %107 : i32 to index
    %c0_96 = arith.constant 0 : index
    %109 = vector.load %arg2[%108, %c0_96] : memref<100x32xf32, #tpu.memory_space<vmem>>, vector<1x32xf32>
    %c7_97 = arith.constant 7 : index
    %c0_98 = arith.constant 0 : index
    %110 = vector.load %arg3[%c7_97, %c0_98] : memref<16x32xf32, #tpu.memory_space<vmem>>, vector<1x32xf32>
    %111 = arith.addf %109, %110 : vector<1x32xf32>
    %112 = arith.addf %111, %1 : vector<1x32xf32>
    %c15 = arith.constant 15 : index
    %c0_99 = arith.constant 0 : index
    %113 = vector.load %arg13[%c15, %c0_99] : memref<16x32xf32, #tpu.memory_space<vmem>>, vector<1x32xf32>
    tpu.vector_store %arg13[%c15, %c0_99], %112 {strides = array<i32>} : memref<16x32xf32, #tpu.memory_space<vmem>>, vector<1x32xf32>,
    %c0_100 = arith.constant 0 : index
    %c0_101 = arith.constant 0 : index
    %114 = vector.load %arg13[%c0_100, %c0_101] : memref<16x32xf32, #tpu.memory_space<vmem>>, vector<16x32xf32>
    %115 = vector.extract_strided_slice %0 {offsets = [0, 0], sizes = [1, 32], strides = [1, 1]} : vector<20x128xf32> to vector<1x32xf32>
    %116 = vector.extract_strided_slice %0 {offsets = [1, 0], sizes = [1, 32], strides = [1, 1]} : vector<20x128xf32> to vector<1x32xf32>
    %cst = arith.constant dense<0.000000e+00> : vector<16xf32>
    %117 = vector.multi_reduction <add>, %114, %cst [1] : vector<16x32xf32> to vector<16xf32>
    %118 = vector.shape_cast %117 : vector<16xf32> to vector<16x1xf32>
    %cst_102 = arith.constant 3.200000e+01 : f32
    %119 = vector.broadcast %cst_102 : f32 to vector<16x1xf32>
    %120 = arith.divf %118, %119 : vector<16x1xf32>
    %121 = vector.broadcast %120 : vector<16x1xf32> to vector<16x32xf32>
    %122 = arith.subf %114, %121 : vector<16x32xf32>
    %123 = arith.mulf %122, %122 : vector<16x32xf32>
    %cst_103 = arith.constant dense<0.000000e+00> : vector<16xf32>
    %124 = vector.multi_reduction <add>, %123, %cst_103 [1] : vector<16x32xf32> to vector<16xf32>
    %125 = vector.shape_cast %124 : vector<16xf32> to vector<16x1xf32>
    %cst_104 = arith.constant 3.200000e+01 : f32
    %126 = vector.broadcast %cst_104 : f32 to vector<16x1xf32>
    %127 = arith.divf %125, %126 : vector<16x1xf32>
    %128 = vector.broadcast %120 : vector<16x1xf32> to vector<16x32xf32>
    %129 = arith.subf %114, %128 : vector<16x32xf32>
    %cst_105 = arith.constant 9.99999996E-13 : f32
    %130 = vector.broadcast %cst_105 : f32 to vector<16x1xf32>
    %131 = arith.addf %127, %130 : vector<16x1xf32>
    %132 = math.rsqrt %131 : vector<16x1xf32>
    %133 = vector.broadcast %132 : vector<16x1xf32> to vector<16x32xf32>
    %134 = arith.mulf %129, %133 : vector<16x32xf32>
    %135 = vector.broadcast %115 : vector<1x32xf32> to vector<16x32xf32>
    %136 = arith.mulf %134, %135 : vector<16x32xf32>
    %137 = vector.broadcast %116 : vector<1x32xf32> to vector<16x32xf32>
    %138 = arith.addf %136, %137 : vector<16x32xf32>
    %c0_106 = arith.constant 0 : index
    %c0_107 = arith.constant 0 : index
    %139 = vector.load %arg1[%c0_106, %c0_107] : memref<2x8xf32, #tpu.memory_space<vmem>>, vector<1x8xf32>
    %140 = vector.shape_cast %139 : vector<1x8xf32> to vector<1x8xf32>
    %141 = vector.broadcast %140 : vector<1x8xf32> to vector<8x8xf32>
    %c1_108 = arith.constant 1 : index
    %c0_109 = arith.constant 0 : index
    %142 = vector.load %arg1[%c1_108, %c0_109] : memref<2x8xf32, #tpu.memory_space<vmem>>, vector<1x8xf32>
    %143 = vector.shape_cast %142 : vector<1x8xf32> to vector<1x8xf32>
    %144 = vector.broadcast %143 : vector<1x8xf32> to vector<8x8xf32>
    %145 = vector.extract_strided_slice %0 {offsets = [4, 0], sizes = [1, 96], strides = [1, 1]} : vector<20x128xf32> to vector<1x96xf32>
    %146 = vector.extract_strided_slice %0 {offsets = [5, 0], sizes = [1, 32], strides = [1, 1]} : vector<20x128xf32> to vector<1x32xf32>
    %147 = vector.extract_strided_slice %0 {offsets = [6, 0], sizes = [1, 32], strides = [1, 1]} : vector<20x128xf32> to vector<1x32xf32>
    %148 = vector.extract_strided_slice %0 {offsets = [7, 0], sizes = [1, 32], strides = [1, 1]} : vector<20x128xf32> to vector<1x32xf32>
    %149 = vector.extract_strided_slice %0 {offsets = [8, 0], sizes = [1, 64], strides = [1, 1]} : vector<20x128xf32> to vector<1x64xf32>
    %150 = vector.extract_strided_slice %0 {offsets = [9, 0], sizes = [1, 32], strides = [1, 1]} : vector<20x128xf32> to vector<1x32xf32>
    %151 = vector.extract_strided_slice %0 {offsets = [10, 0], sizes = [1, 32], strides = [1, 1]} : vector<20x128xf32> to vector<1x32xf32>
    %152 = vector.extract_strided_slice %0 {offsets = [11, 0], sizes = [1, 32], strides = [1, 1]} : vector<20x128xf32> to vector<1x32xf32>
    %153 = arith.truncf %138 : vector<16x32xf32> to vector<16x32xbf16>
    %c0_110 = arith.constant 0 : index
    %c0_111 = arith.constant 0 : index
    %c0_112 = arith.constant 0 : index
    %154 = vector.load %arg5[%c0_110, %c0_111, %c0_112] : memref<2x32x96xbf16, #tpu.memory_space<vmem>>, vector<1x32x96xbf16>
    %155 = vector.shape_cast %154 : vector<1x32x96xbf16> to vector<32x96xbf16>
    %cst_113 = arith.constant dense<0.000000e+00> : vector<16x96xf32>
    %156 = tpu.matmul %153, %155, %cst_113 {dimension_numbers = #tpu.dot_dimension_numbers<[1], [0], [0], [1], [0, 0, 1, 1], [], []>} : vector<16x32xbf16>, vector<32x96xbf16>, vector<16x96xf32> -> vector<16x96xf32>
    %157 = vector.broadcast %145 : vector<1x96xf32> to vector<16x96xf32>
    %158 = arith.addf %156, %157 : vector<16x96xf32>
    %159 = vector.extract_strided_slice %158 {offsets = [0, 0], sizes = [16, 32], strides = [1, 1]} : vector<16x96xf32> to vector<16x32xf32>
    %160 = vector.extract_strided_slice %158 {offsets = [0, 32], sizes = [16, 32], strides = [1, 1]} : vector<16x96xf32> to vector<16x32xf32>
    %161 = vector.extract_strided_slice %158 {offsets = [0, 64], sizes = [16, 32], strides = [1, 1]} : vector<16x96xf32> to vector<16x32xf32>
    %162 = vector.extract_strided_slice %159 {offsets = [0, 0], sizes = [8, 8], strides = [1, 1]} : vector<16x32xf32> to vector<8x8xf32>
    %163 = arith.truncf %162 : vector<8x8xf32> to vector<8x8xbf16>
    %164 = vector.extract_strided_slice %160 {offsets = [0, 0], sizes = [8, 8], strides = [1, 1]} : vector<16x32xf32> to vector<8x8xf32>
    %165 = arith.truncf %164 : vector<8x8xf32> to vector<8x8xbf16>
    %166 = vector.extract_strided_slice %161 {offsets = [0, 0], sizes = [8, 8], strides = [1, 1]} : vector<16x32xf32> to vector<8x8xf32>
    %167 = arith.truncf %166 : vector<8x8xf32> to vector<8x8xbf16>
    %cst_114 = arith.constant dense<0.000000e+00> : vector<8x8xf32>
    %168 = tpu.matmul %163, %165, %cst_114 {dimension_numbers = #tpu.dot_dimension_numbers<[1], [1], [0], [0], [0, 0, 1, 0], [], []>} : vector<8x8xbf16>, vector<8x8xbf16>, vector<8x8xf32> -> vector<8x8xf32>
    %169 = arith.addf %168, %141 : vector<8x8xf32>
    %cst_115 = arith.constant dense<0xFF800000> : vector<8xf32>
    %170 = vector.multi_reduction <maximumf>, %169, %cst_115 [1] : vector<8x8xf32> to vector<8xf32>
    %171 = vector.shape_cast %170 : vector<8xf32> to vector<8x1xf32>
    %172 = vector.broadcast %171 : vector<8x1xf32> to vector<8x8xf32>
    %173 = arith.subf %169, %172 : vector<8x8xf32>
    %174 = math.exp %173 : vector<8x8xf32>
    %cst_116 = arith.constant dense<0.000000e+00> : vector<8xf32>
    %175 = vector.multi_reduction <add>, %174, %cst_116 [1] : vector<8x8xf32> to vector<8xf32>
    %176 = vector.shape_cast %175 : vector<8xf32> to vector<8x1xf32>
    %177 = tpu.reciprocal %176 {approx = true} : vector<8x1xf32> -> vector<8x1xf32>
    %178 = vector.broadcast %177 : vector<8x1xf32> to vector<8x8xf32>
    %179 = arith.mulf %174, %178 : vector<8x8xf32>
    %180 = arith.truncf %179 : vector<8x8xf32> to vector<8x8xbf16>
    %cst_117 = arith.constant dense<0.000000e+00> : vector<8x8xf32>
    %181 = tpu.matmul %180, %167, %cst_117 {dimension_numbers = #tpu.dot_dimension_numbers<[1], [0], [0], [1], [0, 0, 1, 1], [], []>} : vector<8x8xbf16>, vector<8x8xbf16>, vector<8x8xf32> -> vector<8x8xf32>
    %c0_118 = arith.constant 0 : index
    %c0_119 = arith.constant 0 : index
    %182 = vector.load %arg14[%c0_118, %c0_119] : memref<16x32xf32, #tpu.memory_space<vmem>>, vector<8x8xf32>
    tpu.vector_store %arg14[%c0_118, %c0_119], %181 {strides = array<i32>} : memref<16x32xf32, #tpu.memory_space<vmem>>, vector<8x8xf32>,
    %183 = vector.extract_strided_slice %159 {offsets = [0, 8], sizes = [8, 8], strides = [1, 1]} : vector<16x32xf32> to vector<8x8xf32>
    %184 = arith.truncf %183 : vector<8x8xf32> to vector<8x8xbf16>
    %185 = vector.extract_strided_slice %160 {offsets = [0, 8], sizes = [8, 8], strides = [1, 1]} : vector<16x32xf32> to vector<8x8xf32>
    %186 = arith.truncf %185 : vector<8x8xf32> to vector<8x8xbf16>
    %187 = vector.extract_strided_slice %161 {offsets = [0, 8], sizes = [8, 8], strides = [1, 1]} : vector<16x32xf32> to vector<8x8xf32>
    %188 = arith.truncf %187 : vector<8x8xf32> to vector<8x8xbf16>
    %cst_120 = arith.constant dense<0.000000e+00> : vector<8x8xf32>
    %189 = tpu.matmul %184, %186, %cst_120 {dimension_numbers = #tpu.dot_dimension_numbers<[1], [1], [0], [0], [0, 0, 1, 0], [], []>} : vector<8x8xbf16>, vector<8x8xbf16>, vector<8x8xf32> -> vector<8x8xf32>
    %190 = arith.addf %189, %141 : vector<8x8xf32>
    %cst_121 = arith.constant dense<0xFF800000> : vector<8xf32>
    %191 = vector.multi_reduction <maximumf>, %190, %cst_121 [1] : vector<8x8xf32> to vector<8xf32>
    %192 = vector.shape_cast %191 : vector<8xf32> to vector<8x1xf32>
    %193 = vector.broadcast %192 : vector<8x1xf32> to vector<8x8xf32>
    %194 = arith.subf %190, %193 : vector<8x8xf32>
    %195 = math.exp %194 : vector<8x8xf32>
    %cst_122 = arith.constant dense<0.000000e+00> : vector<8xf32>
    %196 = vector.multi_reduction <add>, %195, %cst_122 [1] : vector<8x8xf32> to vector<8xf32>
    %197 = vector.shape_cast %196 : vector<8xf32> to vector<8x1xf32>
    %198 = tpu.reciprocal %197 {approx = true} : vector<8x1xf32> -> vector<8x1xf32>
    %199 = vector.broadcast %198 : vector<8x1xf32> to vector<8x8xf32>
    %200 = arith.mulf %195, %199 : vector<8x8xf32>
    %201 = arith.truncf %200 : vector<8x8xf32> to vector<8x8xbf16>
    %cst_123 = arith.constant dense<0.000000e+00> : vector<8x8xf32>
    %202 = tpu.matmul %201, %188, %cst_123 {dimension_numbers = #tpu.dot_dimension_numbers<[1], [0], [0], [1], [0, 0, 1, 1], [], []>} : vector<8x8xbf16>, vector<8x8xbf16>, vector<8x8xf32> -> vector<8x8xf32>
    %c0_124 = arith.constant 0 : index
    %c8_125 = arith.constant 8 : index
    %203 = vector.load %arg14[%c0_124, %c8_125] : memref<16x32xf32, #tpu.memory_space<vmem>>, vector<8x8xf32>
    tpu.vector_store %arg14[%c0_124, %c8_125], %202 {strides = array<i32>} : memref<16x32xf32, #tpu.memory_space<vmem>>, vector<8x8xf32>,
    %204 = vector.extract_strided_slice %159 {offsets = [0, 16], sizes = [8, 8], strides = [1, 1]} : vector<16x32xf32> to vector<8x8xf32>
    %205 = arith.truncf %204 : vector<8x8xf32> to vector<8x8xbf16>
    %206 = vector.extract_strided_slice %160 {offsets = [0, 16], sizes = [8, 8], strides = [1, 1]} : vector<16x32xf32> to vector<8x8xf32>
    %207 = arith.truncf %206 : vector<8x8xf32> to vector<8x8xbf16>
    %208 = vector.extract_strided_slice %161 {offsets = [0, 16], sizes = [8, 8], strides = [1, 1]} : vector<16x32xf32> to vector<8x8xf32>
    %209 = arith.truncf %208 : vector<8x8xf32> to vector<8x8xbf16>
    %cst_126 = arith.constant dense<0.000000e+00> : vector<8x8xf32>
    %210 = tpu.matmul %205, %207, %cst_126 {dimension_numbers = #tpu.dot_dimension_numbers<[1], [1], [0], [0], [0, 0, 1, 0], [], []>} : vector<8x8xbf16>, vector<8x8xbf16>, vector<8x8xf32> -> vector<8x8xf32>
    %211 = arith.addf %210, %141 : vector<8x8xf32>
    %cst_127 = arith.constant dense<0xFF800000> : vector<8xf32>
    %212 = vector.multi_reduction <maximumf>, %211, %cst_127 [1] : vector<8x8xf32> to vector<8xf32>
    %213 = vector.shape_cast %212 : vector<8xf32> to vector<8x1xf32>
    %214 = vector.broadcast %213 : vector<8x1xf32> to vector<8x8xf32>
    %215 = arith.subf %211, %214 : vector<8x8xf32>
    %216 = math.exp %215 : vector<8x8xf32>
    %cst_128 = arith.constant dense<0.000000e+00> : vector<8xf32>
    %217 = vector.multi_reduction <add>, %216, %cst_128 [1] : vector<8x8xf32> to vector<8xf32>
    %218 = vector.shape_cast %217 : vector<8xf32> to vector<8x1xf32>
    %219 = tpu.reciprocal %218 {approx = true} : vector<8x1xf32> -> vector<8x1xf32>
    %220 = vector.broadcast %219 : vector<8x1xf32> to vector<8x8xf32>
    %221 = arith.mulf %216, %220 : vector<8x8xf32>
    %222 = arith.truncf %221 : vector<8x8xf32> to vector<8x8xbf16>
    %cst_129 = arith.constant dense<0.000000e+00> : vector<8x8xf32>
    %223 = tpu.matmul %222, %209, %cst_129 {dimension_numbers = #tpu.dot_dimension_numbers<[1], [0], [0], [1], [0, 0, 1, 1], [], []>} : vector<8x8xbf16>, vector<8x8xbf16>, vector<8x8xf32> -> vector<8x8xf32>
    %c0_130 = arith.constant 0 : index
    %c16 = arith.constant 16 : index
    %224 = vector.load %arg14[%c0_130, %c16] : memref<16x32xf32, #tpu.memory_space<vmem>>, vector<8x8xf32>
    tpu.vector_store %arg14[%c0_130, %c16], %223 {strides = array<i32>} : memref<16x32xf32, #tpu.memory_space<vmem>>, vector<8x8xf32>,
    %225 = vector.extract_strided_slice %159 {offsets = [0, 24], sizes = [8, 8], strides = [1, 1]} : vector<16x32xf32> to vector<8x8xf32>
    %226 = arith.truncf %225 : vector<8x8xf32> to vector<8x8xbf16>
    %227 = vector.extract_strided_slice %160 {offsets = [0, 24], sizes = [8, 8], strides = [1, 1]} : vector<16x32xf32> to vector<8x8xf32>
    %228 = arith.truncf %227 : vector<8x8xf32> to vector<8x8xbf16>
    %229 = vector.extract_strided_slice %161 {offsets = [0, 24], sizes = [8, 8], strides = [1, 1]} : vector<16x32xf32> to vector<8x8xf32>
    %230 = arith.truncf %229 : vector<8x8xf32> to vector<8x8xbf16>
    %cst_131 = arith.constant dense<0.000000e+00> : vector<8x8xf32>
    %231 = tpu.matmul %226, %228, %cst_131 {dimension_numbers = #tpu.dot_dimension_numbers<[1], [1], [0], [0], [0, 0, 1, 0], [], []>} : vector<8x8xbf16>, vector<8x8xbf16>, vector<8x8xf32> -> vector<8x8xf32>
    %232 = arith.addf %231, %141 : vector<8x8xf32>
    %cst_132 = arith.constant dense<0xFF800000> : vector<8xf32>
    %233 = vector.multi_reduction <maximumf>, %232, %cst_132 [1] : vector<8x8xf32> to vector<8xf32>
    %234 = vector.shape_cast %233 : vector<8xf32> to vector<8x1xf32>
    %235 = vector.broadcast %234 : vector<8x1xf32> to vector<8x8xf32>
    %236 = arith.subf %232, %235 : vector<8x8xf32>
    %237 = math.exp %236 : vector<8x8xf32>
    %cst_133 = arith.constant dense<0.000000e+00> : vector<8xf32>
    %238 = vector.multi_reduction <add>, %237, %cst_133 [1] : vector<8x8xf32> to vector<8xf32>
    %239 = vector.shape_cast %238 : vector<8xf32> to vector<8x1xf32>
    %240 = tpu.reciprocal %239 {approx = true} : vector<8x1xf32> -> vector<8x1xf32>
    %241 = vector.broadcast %240 : vector<8x1xf32> to vector<8x8xf32>
    %242 = arith.mulf %237, %241 : vector<8x8xf32>
    %243 = arith.truncf %242 : vector<8x8xf32> to vector<8x8xbf16>
    %cst_134 = arith.constant dense<0.000000e+00> : vector<8x8xf32>
    %244 = tpu.matmul %243, %230, %cst_134 {dimension_numbers = #tpu.dot_dimension_numbers<[1], [0], [0], [1], [0, 0, 1, 1], [], []>} : vector<8x8xbf16>, vector<8x8xbf16>, vector<8x8xf32> -> vector<8x8xf32>
    %c0_135 = arith.constant 0 : index
    %c24 = arith.constant 24 : index
    %245 = vector.load %arg14[%c0_135, %c24] : memref<16x32xf32, #tpu.memory_space<vmem>>, vector<8x8xf32>
    tpu.vector_store %arg14[%c0_135, %c24], %244 {strides = array<i32>} : memref<16x32xf32, #tpu.memory_space<vmem>>, vector<8x8xf32>,
    %246 = vector.extract_strided_slice %159 {offsets = [8, 0], sizes = [8, 8], strides = [1, 1]} : vector<16x32xf32> to vector<8x8xf32>
    %247 = arith.truncf %246 : vector<8x8xf32> to vector<8x8xbf16>
    %248 = vector.extract_strided_slice %160 {offsets = [8, 0], sizes = [8, 8], strides = [1, 1]} : vector<16x32xf32> to vector<8x8xf32>
    %249 = arith.truncf %248 : vector<8x8xf32> to vector<8x8xbf16>
    %250 = vector.extract_strided_slice %161 {offsets = [8, 0], sizes = [8, 8], strides = [1, 1]} : vector<16x32xf32> to vector<8x8xf32>
    %251 = arith.truncf %250 : vector<8x8xf32> to vector<8x8xbf16>
    %cst_136 = arith.constant dense<0.000000e+00> : vector<8x8xf32>
    %252 = tpu.matmul %247, %249, %cst_136 {dimension_numbers = #tpu.dot_dimension_numbers<[1], [1], [0], [0], [0, 0, 1, 0], [], []>} : vector<8x8xbf16>, vector<8x8xbf16>, vector<8x8xf32> -> vector<8x8xf32>
    %253 = arith.addf %252, %144 : vector<8x8xf32>
    %cst_137 = arith.constant dense<0xFF800000> : vector<8xf32>
    %254 = vector.multi_reduction <maximumf>, %253, %cst_137 [1] : vector<8x8xf32> to vector<8xf32>
    %255 = vector.shape_cast %254 : vector<8xf32> to vector<8x1xf32>
    %256 = vector.broadcast %255 : vector<8x1xf32> to vector<8x8xf32>
    %257 = arith.subf %253, %256 : vector<8x8xf32>
    %258 = math.exp %257 : vector<8x8xf32>
    %cst_138 = arith.constant dense<0.000000e+00> : vector<8xf32>
    %259 = vector.multi_reduction <add>, %258, %cst_138 [1] : vector<8x8xf32> to vector<8xf32>
    %260 = vector.shape_cast %259 : vector<8xf32> to vector<8x1xf32>
    %261 = tpu.reciprocal %260 {approx = true} : vector<8x1xf32> -> vector<8x1xf32>
    %262 = vector.broadcast %261 : vector<8x1xf32> to vector<8x8xf32>
    %263 = arith.mulf %258, %262 : vector<8x8xf32>
    %264 = arith.truncf %263 : vector<8x8xf32> to vector<8x8xbf16>
    %cst_139 = arith.constant dense<0.000000e+00> : vector<8x8xf32>
    %265 = tpu.matmul %264, %251, %cst_139 {dimension_numbers = #tpu.dot_dimension_numbers<[1], [0], [0], [1], [0, 0, 1, 1], [], []>} : vector<8x8xbf16>, vector<8x8xbf16>, vector<8x8xf32> -> vector<8x8xf32>
    %c8_140 = arith.constant 8 : index
    %c0_141 = arith.constant 0 : index
    %266 = vector.load %arg14[%c8_140, %c0_141] : memref<16x32xf32, #tpu.memory_space<vmem>>, vector<8x8xf32>
    tpu.vector_store %arg14[%c8_140, %c0_141], %265 {strides = array<i32>} : memref<16x32xf32, #tpu.memory_space<vmem>>, vector<8x8xf32>,
    %267 = vector.extract_strided_slice %159 {offsets = [8, 8], sizes = [8, 8], strides = [1, 1]} : vector<16x32xf32> to vector<8x8xf32>
    %268 = arith.truncf %267 : vector<8x8xf32> to vector<8x8xbf16>
    %269 = vector.extract_strided_slice %160 {offsets = [8, 8], sizes = [8, 8], strides = [1, 1]} : vector<16x32xf32> to vector<8x8xf32>
    %270 = arith.truncf %269 : vector<8x8xf32> to vector<8x8xbf16>
    %271 = vector.extract_strided_slice %161 {offsets = [8, 8], sizes = [8, 8], strides = [1, 1]} : vector<16x32xf32> to vector<8x8xf32>
    %272 = arith.truncf %271 : vector<8x8xf32> to vector<8x8xbf16>
    %cst_142 = arith.constant dense<0.000000e+00> : vector<8x8xf32>
    %273 = tpu.matmul %268, %270, %cst_142 {dimension_numbers = #tpu.dot_dimension_numbers<[1], [1], [0], [0], [0, 0, 1, 0], [], []>} : vector<8x8xbf16>, vector<8x8xbf16>, vector<8x8xf32> -> vector<8x8xf32>
    %274 = arith.addf %273, %144 : vector<8x8xf32>
    %cst_143 = arith.constant dense<0xFF800000> : vector<8xf32>
    %275 = vector.multi_reduction <maximumf>, %274, %cst_143 [1] : vector<8x8xf32> to vector<8xf32>
    %276 = vector.shape_cast %275 : vector<8xf32> to vector<8x1xf32>
    %277 = vector.broadcast %276 : vector<8x1xf32> to vector<8x8xf32>
    %278 = arith.subf %274, %277 : vector<8x8xf32>
    %279 = math.exp %278 : vector<8x8xf32>
    %cst_144 = arith.constant dense<0.000000e+00> : vector<8xf32>
    %280 = vector.multi_reduction <add>, %279, %cst_144 [1] : vector<8x8xf32> to vector<8xf32>
    %281 = vector.shape_cast %280 : vector<8xf32> to vector<8x1xf32>
    %282 = tpu.reciprocal %281 {approx = true} : vector<8x1xf32> -> vector<8x1xf32>
    %283 = vector.broadcast %282 : vector<8x1xf32> to vector<8x8xf32>
    %284 = arith.mulf %279, %283 : vector<8x8xf32>
    %285 = arith.truncf %284 : vector<8x8xf32> to vector<8x8xbf16>
    %cst_145 = arith.constant dense<0.000000e+00> : vector<8x8xf32>
    %286 = tpu.matmul %285, %272, %cst_145 {dimension_numbers = #tpu.dot_dimension_numbers<[1], [0], [0], [1], [0, 0, 1, 1], [], []>} : vector<8x8xbf16>, vector<8x8xbf16>, vector<8x8xf32> -> vector<8x8xf32>
    %c8_146 = arith.constant 8 : index
    %c8_147 = arith.constant 8 : index
    %287 = vector.load %arg14[%c8_146, %c8_147] : memref<16x32xf32, #tpu.memory_space<vmem>>, vector<8x8xf32>
    tpu.vector_store %arg14[%c8_146, %c8_147], %286 {strides = array<i32>} : memref<16x32xf32, #tpu.memory_space<vmem>>, vector<8x8xf32>,
    %288 = vector.extract_strided_slice %159 {offsets = [8, 16], sizes = [8, 8], strides = [1, 1]} : vector<16x32xf32> to vector<8x8xf32>
    %289 = arith.truncf %288 : vector<8x8xf32> to vector<8x8xbf16>
    %290 = vector.extract_strided_slice %160 {offsets = [8, 16], sizes = [8, 8], strides = [1, 1]} : vector<16x32xf32> to vector<8x8xf32>
    %291 = arith.truncf %290 : vector<8x8xf32> to vector<8x8xbf16>
    %292 = vector.extract_strided_slice %161 {offsets = [8, 16], sizes = [8, 8], strides = [1, 1]} : vector<16x32xf32> to vector<8x8xf32>
    %293 = arith.truncf %292 : vector<8x8xf32> to vector<8x8xbf16>
    %cst_148 = arith.constant dense<0.000000e+00> : vector<8x8xf32>
    %294 = tpu.matmul %289, %291, %cst_148 {dimension_numbers = #tpu.dot_dimension_numbers<[1], [1], [0], [0], [0, 0, 1, 0], [], []>} : vector<8x8xbf16>, vector<8x8xbf16>, vector<8x8xf32> -> vector<8x8xf32>
    %295 = arith.addf %294, %144 : vector<8x8xf32>
    %cst_149 = arith.constant dense<0xFF800000> : vector<8xf32>
    %296 = vector.multi_reduction <maximumf>, %295, %cst_149 [1] : vector<8x8xf32> to vector<8xf32>
    %297 = vector.shape_cast %296 : vector<8xf32> to vector<8x1xf32>
    %298 = vector.broadcast %297 : vector<8x1xf32> to vector<8x8xf32>
    %299 = arith.subf %295, %298 : vector<8x8xf32>
    %300 = math.exp %299 : vector<8x8xf32>
    %cst_150 = arith.constant dense<0.000000e+00> : vector<8xf32>
    %301 = vector.multi_reduction <add>, %300, %cst_150 [1] : vector<8x8xf32> to vector<8xf32>
    %302 = vector.shape_cast %301 : vector<8xf32> to vector<8x1xf32>
    %303 = tpu.reciprocal %302 {approx = true} : vector<8x1xf32> -> vector<8x1xf32>
    %304 = vector.broadcast %303 : vector<8x1xf32> to vector<8x8xf32>
    %305 = arith.mulf %300, %304 : vector<8x8xf32>
    %306 = arith.truncf %305 : vector<8x8xf32> to vector<8x8xbf16>
    %cst_151 = arith.constant dense<0.000000e+00> : vector<8x8xf32>
    %307 = tpu.matmul %306, %293, %cst_151 {dimension_numbers = #tpu.dot_dimension_numbers<[1], [0], [0], [1], [0, 0, 1, 1], [], []>} : vector<8x8xbf16>, vector<8x8xbf16>, vector<8x8xf32> -> vector<8x8xf32>
    %c8_152 = arith.constant 8 : index
    %c16_153 = arith.constant 16 : index
    %308 = vector.load %arg14[%c8_152, %c16_153] : memref<16x32xf32, #tpu.memory_space<vmem>>, vector<8x8xf32>
    tpu.vector_store %arg14[%c8_152, %c16_153], %307 {strides = array<i32>} : memref<16x32xf32, #tpu.memory_space<vmem>>, vector<8x8xf32>,
    %309 = vector.extract_strided_slice %159 {offsets = [8, 24], sizes = [8, 8], strides = [1, 1]} : vector<16x32xf32> to vector<8x8xf32>
    %310 = arith.truncf %309 : vector<8x8xf32> to vector<8x8xbf16>
    %311 = vector.extract_strided_slice %160 {offsets = [8, 24], sizes = [8, 8], strides = [1, 1]} : vector<16x32xf32> to vector<8x8xf32>
    %312 = arith.truncf %311 : vector<8x8xf32> to vector<8x8xbf16>
    %313 = vector.extract_strided_slice %161 {offsets = [8, 24], sizes = [8, 8], strides = [1, 1]} : vector<16x32xf32> to vector<8x8xf32>
    %314 = arith.truncf %313 : vector<8x8xf32> to vector<8x8xbf16>
    %cst_154 = arith.constant dense<0.000000e+00> : vector<8x8xf32>
    %315 = tpu.matmul %310, %312, %cst_154 {dimension_numbers = #tpu.dot_dimension_numbers<[1], [1], [0], [0], [0, 0, 1, 0], [], []>} : vector<8x8xbf16>, vector<8x8xbf16>, vector<8x8xf32> -> vector<8x8xf32>
    %316 = arith.addf %315, %144 : vector<8x8xf32>
    %cst_155 = arith.constant dense<0xFF800000> : vector<8xf32>
    %317 = vector.multi_reduction <maximumf>, %316, %cst_155 [1] : vector<8x8xf32> to vector<8xf32>
    %318 = vector.shape_cast %317 : vector<8xf32> to vector<8x1xf32>
    %319 = vector.broadcast %318 : vector<8x1xf32> to vector<8x8xf32>
    %320 = arith.subf %316, %319 : vector<8x8xf32>
    %321 = math.exp %320 : vector<8x8xf32>
    %cst_156 = arith.constant dense<0.000000e+00> : vector<8xf32>
    %322 = vector.multi_reduction <add>, %321, %cst_156 [1] : vector<8x8xf32> to vector<8xf32>
    %323 = vector.shape_cast %322 : vector<8xf32> to vector<8x1xf32>
    %324 = tpu.reciprocal %323 {approx = true} : vector<8x1xf32> -> vector<8x1xf32>
    %325 = vector.broadcast %324 : vector<8x1xf32> to vector<8x8xf32>
    %326 = arith.mulf %321, %325 : vector<8x8xf32>
    %327 = arith.truncf %326 : vector<8x8xf32> to vector<8x8xbf16>
    %cst_157 = arith.constant dense<0.000000e+00> : vector<8x8xf32>
    %328 = tpu.matmul %327, %314, %cst_157 {dimension_numbers = #tpu.dot_dimension_numbers<[1], [0], [0], [1], [0, 0, 1, 1], [], []>} : vector<8x8xbf16>, vector<8x8xbf16>, vector<8x8xf32> -> vector<8x8xf32>
    %c8_158 = arith.constant 8 : index
    %c24_159 = arith.constant 24 : index
    %329 = vector.load %arg14[%c8_158, %c24_159] : memref<16x32xf32, #tpu.memory_space<vmem>>, vector<8x8xf32>
    tpu.vector_store %arg14[%c8_158, %c24_159], %328 {strides = array<i32>} : memref<16x32xf32, #tpu.memory_space<vmem>>, vector<8x8xf32>,
    %c0_160 = arith.constant 0 : index
    %c0_161 = arith.constant 0 : index
    %330 = vector.load %arg14[%c0_160, %c0_161] : memref<16x32xf32, #tpu.memory_space<vmem>>, vector<16x32xf32>
    %331 = arith.truncf %330 : vector<16x32xf32> to vector<16x32xbf16>
    %c0_162 = arith.constant 0 : index
    %c0_163 = arith.constant 0 : index
    %c0_164 = arith.constant 0 : index
    %332 = vector.load %arg6[%c0_162, %c0_163, %c0_164] : memref<2x32x32xbf16, #tpu.memory_space<vmem>>, vector<1x32x32xbf16>
    %333 = vector.shape_cast %332 : vector<1x32x32xbf16> to vector<32x32xbf16>
    %cst_165 = arith.constant dense<0.000000e+00> : vector<16x32xf32>
    %334 = tpu.matmul %331, %333, %cst_165 {dimension_numbers = #tpu.dot_dimension_numbers<[1], [0], [0], [1], [0, 0, 1, 1], [], []>} : vector<16x32xbf16>, vector<32x32xbf16>, vector<16x32xf32> -> vector<16x32xf32>
    %335 = vector.broadcast %146 : vector<1x32xf32> to vector<16x32xf32>
    %336 = arith.addf %334, %335 : vector<16x32xf32>
    %337 = arith.addf %336, %138 : vector<16x32xf32>
    %cst_166 = arith.constant dense<0.000000e+00> : vector<16xf32>
    %338 = vector.multi_reduction <add>, %337, %cst_166 [1] : vector<16x32xf32> to vector<16xf32>
    %339 = vector.shape_cast %338 : vector<16xf32> to vector<16x1xf32>
    %cst_167 = arith.constant 3.200000e+01 : f32
    %340 = vector.broadcast %cst_167 : f32 to vector<16x1xf32>
    %341 = arith.divf %339, %340 : vector<16x1xf32>
    %342 = vector.broadcast %341 : vector<16x1xf32> to vector<16x32xf32>
    %343 = arith.subf %337, %342 : vector<16x32xf32>
    %344 = arith.mulf %343, %343 : vector<16x32xf32>
    %cst_168 = arith.constant dense<0.000000e+00> : vector<16xf32>
    %345 = vector.multi_reduction <add>, %344, %cst_168 [1] : vector<16x32xf32> to vector<16xf32>
    %346 = vector.shape_cast %345 : vector<16xf32> to vector<16x1xf32>
    %cst_169 = arith.constant 3.200000e+01 : f32
    %347 = vector.broadcast %cst_169 : f32 to vector<16x1xf32>
    %348 = arith.divf %346, %347 : vector<16x1xf32>
    %349 = vector.broadcast %341 : vector<16x1xf32> to vector<16x32xf32>
    %350 = arith.subf %337, %349 : vector<16x32xf32>
    %cst_170 = arith.constant 9.99999996E-13 : f32
    %351 = vector.broadcast %cst_170 : f32 to vector<16x1xf32>
    %352 = arith.addf %348, %351 : vector<16x1xf32>
    %353 = math.rsqrt %352 : vector<16x1xf32>
    %354 = vector.broadcast %353 : vector<16x1xf32> to vector<16x32xf32>
    %355 = arith.mulf %350, %354 : vector<16x32xf32>
    %356 = vector.broadcast %147 : vector<1x32xf32> to vector<16x32xf32>
    %357 = arith.mulf %355, %356 : vector<16x32xf32>
    %358 = vector.broadcast %148 : vector<1x32xf32> to vector<16x32xf32>
    %359 = arith.addf %357, %358 : vector<16x32xf32>
    %360 = arith.truncf %359 : vector<16x32xf32> to vector<16x32xbf16>
    %c0_171 = arith.constant 0 : index
    %c0_172 = arith.constant 0 : index
    %c0_173 = arith.constant 0 : index
    %361 = vector.load %arg7[%c0_171, %c0_172, %c0_173] : memref<2x32x64xbf16, #tpu.memory_space<vmem>>, vector<1x32x64xbf16>
    %362 = vector.shape_cast %361 : vector<1x32x64xbf16> to vector<32x64xbf16>
    %cst_174 = arith.constant dense<0.000000e+00> : vector<16x64xf32>
    %363 = tpu.matmul %360, %362, %cst_174 {dimension_numbers = #tpu.dot_dimension_numbers<[1], [0], [0], [1], [0, 0, 1, 1], [], []>} : vector<16x32xbf16>, vector<32x64xbf16>, vector<16x64xf32> -> vector<16x64xf32>
    %364 = vector.broadcast %149 : vector<1x64xf32> to vector<16x64xf32>
    %365 = arith.addf %363, %364 : vector<16x64xf32>
    %cst_175 = arith.constant 5.000000e-01 : f32
    %366 = vector.broadcast %cst_175 : f32 to vector<16x64xf32>
    %367 = arith.mulf %366, %365 : vector<16x64xf32>
    %cst_176 = arith.constant 4.471500e-02 : f32
    %368 = vector.broadcast %cst_176 : f32 to vector<16x64xf32>
    %369 = arith.mulf %368, %365 : vector<16x64xf32>
    %370 = arith.mulf %369, %365 : vector<16x64xf32>
    %371 = arith.mulf %370, %365 : vector<16x64xf32>
    %372 = arith.addf %365, %371 : vector<16x64xf32>
    %cst_177 = arith.constant 0.797884583 : f32
    %373 = vector.broadcast %cst_177 : f32 to vector<16x64xf32>
    %374 = arith.mulf %373, %372 : vector<16x64xf32>
    %375 = math.tanh %374 : vector<16x64xf32>
    %cst_178 = arith.constant 1.000000e+00 : f32
    %376 = vector.broadcast %cst_178 : f32 to vector<16x64xf32>
    %377 = arith.addf %376, %375 : vector<16x64xf32>
    %378 = arith.mulf %367, %377 : vector<16x64xf32>
    %379 = arith.truncf %378 : vector<16x64xf32> to vector<16x64xbf16>
    %c0_179 = arith.constant 0 : index
    %c0_180 = arith.constant 0 : index
    %c0_181 = arith.constant 0 : index
    %380 = vector.load %arg8[%c0_179, %c0_180, %c0_181] : memref<2x64x32xbf16, #tpu.memory_space<vmem>>, vector<1x64x32xbf16>
    %381 = vector.shape_cast %380 : vector<1x64x32xbf16> to vector<64x32xbf16>
    %cst_182 = arith.constant dense<0.000000e+00> : vector<16x32xf32>
    %382 = tpu.matmul %379, %381, %cst_182 {dimension_numbers = #tpu.dot_dimension_numbers<[1], [0], [0], [1], [0, 0, 1, 1], [], []>} : vector<16x64xbf16>, vector<64x32xbf16>, vector<16x32xf32> -> vector<16x32xf32>
    %383 = vector.broadcast %150 : vector<1x32xf32> to vector<16x32xf32>
    %384 = arith.addf %382, %383 : vector<16x32xf32>
    %385 = arith.addf %384, %359 : vector<16x32xf32>
    %cst_183 = arith.constant dense<0.000000e+00> : vector<16xf32>
    %386 = vector.multi_reduction <add>, %385, %cst_183 [1] : vector<16x32xf32> to vector<16xf32>
    %387 = vector.shape_cast %386 : vector<16xf32> to vector<16x1xf32>
    %cst_184 = arith.constant 3.200000e+01 : f32
    %388 = vector.broadcast %cst_184 : f32 to vector<16x1xf32>
    %389 = arith.divf %387, %388 : vector<16x1xf32>
    %390 = vector.broadcast %389 : vector<16x1xf32> to vector<16x32xf32>
    %391 = arith.subf %385, %390 : vector<16x32xf32>
    %392 = arith.mulf %391, %391 : vector<16x32xf32>
    %cst_185 = arith.constant dense<0.000000e+00> : vector<16xf32>
    %393 = vector.multi_reduction <add>, %392, %cst_185 [1] : vector<16x32xf32> to vector<16xf32>
    %394 = vector.shape_cast %393 : vector<16xf32> to vector<16x1xf32>
    %cst_186 = arith.constant 3.200000e+01 : f32
    %395 = vector.broadcast %cst_186 : f32 to vector<16x1xf32>
    %396 = arith.divf %394, %395 : vector<16x1xf32>
    %397 = vector.broadcast %389 : vector<16x1xf32> to vector<16x32xf32>
    %398 = arith.subf %385, %397 : vector<16x32xf32>
    %cst_187 = arith.constant 9.99999996E-13 : f32
    %399 = vector.broadcast %cst_187 : f32 to vector<16x1xf32>
    %400 = arith.addf %396, %399 : vector<16x1xf32>
    %401 = math.rsqrt %400 : vector<16x1xf32>
    %402 = vector.broadcast %401 : vector<16x1xf32> to vector<16x32xf32>
    %403 = arith.mulf %398, %402 : vector<16x32xf32>
    %404 = vector.broadcast %151 : vector<1x32xf32> to vector<16x32xf32>
    %405 = arith.mulf %403, %404 : vector<16x32xf32>
    %406 = vector.broadcast %152 : vector<1x32xf32> to vector<16x32xf32>
    %407 = arith.addf %405, %406 : vector<16x32xf32>
    %408 = vector.extract_strided_slice %0 {offsets = [12, 0], sizes = [1, 96], strides = [1, 1]} : vector<20x128xf32> to vector<1x96xf32>
    %409 = vector.extract_strided_slice %0 {offsets = [13, 0], sizes = [1, 32], strides = [1, 1]} : vector<20x128xf32> to vector<1x32xf32>
    %410 = vector.extract_strided_slice %0 {offsets = [14, 0], sizes = [1, 32], strides = [1, 1]} : vector<20x128xf32> to vector<1x32xf32>
    %411 = vector.extract_strided_slice %0 {offsets = [15, 0], sizes = [1, 32], strides = [1, 1]} : vector<20x128xf32> to vector<1x32xf32>
    %412 = vector.extract_strided_slice %0 {offsets = [16, 0], sizes = [1, 64], strides = [1, 1]} : vector<20x128xf32> to vector<1x64xf32>
    %413 = vector.extract_strided_slice %0 {offsets = [17, 0], sizes = [1, 32], strides = [1, 1]} : vector<20x128xf32> to vector<1x32xf32>
    %414 = vector.extract_strided_slice %0 {offsets = [18, 0], sizes = [1, 32], strides = [1, 1]} : vector<20x128xf32> to vector<1x32xf32>
    %415 = vector.extract_strided_slice %0 {offsets = [19, 0], sizes = [1, 32], strides = [1, 1]} : vector<20x128xf32> to vector<1x32xf32>
    %416 = arith.truncf %407 : vector<16x32xf32> to vector<16x32xbf16>
    %c1_188 = arith.constant 1 : index
    %c0_189 = arith.constant 0 : index
    %c0_190 = arith.constant 0 : index
    %417 = vector.load %arg5[%c1_188, %c0_189, %c0_190] : memref<2x32x96xbf16, #tpu.memory_space<vmem>>, vector<1x32x96xbf16>
    %418 = vector.shape_cast %417 : vector<1x32x96xbf16> to vector<32x96xbf16>
    %cst_191 = arith.constant dense<0.000000e+00> : vector<16x96xf32>
    %419 = tpu.matmul %416, %418, %cst_191 {dimension_numbers = #tpu.dot_dimension_numbers<[1], [0], [0], [1], [0, 0, 1, 1], [], []>} : vector<16x32xbf16>, vector<32x96xbf16>, vector<16x96xf32> -> vector<16x96xf32>
    %420 = vector.broadcast %408 : vector<1x96xf32> to vector<16x96xf32>
    %421 = arith.addf %419, %420 : vector<16x96xf32>
    %422 = vector.extract_strided_slice %421 {offsets = [0, 0], sizes = [16, 32], strides = [1, 1]} : vector<16x96xf32> to vector<16x32xf32>
    %423 = vector.extract_strided_slice %421 {offsets = [0, 32], sizes = [16, 32], strides = [1, 1]} : vector<16x96xf32> to vector<16x32xf32>
    %424 = vector.extract_strided_slice %421 {offsets = [0, 64], sizes = [16, 32], strides = [1, 1]} : vector<16x96xf32> to vector<16x32xf32>
    %425 = vector.extract_strided_slice %422 {offsets = [0, 0], sizes = [8, 8], strides = [1, 1]} : vector<16x32xf32> to vector<8x8xf32>
    %426 = arith.truncf %425 : vector<8x8xf32> to vector<8x8xbf16>
    %427 = vector.extract_strided_slice %423 {offsets = [0, 0], sizes = [8, 8], strides = [1, 1]} : vector<16x32xf32> to vector<8x8xf32>
    %428 = arith.truncf %427 : vector<8x8xf32> to vector<8x8xbf16>
    %429 = vector.extract_strided_slice %424 {offsets = [0, 0], sizes = [8, 8], strides = [1, 1]} : vector<16x32xf32> to vector<8x8xf32>
    %430 = arith.truncf %429 : vector<8x8xf32> to vector<8x8xbf16>
    %cst_192 = arith.constant dense<0.000000e+00> : vector<8x8xf32>
    %431 = tpu.matmul %426, %428, %cst_192 {dimension_numbers = #tpu.dot_dimension_numbers<[1], [1], [0], [0], [0, 0, 1, 0], [], []>} : vector<8x8xbf16>, vector<8x8xbf16>, vector<8x8xf32> -> vector<8x8xf32>
    %432 = arith.addf %431, %141 : vector<8x8xf32>
    %cst_193 = arith.constant dense<0xFF800000> : vector<8xf32>
    %433 = vector.multi_reduction <maximumf>, %432, %cst_193 [1] : vector<8x8xf32> to vector<8xf32>
    %434 = vector.shape_cast %433 : vector<8xf32> to vector<8x1xf32>
    %435 = vector.broadcast %434 : vector<8x1xf32> to vector<8x8xf32>
    %436 = arith.subf %432, %435 : vector<8x8xf32>
    %437 = math.exp %436 : vector<8x8xf32>
    %cst_194 = arith.constant dense<0.000000e+00> : vector<8xf32>
    %438 = vector.multi_reduction <add>, %437, %cst_194 [1] : vector<8x8xf32> to vector<8xf32>
    %439 = vector.shape_cast %438 : vector<8xf32> to vector<8x1xf32>
    %440 = tpu.reciprocal %439 {approx = true} : vector<8x1xf32> -> vector<8x1xf32>
    %441 = vector.broadcast %440 : vector<8x1xf32> to vector<8x8xf32>
    %442 = arith.mulf %437, %441 : vector<8x8xf32>
    %443 = arith.truncf %442 : vector<8x8xf32> to vector<8x8xbf16>
    %cst_195 = arith.constant dense<0.000000e+00> : vector<8x8xf32>
    %444 = tpu.matmul %443, %430, %cst_195 {dimension_numbers = #tpu.dot_dimension_numbers<[1], [0], [0], [1], [0, 0, 1, 1], [], []>} : vector<8x8xbf16>, vector<8x8xbf16>, vector<8x8xf32> -> vector<8x8xf32>
    %c0_196 = arith.constant 0 : index
    %c0_197 = arith.constant 0 : index
    %445 = vector.load %arg14[%c0_196, %c0_197] : memref<16x32xf32, #tpu.memory_space<vmem>>, vector<8x8xf32>
    tpu.vector_store %arg14[%c0_196, %c0_197], %444 {strides = array<i32>} : memref<16x32xf32, #tpu.memory_space<vmem>>, vector<8x8xf32>,
    %446 = vector.extract_strided_slice %422 {offsets = [0, 8], sizes = [8, 8], strides = [1, 1]} : vector<16x32xf32> to vector<8x8xf32>
    %447 = arith.truncf %446 : vector<8x8xf32> to vector<8x8xbf16>
    %448 = vector.extract_strided_slice %423 {offsets = [0, 8], sizes = [8, 8], strides = [1, 1]} : vector<16x32xf32> to vector<8x8xf32>
    %449 = arith.truncf %448 : vector<8x8xf32> to vector<8x8xbf16>
    %450 = vector.extract_strided_slice %424 {offsets = [0, 8], sizes = [8, 8], strides = [1, 1]} : vector<16x32xf32> to vector<8x8xf32>
    %451 = arith.truncf %450 : vector<8x8xf32> to vector<8x8xbf16>
    %cst_198 = arith.constant dense<0.000000e+00> : vector<8x8xf32>
    %452 = tpu.matmul %447, %449, %cst_198 {dimension_numbers = #tpu.dot_dimension_numbers<[1], [1], [0], [0], [0, 0, 1, 0], [], []>} : vector<8x8xbf16>, vector<8x8xbf16>, vector<8x8xf32> -> vector<8x8xf32>
    %453 = arith.addf %452, %141 : vector<8x8xf32>
    %cst_199 = arith.constant dense<0xFF800000> : vector<8xf32>
    %454 = vector.multi_reduction <maximumf>, %453, %cst_199 [1] : vector<8x8xf32> to vector<8xf32>
    %455 = vector.shape_cast %454 : vector<8xf32> to vector<8x1xf32>
    %456 = vector.broadcast %455 : vector<8x1xf32> to vector<8x8xf32>
    %457 = arith.subf %453, %456 : vector<8x8xf32>
    %458 = math.exp %457 : vector<8x8xf32>
    %cst_200 = arith.constant dense<0.000000e+00> : vector<8xf32>
    %459 = vector.multi_reduction <add>, %458, %cst_200 [1] : vector<8x8xf32> to vector<8xf32>
    %460 = vector.shape_cast %459 : vector<8xf32> to vector<8x1xf32>
    %461 = tpu.reciprocal %460 {approx = true} : vector<8x1xf32> -> vector<8x1xf32>
    %462 = vector.broadcast %461 : vector<8x1xf32> to vector<8x8xf32>
    %463 = arith.mulf %458, %462 : vector<8x8xf32>
    %464 = arith.truncf %463 : vector<8x8xf32> to vector<8x8xbf16>
    %cst_201 = arith.constant dense<0.000000e+00> : vector<8x8xf32>
    %465 = tpu.matmul %464, %451, %cst_201 {dimension_numbers = #tpu.dot_dimension_numbers<[1], [0], [0], [1], [0, 0, 1, 1], [], []>} : vector<8x8xbf16>, vector<8x8xbf16>, vector<8x8xf32> -> vector<8x8xf32>
    %c0_202 = arith.constant 0 : index
    %c8_203 = arith.constant 8 : index
    %466 = vector.load %arg14[%c0_202, %c8_203] : memref<16x32xf32, #tpu.memory_space<vmem>>, vector<8x8xf32>
    tpu.vector_store %arg14[%c0_202, %c8_203], %465 {strides = array<i32>} : memref<16x32xf32, #tpu.memory_space<vmem>>, vector<8x8xf32>,
    %467 = vector.extract_strided_slice %422 {offsets = [0, 16], sizes = [8, 8], strides = [1, 1]} : vector<16x32xf32> to vector<8x8xf32>
    %468 = arith.truncf %467 : vector<8x8xf32> to vector<8x8xbf16>
    %469 = vector.extract_strided_slice %423 {offsets = [0, 16], sizes = [8, 8], strides = [1, 1]} : vector<16x32xf32> to vector<8x8xf32>
    %470 = arith.truncf %469 : vector<8x8xf32> to vector<8x8xbf16>
    %471 = vector.extract_strided_slice %424 {offsets = [0, 16], sizes = [8, 8], strides = [1, 1]} : vector<16x32xf32> to vector<8x8xf32>
    %472 = arith.truncf %471 : vector<8x8xf32> to vector<8x8xbf16>
    %cst_204 = arith.constant dense<0.000000e+00> : vector<8x8xf32>
    %473 = tpu.matmul %468, %470, %cst_204 {dimension_numbers = #tpu.dot_dimension_numbers<[1], [1], [0], [0], [0, 0, 1, 0], [], []>} : vector<8x8xbf16>, vector<8x8xbf16>, vector<8x8xf32> -> vector<8x8xf32>
    %474 = arith.addf %473, %141 : vector<8x8xf32>
    %cst_205 = arith.constant dense<0xFF800000> : vector<8xf32>
    %475 = vector.multi_reduction <maximumf>, %474, %cst_205 [1] : vector<8x8xf32> to vector<8xf32>
    %476 = vector.shape_cast %475 : vector<8xf32> to vector<8x1xf32>
    %477 = vector.broadcast %476 : vector<8x1xf32> to vector<8x8xf32>
    %478 = arith.subf %474, %477 : vector<8x8xf32>
    %479 = math.exp %478 : vector<8x8xf32>
    %cst_206 = arith.constant dense<0.000000e+00> : vector<8xf32>
    %480 = vector.multi_reduction <add>, %479, %cst_206 [1] : vector<8x8xf32> to vector<8xf32>
    %481 = vector.shape_cast %480 : vector<8xf32> to vector<8x1xf32>
    %482 = tpu.reciprocal %481 {approx = true} : vector<8x1xf32> -> vector<8x1xf32>
    %483 = vector.broadcast %482 : vector<8x1xf32> to vector<8x8xf32>
    %484 = arith.mulf %479, %483 : vector<8x8xf32>
    %485 = arith.truncf %484 : vector<8x8xf32> to vector<8x8xbf16>
    %cst_207 = arith.constant dense<0.000000e+00> : vector<8x8xf32>
    %486 = tpu.matmul %485, %472, %cst_207 {dimension_numbers = #tpu.dot_dimension_numbers<[1], [0], [0], [1], [0, 0, 1, 1], [], []>} : vector<8x8xbf16>, vector<8x8xbf16>, vector<8x8xf32> -> vector<8x8xf32>
    %c0_208 = arith.constant 0 : index
    %c16_209 = arith.constant 16 : index
    %487 = vector.load %arg14[%c0_208, %c16_209] : memref<16x32xf32, #tpu.memory_space<vmem>>, vector<8x8xf32>
    tpu.vector_store %arg14[%c0_208, %c16_209], %486 {strides = array<i32>} : memref<16x32xf32, #tpu.memory_space<vmem>>, vector<8x8xf32>,
    %488 = vector.extract_strided_slice %422 {offsets = [0, 24], sizes = [8, 8], strides = [1, 1]} : vector<16x32xf32> to vector<8x8xf32>
    %489 = arith.truncf %488 : vector<8x8xf32> to vector<8x8xbf16>
    %490 = vector.extract_strided_slice %423 {offsets = [0, 24], sizes = [8, 8], strides = [1, 1]} : vector<16x32xf32> to vector<8x8xf32>
    %491 = arith.truncf %490 : vector<8x8xf32> to vector<8x8xbf16>
    %492 = vector.extract_strided_slice %424 {offsets = [0, 24], sizes = [8, 8], strides = [1, 1]} : vector<16x32xf32> to vector<8x8xf32>
    %493 = arith.truncf %492 : vector<8x8xf32> to vector<8x8xbf16>
    %cst_210 = arith.constant dense<0.000000e+00> : vector<8x8xf32>
    %494 = tpu.matmul %489, %491, %cst_210 {dimension_numbers = #tpu.dot_dimension_numbers<[1], [1], [0], [0], [0, 0, 1, 0], [], []>} : vector<8x8xbf16>, vector<8x8xbf16>, vector<8x8xf32> -> vector<8x8xf32>
    %495 = arith.addf %494, %141 : vector<8x8xf32>
    %cst_211 = arith.constant dense<0xFF800000> : vector<8xf32>
    %496 = vector.multi_reduction <maximumf>, %495, %cst_211 [1] : vector<8x8xf32> to vector<8xf32>
    %497 = vector.shape_cast %496 : vector<8xf32> to vector<8x1xf32>
    %498 = vector.broadcast %497 : vector<8x1xf32> to vector<8x8xf32>
    %499 = arith.subf %495, %498 : vector<8x8xf32>
    %500 = math.exp %499 : vector<8x8xf32>
    %cst_212 = arith.constant dense<0.000000e+00> : vector<8xf32>
    %501 = vector.multi_reduction <add>, %500, %cst_212 [1] : vector<8x8xf32> to vector<8xf32>
    %502 = vector.shape_cast %501 : vector<8xf32> to vector<8x1xf32>
    %503 = tpu.reciprocal %502 {approx = true} : vector<8x1xf32> -> vector<8x1xf32>
    %504 = vector.broadcast %503 : vector<8x1xf32> to vector<8x8xf32>
    %505 = arith.mulf %500, %504 : vector<8x8xf32>
    %506 = arith.truncf %505 : vector<8x8xf32> to vector<8x8xbf16>
    %cst_213 = arith.constant dense<0.000000e+00> : vector<8x8xf32>
    %507 = tpu.matmul %506, %493, %cst_213 {dimension_numbers = #tpu.dot_dimension_numbers<[1], [0], [0], [1], [0, 0, 1, 1], [], []>} : vector<8x8xbf16>, vector<8x8xbf16>, vector<8x8xf32> -> vector<8x8xf32>
    %c0_214 = arith.constant 0 : index
    %c24_215 = arith.constant 24 : index
    %508 = vector.load %arg14[%c0_214, %c24_215] : memref<16x32xf32, #tpu.memory_space<vmem>>, vector<8x8xf32>
    tpu.vector_store %arg14[%c0_214, %c24_215], %507 {strides = array<i32>} : memref<16x32xf32, #tpu.memory_space<vmem>>, vector<8x8xf32>,
    %509 = vector.extract_strided_slice %422 {offsets = [8, 0], sizes = [8, 8], strides = [1, 1]} : vector<16x32xf32> to vector<8x8xf32>
    %510 = arith.truncf %509 : vector<8x8xf32> to vector<8x8xbf16>
    %511 = vector.extract_strided_slice %423 {offsets = [8, 0], sizes = [8, 8], strides = [1, 1]} : vector<16x32xf32> to vector<8x8xf32>
    %512 = arith.truncf %511 : vector<8x8xf32> to vector<8x8xbf16>
    %513 = vector.extract_strided_slice %424 {offsets = [8, 0], sizes = [8, 8], strides = [1, 1]} : vector<16x32xf32> to vector<8x8xf32>
    %514 = arith.truncf %513 : vector<8x8xf32> to vector<8x8xbf16>
    %cst_216 = arith.constant dense<0.000000e+00> : vector<8x8xf32>
    %515 = tpu.matmul %510, %512, %cst_216 {dimension_numbers = #tpu.dot_dimension_numbers<[1], [1], [0], [0], [0, 0, 1, 0], [], []>} : vector<8x8xbf16>, vector<8x8xbf16>, vector<8x8xf32> -> vector<8x8xf32>
    %516 = arith.addf %515, %144 : vector<8x8xf32>
    %cst_217 = arith.constant dense<0xFF800000> : vector<8xf32>
    %517 = vector.multi_reduction <maximumf>, %516, %cst_217 [1] : vector<8x8xf32> to vector<8xf32>
    %518 = vector.shape_cast %517 : vector<8xf32> to vector<8x1xf32>
    %519 = vector.broadcast %518 : vector<8x1xf32> to vector<8x8xf32>
    %520 = arith.subf %516, %519 : vector<8x8xf32>
    %521 = math.exp %520 : vector<8x8xf32>
    %cst_218 = arith.constant dense<0.000000e+00> : vector<8xf32>
    %522 = vector.multi_reduction <add>, %521, %cst_218 [1] : vector<8x8xf32> to vector<8xf32>
    %523 = vector.shape_cast %522 : vector<8xf32> to vector<8x1xf32>
    %524 = tpu.reciprocal %523 {approx = true} : vector<8x1xf32> -> vector<8x1xf32>
    %525 = vector.broadcast %524 : vector<8x1xf32> to vector<8x8xf32>
    %526 = arith.mulf %521, %525 : vector<8x8xf32>
    %527 = arith.truncf %526 : vector<8x8xf32> to vector<8x8xbf16>
    %cst_219 = arith.constant dense<0.000000e+00> : vector<8x8xf32>
    %528 = tpu.matmul %527, %514, %cst_219 {dimension_numbers = #tpu.dot_dimension_numbers<[1], [0], [0], [1], [0, 0, 1, 1], [], []>} : vector<8x8xbf16>, vector<8x8xbf16>, vector<8x8xf32> -> vector<8x8xf32>
    %c8_220 = arith.constant 8 : index
    %c0_221 = arith.constant 0 : index
    %529 = vector.load %arg14[%c8_220, %c0_221] : memref<16x32xf32, #tpu.memory_space<vmem>>, vector<8x8xf32>
    tpu.vector_store %arg14[%c8_220, %c0_221], %528 {strides = array<i32>} : memref<16x32xf32, #tpu.memory_space<vmem>>, vector<8x8xf32>,
    %530 = vector.extract_strided_slice %422 {offsets = [8, 8], sizes = [8, 8], strides = [1, 1]} : vector<16x32xf32> to vector<8x8xf32>
    %531 = arith.truncf %530 : vector<8x8xf32> to vector<8x8xbf16>
    %532 = vector.extract_strided_slice %423 {offsets = [8, 8], sizes = [8, 8], strides = [1, 1]} : vector<16x32xf32> to vector<8x8xf32>
    %533 = arith.truncf %532 : vector<8x8xf32> to vector<8x8xbf16>
    %534 = vector.extract_strided_slice %424 {offsets = [8, 8], sizes = [8, 8], strides = [1, 1]} : vector<16x32xf32> to vector<8x8xf32>
    %535 = arith.truncf %534 : vector<8x8xf32> to vector<8x8xbf16>
    %cst_222 = arith.constant dense<0.000000e+00> : vector<8x8xf32>
    %536 = tpu.matmul %531, %533, %cst_222 {dimension_numbers = #tpu.dot_dimension_numbers<[1], [1], [0], [0], [0, 0, 1, 0], [], []>} : vector<8x8xbf16>, vector<8x8xbf16>, vector<8x8xf32> -> vector<8x8xf32>
    %537 = arith.addf %536, %144 : vector<8x8xf32>
    %cst_223 = arith.constant dense<0xFF800000> : vector<8xf32>
    %538 = vector.multi_reduction <maximumf>, %537, %cst_223 [1] : vector<8x8xf32> to vector<8xf32>
    %539 = vector.shape_cast %538 : vector<8xf32> to vector<8x1xf32>
    %540 = vector.broadcast %539 : vector<8x1xf32> to vector<8x8xf32>
    %541 = arith.subf %537, %540 : vector<8x8xf32>
    %542 = math.exp %541 : vector<8x8xf32>
    %cst_224 = arith.constant dense<0.000000e+00> : vector<8xf32>
    %543 = vector.multi_reduction <add>, %542, %cst_224 [1] : vector<8x8xf32> to vector<8xf32>
    %544 = vector.shape_cast %543 : vector<8xf32> to vector<8x1xf32>
    %545 = tpu.reciprocal %544 {approx = true} : vector<8x1xf32> -> vector<8x1xf32>
    %546 = vector.broadcast %545 : vector<8x1xf32> to vector<8x8xf32>
    %547 = arith.mulf %542, %546 : vector<8x8xf32>
    %548 = arith.truncf %547 : vector<8x8xf32> to vector<8x8xbf16>
    %cst_225 = arith.constant dense<0.000000e+00> : vector<8x8xf32>
    %549 = tpu.matmul %548, %535, %cst_225 {dimension_numbers = #tpu.dot_dimension_numbers<[1], [0], [0], [1], [0, 0, 1, 1], [], []>} : vector<8x8xbf16>, vector<8x8xbf16>, vector<8x8xf32> -> vector<8x8xf32>
    %c8_226 = arith.constant 8 : index
    %c8_227 = arith.constant 8 : index
    %550 = vector.load %arg14[%c8_226, %c8_227] : memref<16x32xf32, #tpu.memory_space<vmem>>, vector<8x8xf32>
    tpu.vector_store %arg14[%c8_226, %c8_227], %549 {strides = array<i32>} : memref<16x32xf32, #tpu.memory_space<vmem>>, vector<8x8xf32>,
    %551 = vector.extract_strided_slice %422 {offsets = [8, 16], sizes = [8, 8], strides = [1, 1]} : vector<16x32xf32> to vector<8x8xf32>
    %552 = arith.truncf %551 : vector<8x8xf32> to vector<8x8xbf16>
    %553 = vector.extract_strided_slice %423 {offsets = [8, 16], sizes = [8, 8], strides = [1, 1]} : vector<16x32xf32> to vector<8x8xf32>
    %554 = arith.truncf %553 : vector<8x8xf32> to vector<8x8xbf16>
    %555 = vector.extract_strided_slice %424 {offsets = [8, 16], sizes = [8, 8], strides = [1, 1]} : vector<16x32xf32> to vector<8x8xf32>
    %556 = arith.truncf %555 : vector<8x8xf32> to vector<8x8xbf16>
    %cst_228 = arith.constant dense<0.000000e+00> : vector<8x8xf32>
    %557 = tpu.matmul %552, %554, %cst_228 {dimension_numbers = #tpu.dot_dimension_numbers<[1], [1], [0], [0], [0, 0, 1, 0], [], []>} : vector<8x8xbf16>, vector<8x8xbf16>, vector<8x8xf32> -> vector<8x8xf32>
    %558 = arith.addf %557, %144 : vector<8x8xf32>
    %cst_229 = arith.constant dense<0xFF800000> : vector<8xf32>
    %559 = vector.multi_reduction <maximumf>, %558, %cst_229 [1] : vector<8x8xf32> to vector<8xf32>
    %560 = vector.shape_cast %559 : vector<8xf32> to vector<8x1xf32>
    %561 = vector.broadcast %560 : vector<8x1xf32> to vector<8x8xf32>
    %562 = arith.subf %558, %561 : vector<8x8xf32>
    %563 = math.exp %562 : vector<8x8xf32>
    %cst_230 = arith.constant dense<0.000000e+00> : vector<8xf32>
    %564 = vector.multi_reduction <add>, %563, %cst_230 [1] : vector<8x8xf32> to vector<8xf32>
    %565 = vector.shape_cast %564 : vector<8xf32> to vector<8x1xf32>
    %566 = tpu.reciprocal %565 {approx = true} : vector<8x1xf32> -> vector<8x1xf32>
    %567 = vector.broadcast %566 : vector<8x1xf32> to vector<8x8xf32>
    %568 = arith.mulf %563, %567 : vector<8x8xf32>
    %569 = arith.truncf %568 : vector<8x8xf32> to vector<8x8xbf16>
    %cst_231 = arith.constant dense<0.000000e+00> : vector<8x8xf32>
    %570 = tpu.matmul %569, %556, %cst_231 {dimension_numbers = #tpu.dot_dimension_numbers<[1], [0], [0], [1], [0, 0, 1, 1], [], []>} : vector<8x8xbf16>, vector<8x8xbf16>, vector<8x8xf32> -> vector<8x8xf32>
    %c8_232 = arith.constant 8 : index
    %c16_233 = arith.constant 16 : index
    %571 = vector.load %arg14[%c8_232, %c16_233] : memref<16x32xf32, #tpu.memory_space<vmem>>, vector<8x8xf32>
    tpu.vector_store %arg14[%c8_232, %c16_233], %570 {strides = array<i32>} : memref<16x32xf32, #tpu.memory_space<vmem>>, vector<8x8xf32>,
    %572 = vector.extract_strided_slice %422 {offsets = [8, 24], sizes = [8, 8], strides = [1, 1]} : vector<16x32xf32> to vector<8x8xf32>
    %573 = arith.truncf %572 : vector<8x8xf32> to vector<8x8xbf16>
    %574 = vector.extract_strided_slice %423 {offsets = [8, 24], sizes = [8, 8], strides = [1, 1]} : vector<16x32xf32> to vector<8x8xf32>
    %575 = arith.truncf %574 : vector<8x8xf32> to vector<8x8xbf16>
    %576 = vector.extract_strided_slice %424 {offsets = [8, 24], sizes = [8, 8], strides = [1, 1]} : vector<16x32xf32> to vector<8x8xf32>
    %577 = arith.truncf %576 : vector<8x8xf32> to vector<8x8xbf16>
    %cst_234 = arith.constant dense<0.000000e+00> : vector<8x8xf32>
    %578 = tpu.matmul %573, %575, %cst_234 {dimension_numbers = #tpu.dot_dimension_numbers<[1], [1], [0], [0], [0, 0, 1, 0], [], []>} : vector<8x8xbf16>, vector<8x8xbf16>, vector<8x8xf32> -> vector<8x8xf32>
    %579 = arith.addf %578, %144 : vector<8x8xf32>
    %cst_235 = arith.constant dense<0xFF800000> : vector<8xf32>
    %580 = vector.multi_reduction <maximumf>, %579, %cst_235 [1] : vector<8x8xf32> to vector<8xf32>
    %581 = vector.shape_cast %580 : vector<8xf32> to vector<8x1xf32>
    %582 = vector.broadcast %581 : vector<8x1xf32> to vector<8x8xf32>
    %583 = arith.subf %579, %582 : vector<8x8xf32>
    %584 = math.exp %583 : vector<8x8xf32>
    %cst_236 = arith.constant dense<0.000000e+00> : vector<8xf32>
    %585 = vector.multi_reduction <add>, %584, %cst_236 [1] : vector<8x8xf32> to vector<8xf32>
    %586 = vector.shape_cast %585 : vector<8xf32> to vector<8x1xf32>
    %587 = tpu.reciprocal %586 {approx = true} : vector<8x1xf32> -> vector<8x1xf32>
    %588 = vector.broadcast %587 : vector<8x1xf32> to vector<8x8xf32>
    %589 = arith.mulf %584, %588 : vector<8x8xf32>
    %590 = arith.truncf %589 : vector<8x8xf32> to vector<8x8xbf16>
    %cst_237 = arith.constant dense<0.000000e+00> : vector<8x8xf32>
    %591 = tpu.matmul %590, %577, %cst_237 {dimension_numbers = #tpu.dot_dimension_numbers<[1], [0], [0], [1], [0, 0, 1, 1], [], []>} : vector<8x8xbf16>, vector<8x8xbf16>, vector<8x8xf32> -> vector<8x8xf32>
    %c8_238 = arith.constant 8 : index
    %c24_239 = arith.constant 24 : index
    %592 = vector.load %arg14[%c8_238, %c24_239] : memref<16x32xf32, #tpu.memory_space<vmem>>, vector<8x8xf32>
    tpu.vector_store %arg14[%c8_238, %c24_239], %591 {strides = array<i32>} : memref<16x32xf32, #tpu.memory_space<vmem>>, vector<8x8xf32>,
    %c0_240 = arith.constant 0 : index
    %c0_241 = arith.constant 0 : index
    %593 = vector.load %arg14[%c0_240, %c0_241] : memref<16x32xf32, #tpu.memory_space<vmem>>, vector<16x32xf32>
    %594 = arith.truncf %593 : vector<16x32xf32> to vector<16x32xbf16>
    %c1_242 = arith.constant 1 : index
    %c0_243 = arith.constant 0 : index
    %c0_244 = arith.constant 0 : index
    %595 = vector.load %arg6[%c1_242, %c0_243, %c0_244] : memref<2x32x32xbf16, #tpu.memory_space<vmem>>, vector<1x32x32xbf16>
    %596 = vector.shape_cast %595 : vector<1x32x32xbf16> to vector<32x32xbf16>
    %cst_245 = arith.constant dense<0.000000e+00> : vector<16x32xf32>
    %597 = tpu.matmul %594, %596, %cst_245 {dimension_numbers = #tpu.dot_dimension_numbers<[1], [0], [0], [1], [0, 0, 1, 1], [], []>} : vector<16x32xbf16>, vector<32x32xbf16>, vector<16x32xf32> -> vector<16x32xf32>
    %598 = vector.broadcast %409 : vector<1x32xf32> to vector<16x32xf32>
    %599 = arith.addf %597, %598 : vector<16x32xf32>
    %600 = arith.addf %599, %407 : vector<16x32xf32>
    %cst_246 = arith.constant dense<0.000000e+00> : vector<16xf32>
    %601 = vector.multi_reduction <add>, %600, %cst_246 [1] : vector<16x32xf32> to vector<16xf32>
    %602 = vector.shape_cast %601 : vector<16xf32> to vector<16x1xf32>
    %cst_247 = arith.constant 3.200000e+01 : f32
    %603 = vector.broadcast %cst_247 : f32 to vector<16x1xf32>
    %604 = arith.divf %602, %603 : vector<16x1xf32>
    %605 = vector.broadcast %604 : vector<16x1xf32> to vector<16x32xf32>
    %606 = arith.subf %600, %605 : vector<16x32xf32>
    %607 = arith.mulf %606, %606 : vector<16x32xf32>
    %cst_248 = arith.constant dense<0.000000e+00> : vector<16xf32>
    %608 = vector.multi_reduction <add>, %607, %cst_248 [1] : vector<16x32xf32> to vector<16xf32>
    %609 = vector.shape_cast %608 : vector<16xf32> to vector<16x1xf32>
    %cst_249 = arith.constant 3.200000e+01 : f32
    %610 = vector.broadcast %cst_249 : f32 to vector<16x1xf32>
    %611 = arith.divf %609, %610 : vector<16x1xf32>
    %612 = vector.broadcast %604 : vector<16x1xf32> to vector<16x32xf32>
    %613 = arith.subf %600, %612 : vector<16x32xf32>
    %cst_250 = arith.constant 9.99999996E-13 : f32
    %614 = vector.broadcast %cst_250 : f32 to vector<16x1xf32>
    %615 = arith.addf %611, %614 : vector<16x1xf32>
    %616 = math.rsqrt %615 : vector<16x1xf32>
    %617 = vector.broadcast %616 : vector<16x1xf32> to vector<16x32xf32>
    %618 = arith.mulf %613, %617 : vector<16x32xf32>
    %619 = vector.broadcast %410 : vector<1x32xf32> to vector<16x32xf32>
    %620 = arith.mulf %618, %619 : vector<16x32xf32>
    %621 = vector.broadcast %411 : vector<1x32xf32> to vector<16x32xf32>
    %622 = arith.addf %620, %621 : vector<16x32xf32>
    %623 = arith.truncf %622 : vector<16x32xf32> to vector<16x32xbf16>
    %c1_251 = arith.constant 1 : index
    %c0_252 = arith.constant 0 : index
    %c0_253 = arith.constant 0 : index
    %624 = vector.load %arg7[%c1_251, %c0_252, %c0_253] : memref<2x32x64xbf16, #tpu.memory_space<vmem>>, vector<1x32x64xbf16>
    %625 = vector.shape_cast %624 : vector<1x32x64xbf16> to vector<32x64xbf16>
    %cst_254 = arith.constant dense<0.000000e+00> : vector<16x64xf32>
    %626 = tpu.matmul %623, %625, %cst_254 {dimension_numbers = #tpu.dot_dimension_numbers<[1], [0], [0], [1], [0, 0, 1, 1], [], []>} : vector<16x32xbf16>, vector<32x64xbf16>, vector<16x64xf32> -> vector<16x64xf32>
    %627 = vector.broadcast %412 : vector<1x64xf32> to vector<16x64xf32>
    %628 = arith.addf %626, %627 : vector<16x64xf32>
    %cst_255 = arith.constant 5.000000e-01 : f32
    %629 = vector.broadcast %cst_255 : f32 to vector<16x64xf32>
    %630 = arith.mulf %629, %628 : vector<16x64xf32>
    %cst_256 = arith.constant 4.471500e-02 : f32
    %631 = vector.broadcast %cst_256 : f32 to vector<16x64xf32>
    %632 = arith.mulf %631, %628 : vector<16x64xf32>
    %633 = arith.mulf %632, %628 : vector<16x64xf32>
    %634 = arith.mulf %633, %628 : vector<16x64xf32>
    %635 = arith.addf %628, %634 : vector<16x64xf32>
    %cst_257 = arith.constant 0.797884583 : f32
    %636 = vector.broadcast %cst_257 : f32 to vector<16x64xf32>
    %637 = arith.mulf %636, %635 : vector<16x64xf32>
    %638 = math.tanh %637 : vector<16x64xf32>
    %cst_258 = arith.constant 1.000000e+00 : f32
    %639 = vector.broadcast %cst_258 : f32 to vector<16x64xf32>
    %640 = arith.addf %639, %638 : vector<16x64xf32>
    %641 = arith.mulf %630, %640 : vector<16x64xf32>
    %642 = arith.truncf %641 : vector<16x64xf32> to vector<16x64xbf16>
    %c1_259 = arith.constant 1 : index
    %c0_260 = arith.constant 0 : index
    %c0_261 = arith.constant 0 : index
    %643 = vector.load %arg8[%c1_259, %c0_260, %c0_261] : memref<2x64x32xbf16, #tpu.memory_space<vmem>>, vector<1x64x32xbf16>
    %644 = vector.shape_cast %643 : vector<1x64x32xbf16> to vector<64x32xbf16>
    %cst_262 = arith.constant dense<0.000000e+00> : vector<16x32xf32>
    %645 = tpu.matmul %642, %644, %cst_262 {dimension_numbers = #tpu.dot_dimension_numbers<[1], [0], [0], [1], [0, 0, 1, 1], [], []>} : vector<16x64xbf16>, vector<64x32xbf16>, vector<16x32xf32> -> vector<16x32xf32>
    %646 = vector.broadcast %413 : vector<1x32xf32> to vector<16x32xf32>
    %647 = arith.addf %645, %646 : vector<16x32xf32>
    %648 = arith.addf %647, %622 : vector<16x32xf32>
    %cst_263 = arith.constant dense<0.000000e+00> : vector<16xf32>
    %649 = vector.multi_reduction <add>, %648, %cst_263 [1] : vector<16x32xf32> to vector<16xf32>
    %650 = vector.shape_cast %649 : vector<16xf32> to vector<16x1xf32>
    %cst_264 = arith.constant 3.200000e+01 : f32
    %651 = vector.broadcast %cst_264 : f32 to vector<16x1xf32>
    %652 = arith.divf %650, %651 : vector<16x1xf32>
    %653 = vector.broadcast %652 : vector<16x1xf32> to vector<16x32xf32>
    %654 = arith.subf %648, %653 : vector<16x32xf32>
    %655 = arith.mulf %654, %654 : vector<16x32xf32>
    %cst_265 = arith.constant dense<0.000000e+00> : vector<16xf32>
    %656 = vector.multi_reduction <add>, %655, %cst_265 [1] : vector<16x32xf32> to vector<16xf32>
    %657 = vector.shape_cast %656 : vector<16xf32> to vector<16x1xf32>
    %cst_266 = arith.constant 3.200000e+01 : f32
    %658 = vector.broadcast %cst_266 : f32 to vector<16x1xf32>
    %659 = arith.divf %657, %658 : vector<16x1xf32>
    %660 = vector.broadcast %652 : vector<16x1xf32> to vector<16x32xf32>
    %661 = arith.subf %648, %660 : vector<16x32xf32>
    %cst_267 = arith.constant 9.99999996E-13 : f32
    %662 = vector.broadcast %cst_267 : f32 to vector<16x1xf32>
    %663 = arith.addf %659, %662 : vector<16x1xf32>
    %664 = math.rsqrt %663 : vector<16x1xf32>
    %665 = vector.broadcast %664 : vector<16x1xf32> to vector<16x32xf32>
    %666 = arith.mulf %661, %665 : vector<16x32xf32>
    %667 = vector.broadcast %414 : vector<1x32xf32> to vector<16x32xf32>
    %668 = arith.mulf %666, %667 : vector<16x32xf32>
    %669 = vector.broadcast %415 : vector<1x32xf32> to vector<16x32xf32>
    %670 = arith.addf %668, %669 : vector<16x32xf32>
    %671 = arith.truncf %670 : vector<16x32xf32> to vector<16x32xbf16>
    %c0_268 = arith.constant 0 : index
    %c0_269 = arith.constant 0 : index
    %672 = vector.load %arg9[%c0_268, %c0_269] : memref<32x32xbf16, #tpu.memory_space<vmem>>, vector<32x32xbf16>
    %cst_270 = arith.constant dense<0.000000e+00> : vector<16x32xf32>
    %673 = tpu.matmul %671, %672, %cst_270 {dimension_numbers = #tpu.dot_dimension_numbers<[1], [0], [0], [1], [0, 0, 1, 1], [], []>} : vector<16x32xbf16>, vector<32x32xbf16>, vector<16x32xf32> -> vector<16x32xf32>
    %674 = vector.extract_strided_slice %0 {offsets = [2, 0], sizes = [1, 32], strides = [1, 1]} : vector<20x128xf32> to vector<1x32xf32>
    %675 = vector.broadcast %674 : vector<1x32xf32> to vector<16x32xf32>
    %676 = arith.addf %673, %675 : vector<16x32xf32>
    %677 = math.tanh %676 : vector<16x32xf32>
    %678 = arith.truncf %677 : vector<16x32xf32> to vector<16x32xbf16>
    %c0_271 = arith.constant 0 : index
    %c0_272 = arith.constant 0 : index
    %679 = vector.load %arg10[%c0_271, %c0_272] : memref<32x128xbf16, #tpu.memory_space<vmem>>, vector<32x128xbf16>
    %cst_273 = arith.constant dense<0.000000e+00> : vector<16x128xf32>
    %680 = tpu.matmul %678, %679, %cst_273 {dimension_numbers = #tpu.dot_dimension_numbers<[1], [0], [0], [1], [0, 0, 1, 1], [], []>} : vector<16x32xbf16>, vector<32x128xbf16>, vector<16x128xf32> -> vector<16x128xf32>
    %681 = vector.extract_strided_slice %0 {offsets = [3, 0], sizes = [1, 128], strides = [1, 1]} : vector<20x128xf32> to vector<1x128xf32>
    %682 = vector.broadcast %681 : vector<1x128xf32> to vector<16x128xf32>
    %683 = arith.addf %680, %682 : vector<16x128xf32>
    %c0_274 = arith.constant 0 : index
    %c0_275 = arith.constant 0 : index
    %684 = vector.load %arg12[%c0_274, %c0_275] : memref<16x128xf32, #tpu.memory_space<vmem>>, vector<16x128xf32>
    tpu.vector_store %arg12[%c0_274, %c0_275], %683 {strides = array<i32>} : memref<16x128xf32, #tpu.memory_space<vmem>>, vector<16x128xf32>,
    return
  }
}

</mosaic_0001>

<llo_original>
// kernel: sentiment_classifier_forward.1
$region0: #{sentiment_classifier_forward.1}
  #allocation0 [shape = 'u32[]', space=smem, size = 0x4, offset = 0x4, fixed_abs, tag = 'smem constant byte address 0x4 - core index']
  #allocation1 [shape = 'u32[144,128]{1,0:T(1,128)}', space=vmem, size = 0x12000, scoped, tag = 'internal scratch']
  #allocation2 [shape = 'f32[16,32]{1,0:T(8,128)}', space=vmem, size = 0x2000, scoped, tag = 'scratch operand']
  #allocation3 [shape = 'f32[16,32]{1,0:T(8,128)}', space=vmem, size = 0x2000, scoped, tag = 'scratch operand']
  %s0 = inlined_call_operand.vmem [shape: s32[2,8], index: 0, kind: input, shape index: {}]
  %s1 = inlined_call_operand.vmem [shape: f32[2,8], index: 1, kind: input, shape index: {}]
  %s2 = inlined_call_operand.vmem [shape: f32[100,32], index: 2, kind: input, shape index: {}]
  %s3 = inlined_call_operand.vmem [shape: f32[16,32], index: 3, kind: input, shape index: {}]
  %s4 = inlined_call_operand.vmem [shape: f32[2,32], index: 4, kind: input, shape index: {}]
  %s5 = inlined_call_operand.vmem [shape: bf16[2,32,96], index: 5, kind: input, shape index: {}]
  %s6 = inlined_call_operand.vmem [shape: bf16[2,32,32], index: 6, kind: input, shape index: {}]
  %s7 = inlined_call_operand.vmem [shape: bf16[2,32,64], index: 7, kind: input, shape index: {}]
  %s8 = inlined_call_operand.vmem [shape: bf16[2,64,32], index: 8, kind: input, shape index: {}]
  %s9 = inlined_call_operand.vmem [shape: bf16[32,32], index: 9, kind: input, shape index: {}]
  %s10 = inlined_call_operand.vmem [shape: bf16[32,128], index: 10, kind: input, shape index: {}]
  %s11 = inlined_call_operand.vmem [shape: f32[20,128], index: 11, kind: input, shape index: {}]
  %s12 = inlined_call_operand.vmem [shape: f32[16,128], index: 12, kind: output, shape index: {}]
  %s13 = sld [smem:[#allocation0]]
  $region62: #{sentiment_classifier_forward.1} parent=0
    _
  %s15 = ssub.s32 1, %s13
  %s16 = scalar_select 0, %s15, %s13
  $region1: #{sentiment_classifier_forward.1} parent=0
    #allocation4 [shape = 'u8[1024]{0}', space=smem, size = 0x400, scoped, tag = 'input window, operand 0, single buffered']
    #allocation5 [shape = 's32[1]{0}', space=sflag, size = 0x4, scoped, tag = 'scoped memory for sentiment_classifier_forward.1']
    %17 = vsyncpa [#allocation5], 0
    // Predicated region
    $region2: #{sentiment_classifier_forward.1} parent=1 // pred_check
      _
    $region3: #{sentiment_classifier_forward.1} parent=1 // pred_check_branch
      %19 = sbr.rel (0) target = $region5
    $region4: #{sentiment_classifier_forward.1} parent=1 // pred_region
      %s21 = ssub.s32 32, 32
      %22 = vsyncadd [#allocation5], %s21
      %s24 = sshll.u32 %s0, 4
      %s25 = int_to_ptr.vmem [resolvable:$true] %s24
      %27 = dma.vmem_to_smem %s25, 32, [#allocation4], [#allocation5]
    $region5: #{sentiment_classifier_forward.1} parent=1 // pred_fallthru
      _
    // Predicated region
    $region6: #{sentiment_classifier_forward.1} parent=1 // pred_check
      _
    $region7: #{sentiment_classifier_forward.1} parent=1 // pred_check_branch
      %29 = sbr.rel (0) target = $region9
    $region8: #{sentiment_classifier_forward.1} parent=1 // pred_region
      _
    $region9: #{sentiment_classifier_forward.1} parent=1 // pred_fallthru
      _
    // Predicated region
    $region10: #{sentiment_classifier_forward.1} parent=1 // pred_check
      _
    $region11: #{sentiment_classifier_forward.1} parent=1 // pred_check_branch
      %31 = sbr.rel (0) target = $region13
    $region12: #{sentiment_classifier_forward.1} parent=1 // pred_region
      _
    $region13: #{sentiment_classifier_forward.1} parent=1 // pred_fallthru
      _
    // Predicated region
    $region14: #{sentiment_classifier_forward.1} parent=1 // pred_check
      _
    $region15: #{sentiment_classifier_forward.1} parent=1 // pred_check_branch
      %33 = sbr.rel (0) target = $region17
    $region16: #{sentiment_classifier_forward.1} parent=1 // pred_region
      _
    $region17: #{sentiment_classifier_forward.1} parent=1 // pred_fallthru
      _
    // Predicated region
    $region18: #{sentiment_classifier_forward.1} parent=1 // pred_check
      _
    $region19: #{sentiment_classifier_forward.1} parent=1 // pred_check_branch
      %35 = sbr.rel (0) target = $region21
    $region20: #{sentiment_classifier_forward.1} parent=1 // pred_region
      _
    $region21: #{sentiment_classifier_forward.1} parent=1 // pred_fallthru
      _
    // Predicated region
    $region22: #{sentiment_classifier_forward.1} parent=1 // pred_check
      _
    $region23: #{sentiment_classifier_forward.1} parent=1 // pred_check_branch
      %37 = sbr.rel (0) target = $region25
    $region24: #{sentiment_classifier_forward.1} parent=1 // pred_region
      _
    $region25: #{sentiment_classifier_forward.1} parent=1 // pred_fallthru
      _
    // Predicated region
    $region26: #{sentiment_classifier_forward.1} parent=1 // pred_check
      _
    $region27: #{sentiment_classifier_forward.1} parent=1 // pred_check_branch
      %39 = sbr.rel (0) target = $region29
    $region28: #{sentiment_classifier_forward.1} parent=1 // pred_region
      _
    $region29: #{sentiment_classifier_forward.1} parent=1 // pred_fallthru
      _
    // Predicated region
    $region30: #{sentiment_classifier_forward.1} parent=1 // pred_check
      _
    $region31: #{sentiment_classifier_forward.1} parent=1 // pred_check_branch
      %41 = sbr.rel (0) target = $region33
    $region32: #{sentiment_classifier_forward.1} parent=1 // pred_region
      _
    $region33: #{sentiment_classifier_forward.1} parent=1 // pred_fallthru
      _
    // Predicated region
    $region34: #{sentiment_classifier_forward.1} parent=1 // pred_check
      _
    $region35: #{sentiment_classifier_forward.1} parent=1 // pred_check_branch
      %43 = sbr.rel (0) target = $region37
    $region36: #{sentiment_classifier_forward.1} parent=1 // pred_region
      _
    $region37: #{sentiment_classifier_forward.1} parent=1 // pred_fallthru
      _
    // Predicated region
    $region38: #{sentiment_classifier_forward.1} parent=1 // pred_check
      _
    $region39: #{sentiment_classifier_forward.1} parent=1 // pred_check_branch
      %45 = sbr.rel (0) target = $region41
    $region40: #{sentiment_classifier_forward.1} parent=1 // pred_region
      _
    $region41: #{sentiment_classifier_forward.1} parent=1 // pred_fallthru
      _
    // Predicated region
    $region42: #{sentiment_classifier_forward.1} parent=1 // pred_check
      _
    $region43: #{sentiment_classifier_forward.1} parent=1 // pred_check_branch
      %47 = sbr.rel (0) target = $region45
    $region44: #{sentiment_classifier_forward.1} parent=1 // pred_region
      _
    $region45: #{sentiment_classifier_forward.1} parent=1 // pred_fallthru
      _
    // Predicated region
    $region46: #{sentiment_classifier_forward.1} parent=1 // pred_check
      _
    $region47: #{sentiment_classifier_forward.1} parent=1 // pred_check_branch
      %49 = sbr.rel (0) target = $region49
    $region48: #{sentiment_classifier_forward.1} parent=1 // pred_region
      _
    $region49: #{sentiment_classifier_forward.1} parent=1 // pred_fallthru
      _
    // Predicated region
    $region50: #{sentiment_classifier_forward.1} parent=1 // pred_check
      _
    $region51: #{sentiment_classifier_forward.1} parent=1 // pred_check_branch
      %51 = sbr.rel (0) target = $region53
    $region52: #{sentiment_classifier_forward.1} parent=1 // pred_region
      %52 = dma.done [#allocation5], 32
    $region53: #{sentiment_classifier_forward.1} parent=1 // pred_fallthru
      _
    %53 = sfence
    %v55 = vld [vmem:[%s11] sm:$0xff]
    %v56 = vld [vmem:[%s11 + $0x8] sm:$0xff]
    %v57 = vld [vmem:[%s11 + $0x10] sm:$0xf]
    %v58 = vld [vmem:[%s4] sm:$0x1]
    %s59 = sld [smem:[#allocation4]]
    %s60 = scalar_lea.vmem %s2, %s59
    %v61 = vld [vmem:[%s60] sm:$0x1]
    %v62 = vld [vmem:[%s3] sm:$0x1]
    %v63 = vadd.f32 %v61, %v62
    %v64 = vadd.f32 %v63, %v58
    %vm65 = vcmask 253952
    %66 = vst.msk [vmem:[#allocation2] sm:$0x1] %vm65, %v64
    %s67 = sld [smem:[#allocation4 + $0x1]]
    %s68 = scalar_lea.vmem %s2, %s67
    %v69 = vld [vmem:[%s68] sm:$0x1]
    %v70 = vld [vmem:[%s3 + $0x1] sm:$0x1]
    %v71 = vadd.f32 %v69, %v70
    %v72 = vadd.f32 %v71, %v58
    %73 = vst.msk [vmem:[#allocation2 + $0x1] sm:$0x1] %vm65, %v72
    %s74 = sld [smem:[#allocation4 + $0x2]]
    %s75 = scalar_lea.vmem %s2, %s74
    %v76 = vld [vmem:[%s75] sm:$0x1]
    %v77 = vld [vmem:[%s3 + $0x2] sm:$0x1]
    %v78 = vadd.f32 %v76, %v77
    %v79 = vadd.f32 %v78, %v58
    %80 = vst.msk [vmem:[#allocation2 + $0x2] sm:$0x1] %vm65, %v79
    %s81 = sld [smem:[#allocation4 + $0x3]]
    %s82 = scalar_lea.vmem %s2, %s81
    %v83 = vld [vmem:[%s82] sm:$0x1]
    %v84 = vld [vmem:[%s3 + $0x3] sm:$0x1]
    %v85 = vadd.f32 %v83, %v84
    %v86 = vadd.f32 %v85, %v58
    %87 = vst.msk [vmem:[#allocation2 + $0x3] sm:$0x1] %vm65, %v86
    %s88 = sld [smem:[#allocation4 + $0x4]]
    %s89 = scalar_lea.vmem %s2, %s88
    %v90 = vld [vmem:[%s89] sm:$0x1]
    %v91 = vld [vmem:[%s3 + $0x4] sm:$0x1]
    %v92 = vadd.f32 %v90, %v91
    %v93 = vadd.f32 %v92, %v58
    %94 = vst.msk [vmem:[#allocation2 + $0x4] sm:$0x1] %vm65, %v93
    %s95 = sld [smem:[#allocation4 + $0x5]]
    %s96 = scalar_lea.vmem %s2, %s95
    %v97 = vld [vmem:[%s96] sm:$0x1]
    %v98 = vld [vmem:[%s3 + $0x5] sm:$0x1]
    %v99 = vadd.f32 %v97, %v98
    %v100 = vadd.f32 %v99, %v58
    %101 = vst.msk [vmem:[#allocation2 + $0x5] sm:$0x1] %vm65, %v100
    %s102 = sld [smem:[#allocation4 + $0x6]]
    %s103 = scalar_lea.vmem %s2, %s102
    %v104 = vld [vmem:[%s103] sm:$0x1]
    %v105 = vld [vmem:[%s3 + $0x6] sm:$0x1]
    %v106 = vadd.f32 %v104, %v105
    %v107 = vadd.f32 %v106, %v58
    %108 = vst.msk [vmem:[#allocation2 + $0x6] sm:$0x1] %vm65, %v107
    %s109 = sld [smem:[#allocation4 + $0x7]]
    %s110 = scalar_lea.vmem %s2, %s109
    %v111 = vld [vmem:[%s110] sm:$0x1]
    %v112 = vld [vmem:[%s3 + $0x7] sm:$0x1]
    %v113 = vadd.f32 %v111, %v112
    %v114 = vadd.f32 %v113, %v58
    %115 = vst.msk [vmem:[#allocation2 + $0x7] sm:$0x1] %vm65, %v114
    %s116 = sld [smem:[#allocation4 + $0x80]]
    %s117 = scalar_lea.vmem %s2, %s116
    %v118 = vld [vmem:[%s117] sm:$0x1]
    %v119 = vld [vmem:[%s3] sm:$0x1]
    %v120 = vadd.f32 %v118, %v119
    %v121 = vadd.f32 %v120, %v58
    %122 = vst.msk [vmem:[#allocation2 + $0x8] sm:$0x1] %vm65, %v121
    %s123 = sld [smem:[#allocation4 + $0x81]]
    %s124 = scalar_lea.vmem %s2, %s123
    %v125 = vld [vmem:[%s124] sm:$0x1]
    %v126 = vld [vmem:[%s3 + $0x1] sm:$0x1]
    %v127 = vadd.f32 %v125, %v126
    %v128 = vadd.f32 %v127, %v58
    %129 = vst.msk [vmem:[#allocation2 + $0x9] sm:$0x1] %vm65, %v128
    %s130 = sld [smem:[#allocation4 + $0x82]]
    %s131 = scalar_lea.vmem %s2, %s130
    %v132 = vld [vmem:[%s131] sm:$0x1]
    %v133 = vld [vmem:[%s3 + $0x2] sm:$0x1]
    %v134 = vadd.f32 %v132, %v133
    %v135 = vadd.f32 %v134, %v58
    %136 = vst.msk [vmem:[#allocation2 + $0xa] sm:$0x1] %vm65, %v135
    %s137 = sld [smem:[#allocation4 + $0x83]]
    %s138 = scalar_lea.vmem %s2, %s137
    %v139 = vld [vmem:[%s138] sm:$0x1]
    %v140 = vld [vmem:[%s3 + $0x3] sm:$0x1]
    %v141 = vadd.f32 %v139, %v140
    %v142 = vadd.f32 %v141, %v58
    %143 = vst.msk [vmem:[#allocation2 + $0xb] sm:$0x1] %vm65, %v142
    %s144 = sld [smem:[#allocation4 + $0x84]]
    %s145 = scalar_lea.vmem %s2, %s144
    %v146 = vld [vmem:[%s145] sm:$0x1]
    %v147 = vld [vmem:[%s3 + $0x4] sm:$0x1]
    %v148 = vadd.f32 %v146, %v147
    %v149 = vadd.f32 %v148, %v58
    %150 = vst.msk [vmem:[#allocation2 + $0xc] sm:$0x1] %vm65, %v149
    %s151 = sld [smem:[#allocation4 + $0x85]]
    %s152 = scalar_lea.vmem %s2, %s151
    %v153 = vld [vmem:[%s152] sm:$0x1]
    %v154 = vld [vmem:[%s3 + $0x5] sm:$0x1]
    %v155 = vadd.f32 %v153, %v154
    %v156 = vadd.f32 %v155, %v58
    %157 = vst.msk [vmem:[#allocation2 + $0xd] sm:$0x1] %vm65, %v156
    %s158 = sld [smem:[#allocation4 + $0x86]]
    %s159 = scalar_lea.vmem %s2, %s158
    %v160 = vld [vmem:[%s159] sm:$0x1]
    %v161 = vld [vmem:[%s3 + $0x6] sm:$0x1]
    %v162 = vadd.f32 %v160, %v161
    %v163 = vadd.f32 %v162, %v58
    %164 = vst.msk [vmem:[#allocation2 + $0xe] sm:$0x1] %vm65, %v163
    %s165 = sld [smem:[#allocation4 + $0x87]]
    %s166 = scalar_lea.vmem %s2, %s165
    %v167 = vld [vmem:[%s166] sm:$0x1]
    %v168 = vld [vmem:[%s3 + $0x7] sm:$0x1]
    %v169 = vadd.f32 %v167, %v168
    %v170 = vadd.f32 %v169, %v58
    %171 = vst.msk [vmem:[#allocation2 + $0xf] sm:$0x1] %vm65, %v170
    %v172 = vld [vmem:[#allocation2] sm:$0xff]
    %v173 = vld [vmem:[#allocation2 + $0x8] sm:$0xff]
    %vm174 = vcmask 261120
    %v175 = vsel %vm174, %v172, 0.0
    %176 = vadd.xlane.f32.xlu0 %v175
    %v177 = vpop.xlane.xlu0 %176
    %v178 = vsel %vm174, %v173, 0.0
    %179 = vadd.xlane.f32.xlu0 %v178
    %v180 = vpop.xlane.xlu0 %179
    %v181 = vrcp.pop 32.0
    %v182 = vmul.f32 %v177, %v181
    %v183 = vmul.f32 %v180, %v181
    %v184 = vsub.f32 %v172, %v182
    %v185 = vsub.f32 %v173, %v183
    %v186 = vmul.f32 %v184, %v184
    %v187 = vmul.f32 %v185, %v185
    %v188 = vsel %vm174, %v186, 0.0
    %189 = vadd.xlane.f32.xlu0 %v188
    %v190 = vpop.xlane.xlu0 %189
    %v191 = vsel %vm174, %v187, 0.0
    %192 = vadd.xlane.f32.xlu0 %v191
    %v193 = vpop.xlane.xlu0 %192
    %v194 = vmul.f32 %v190, %v181
    %v195 = vmul.f32 %v193, %v181
    %v196 = vadd.f32 %v194, 1e-12
    %v197 = vadd.f32 %v195, 1e-12
    %v198 = vrsqrt.pop %v196
    %v199 = vrsqrt.pop %v197
    %v200 = vmul.f32 %v184, %v198
    %v201 = vmul.f32 %v185, %v199
    %v202 = vlaneseq
    %v203 = vshrl.u32 %v202, 7
    %v204 = vsub.s32 0, %v203
    %v205 = vrot.slane %v55, %v204
    %v206 = vmul.f32 %v200, %v205
    %v207 = vmul.f32 %v201, %v205
    %v208 = vlaneseq
    %v209 = vshrl.u32 %v208, 7
    %v210 = vsub.s32 1, %v209
    %v211 = vrot.slane %v55, %v210
    %v212 = vadd.f32 %v206, %v211
    %v213 = vadd.f32 %v207, %v211
    %v214 = vld [vmem:[%s1] sm:$0x1]
    %v215 = vlaneseq
    %v216 = vshrl.u32 %v215, 7
    %v217 = vsub.s32 0, %v216
    %v218 = vrot.slane %v214, %v217
    %v219 = vld [vmem:[%s1 + $0x1] sm:$0x1]
    %v220 = vlaneseq
    %v221 = vshrl.u32 %v220, 7
    %v222 = vsub.s32 0, %v221
    %v223 = vrot.slane %v219, %v222
    %v224 = vpack.c.bf16 %v213, %v212
    %v225 = vld [vmem:[%s5] sm:$0xf]
    %v226 = vld [vmem:[%s5 + $0x4] sm:$0xf]
    %v227 = vld [vmem:[%s5 + $0x8] sm:$0xf]
    %v228 = vld [vmem:[%s5 + $0xc] sm:$0xf]
    %v229 = vlaneseq
    %v230 = vshrl.u32 %v229, 7
    %v231 = vsub.s32 4, %v230
    %v232 = vrot.slane %v55, %v231
    %v237 = vunpack.c.l.b16 %v225
    %v238 = vunpack.c.l.b16 %v226
    %v239 = vunpack.c.l.b16 %v227
    %v240 = vunpack.c.l.b16 %v228
    %v241 = vpack.c.b16 %v238, %v237
    %v242 = vpack.c.b16 %v240, %v239
    %v246 = vsel %vm174, %v224, 0
    %248 = vmatprep.subr.bf16.mxu0 0
    %249 = vmatpush1.bf16.msra.mxu0 %v241
    %250 = vmatprep.subr.bf16.mxu0 0
    %251 = vmatpush1.bf16.msra.mxu0 %v242
    %252 = vmatprep.subr.bf16.mxu0 0
    %253 = vmatpush1.bf16.msra.mxu0 0
    %254 = vmatprep.subr.bf16.mxu0 0
    %255 = vmatpush1.bf16.msra.mxu0 0
    %256 = vmatprep.subr.bf16.mxu0 0
    %257 = vmatpush1.bf16.msra.mxu0 0
    %258 = vmatprep.subr.bf16.mxu0 0
    %259 = vmatpush1.bf16.msra.mxu0 0
    %260 = vmatprep.subr.bf16.mxu0 0
    %261 = vmatpush1.bf16.msra.mxu0 0
    %262 = vmatprep.subr.bf16.mxu0 0
    %263 = vmatpush1.bf16.msra.mxu0 0
    %264 = vmatprep.subr.bf16.mxu0 0
    %265 = vmatpush1.bf16.msra.mxu0 0
    %266 = vmatprep.subr.bf16.mxu0 0
    %267 = vmatpush1.bf16.msra.mxu0 0
    %268 = vmatprep.subr.bf16.mxu0 0
    %269 = vmatpush1.bf16.msra.mxu0 0
    %270 = vmatprep.subr.bf16.mxu0 0
    %271 = vmatpush1.bf16.msra.mxu0 0
    %272 = vmatprep.subr.bf16.mxu0 0
    %273 = vmatpush1.bf16.msra.mxu0 0
    %274 = vmatprep.subr.bf16.mxu0 0
    %275 = vmatpush1.bf16.msra.mxu0 0
    %276 = vmatprep.subr.bf16.mxu0 0
    %277 = vmatpush1.bf16.msra.mxu0 0
    %278 = vmatprep.subr.bf16.mxu0 0
    %279 = vmatpush1.bf16.msra.mxu0 0
    %280 = vmatprep.mubr.bf16.mxu0 0
    %281 = vmatmul.mubr.bf16.gmra.mrb[0].mxu0 %v246
    %v282 = vpop.f32.mrb[0].mxu0
    %v283 = vadd.f32 %v232, %v282
    %v284 = vpop.f32.mrb[0].mxu0
    %v285 = vpop.f32.mrb[0].mxu0
    %v286 = vadd.f32 %v232, %v285
    %v287 = vpop.f32.mrb[0].mxu0
    %288 = vdwg.mxu0
    %v289 = vpack.c.bf16 %v283, %v283
    %291 = vrot.lane.b32.xlu0 %v289, 96
    %v292 = vpop.permute.xlu0 %291
    %vm293 = vcmask 64512
    %v295 = vsel %vm293, %v289, 0
    %v298 = vsel %vm293, %v292, 0
    %300 = vmatprep.subr.bf16.mxu0 0
    %301 = vmatpush1.bf16.xpose.msra.mxu0 %v298
    %302 = vmatprep.subr.bf16.mxu0 0
    %303 = vmatpush1.bf16.xpose.msra.mxu0 0
    %304 = vmatprep.subr.bf16.mxu0 0
    %305 = vmatpush1.bf16.xpose.msra.mxu0 0
    %306 = vmatprep.subr.bf16.mxu0 0
    %307 = vmatpush1.bf16.xpose.msra.mxu0 0
    %308 = vmatprep.subr.bf16.mxu0 0
    %309 = vmatpush1.bf16.xpose.msra.mxu0 0
    %310 = vmatprep.subr.bf16.mxu0 0
    %311 = vmatpush1.bf16.xpose.msra.mxu0 0
    %312 = vmatprep.subr.bf16.mxu0 0
    %313 = vmatpush1.bf16.xpose.msra.mxu0 0
    %314 = vmatprep.subr.bf16.mxu0 0
    %315 = vmatpush1.bf16.xpose.msra.mxu0 0
    %316 = vmatprep.subr.bf16.mxu0 0
    %317 = vmatpush1.bf16.xpose.msra.mxu0 0
    %318 = vmatprep.subr.bf16.mxu0 0
    %319 = vmatpush1.bf16.xpose.msra.mxu0 0
    %320 = vmatprep.subr.bf16.mxu0 0
    %321 = vmatpush1.bf16.xpose.msra.mxu0 0
    %322 = vmatprep.subr.bf16.mxu0 0
    %323 = vmatpush1.bf16.xpose.msra.mxu0 0
    %324 = vmatprep.subr.bf16.mxu0 0
    %325 = vmatpush1.bf16.xpose.msra.mxu0 0
    %326 = vmatprep.subr.bf16.mxu0 0
    %327 = vmatpush1.bf16.xpose.msra.mxu0 0
    %328 = vmatprep.subr.bf16.mxu0 0
    %329 = vmatpush1.bf16.xpose.msra.mxu0 0
    %330 = vmatprep.subr.bf16.mxu0 0
    %331 = vmatpush1.bf16.xpose.msra.mxu0 0
    %332 = vmatprep.mubr.bf16.mxu0 0
    %333 = vmatmul.mubr.bf16.gmra.mrb[0].mxu0 %v295
    %v334 = vpop.f32.mrb[0].mxu0
    %v335 = vadd.f32 %v218, %v334
    %v336 = vpop.f32.mrb[0].mxu0
    %v337 = vpop.f32.mrb[0].mxu0
    %v338 = vpop.f32.mrb[0].mxu0
    %339 = vdwg.mxu0
    %v340 = vsel %vm293, %v335, -inf
    %341 = vmax.xlane.f32.xlu0 %v340
    %v342 = vpop.xlane.xlu0 %341
    %v343 = vsub.f32 %v335, %v342
    %v344 = vmul.f32 %v343, 1.442695
    %v345 = vpow.pop %v344
    %v346 = vsel %vm293, %v345, 0.0
    %347 = vadd.xlane.f32.xlu0 %v346
    %v348 = vpop.xlane.xlu0 %347
    %v349 = vrcp.pop %v348
    %v350 = vmul.f32 %v345, %v349
    %v351 = vpack.c.bf16 %v350, %v350
    %352 = vrot.lane.b32.xlu0 %v289, 64
    %v353 = vpop.permute.xlu0 %352
    %v355 = vsel %vm293, %v351, 0
    %vm357 = vcmask 1043456
    %v359 = vsel %vm357, %v353, 0
    %361 = vmatprep.subr.bf16.mxu0 0
    %362 = vmatpush1.bf16.msra.mxu0 %v359
    %363 = vmatprep.subr.bf16.mxu0 0
    %364 = vmatpush1.bf16.msra.mxu0 0
    %365 = vmatprep.subr.bf16.mxu0 0
    %366 = vmatpush1.bf16.msra.mxu0 0
    %367 = vmatprep.subr.bf16.mxu0 0
    %368 = vmatpush1.bf16.msra.mxu0 0
    %369 = vmatprep.subr.bf16.mxu0 0
    %370 = vmatpush1.bf16.msra.mxu0 0
    %371 = vmatprep.subr.bf16.mxu0 0
    %372 = vmatpush1.bf16.msra.mxu0 0
    %373 = vmatprep.subr.bf16.mxu0 0
    %374 = vmatpush1.bf16.msra.mxu0 0
    %375 = vmatprep.subr.bf16.mxu0 0
    %376 = vmatpush1.bf16.msra.mxu0 0
    %377 = vmatprep.subr.bf16.mxu0 0
    %378 = vmatpush1.bf16.msra.mxu0 0
    %379 = vmatprep.subr.bf16.mxu0 0
    %380 = vmatpush1.bf16.msra.mxu0 0
    %381 = vmatprep.subr.bf16.mxu0 0
    %382 = vmatpush1.bf16.msra.mxu0 0
    %383 = vmatprep.subr.bf16.mxu0 0
    %384 = vmatpush1.bf16.msra.mxu0 0
    %385 = vmatprep.subr.bf16.mxu0 0
    %386 = vmatpush1.bf16.msra.mxu0 0
    %387 = vmatprep.subr.bf16.mxu0 0
    %388 = vmatpush1.bf16.msra.mxu0 0
    %389 = vmatprep.subr.bf16.mxu0 0
    %390 = vmatpush1.bf16.msra.mxu0 0
    %391 = vmatprep.subr.bf16.mxu0 0
    %392 = vmatpush1.bf16.msra.mxu0 0
    %393 = vmatprep.mubr.bf16.mxu0 0
    %394 = vmatmul.mubr.bf16.gmra.mrb[0].mxu0 %v355
    %v395 = vpop.f32.mrb[0].mxu0
    %v396 = vadd.f32 0.0, %v395
    %v397 = vpop.f32.mrb[0].mxu0
    %v398 = vpop.f32.mrb[0].mxu0
    %v399 = vpop.f32.mrb[0].mxu0
    %400 = vdwg.mxu0
    %401 = vst.msk [vmem:[#allocation3] sm:$0xff] %vm293, %v396
    %402 = vrot.lane.b32.xlu0 %v289, 120
    %v403 = vpop.permute.xlu0 %402
    %404 = vrot.lane.b32.xlu0 %v289, 88
    %v405 = vpop.permute.xlu0 %404
    %v407 = vsel %vm293, %v403, 0
    %v410 = vsel %vm293, %v405, 0
    %412 = vmatprep.subr.bf16.mxu0 0
    %413 = vmatpush1.bf16.xpose.msra.mxu0 %v410
    %414 = vmatprep.subr.bf16.mxu0 0
    %415 = vmatpush1.bf16.xpose.msra.mxu0 0
    %416 = vmatprep.subr.bf16.mxu0 0
    %417 = vmatpush1.bf16.xpose.msra.mxu0 0
    %418 = vmatprep.subr.bf16.mxu0 0
    %419 = vmatpush1.bf16.xpose.msra.mxu0 0
    %420 = vmatprep.subr.bf16.mxu0 0
    %421 = vmatpush1.bf16.xpose.msra.mxu0 0
    %422 = vmatprep.subr.bf16.mxu0 0
    %423 = vmatpush1.bf16.xpose.msra.mxu0 0
    %424 = vmatprep.subr.bf16.mxu0 0
    %425 = vmatpush1.bf16.xpose.msra.mxu0 0
    %426 = vmatprep.subr.bf16.mxu0 0
    %427 = vmatpush1.bf16.xpose.msra.mxu0 0
    %428 = vmatprep.subr.bf16.mxu0 0
    %429 = vmatpush1.bf16.xpose.msra.mxu0 0
    %430 = vmatprep.subr.bf16.mxu0 0
    %431 = vmatpush1.bf16.xpose.msra.mxu0 0
    %432 = vmatprep.subr.bf16.mxu0 0
    %433 = vmatpush1.bf16.xpose.msra.mxu0 0
    %434 = vmatprep.subr.bf16.mxu0 0
    %435 = vmatpush1.bf16.xpose.msra.mxu0 0
    %436 = vmatprep.subr.bf16.mxu0 0
    %437 = vmatpush1.bf16.xpose.msra.mxu0 0
    %438 = vmatprep.subr.bf16.mxu0 0
    %439 = vmatpush1.bf16.xpose.msra.mxu0 0
    %440 = vmatprep.subr.bf16.mxu0 0
    %441 = vmatpush1.bf16.xpose.msra.mxu0 0
    %442 = vmatprep.subr.bf16.mxu0 0
    %443 = vmatpush1.bf16.xpose.msra.mxu0 0
    %444 = vmatprep.mubr.bf16.mxu0 0
    %445 = vmatmul.mubr.bf16.gmra.mrb[0].mxu0 %v407
    %v446 = vpop.f32.mrb[0].mxu0
    %v447 = vadd.f32 %v218, %v446
    %v448 = vpop.f32.mrb[0].mxu0
    %v449 = vpop.f32.mrb[0].mxu0
    %v450 = vpop.f32.mrb[0].mxu0
    %451 = vdwg.mxu0
    %v452 = vsel %vm293, %v447, -inf
    %453 = vmax.xlane.f32.xlu0 %v452
    %v454 = vpop.xlane.xlu0 %453
    %v455 = vsub.f32 %v447, %v454
    %v456 = vmul.f32 %v455, 1.442695
    %v457 = vpow.pop %v456
    %v458 = vsel %vm293, %v457, 0.0
    %459 = vadd.xlane.f32.xlu0 %v458
    %v460 = vpop.xlane.xlu0 %459
    %v461 = vrcp.pop %v460
    %v462 = vmul.f32 %v457, %v461
    %v463 = vpack.c.bf16 %v462, %v462
    %464 = vrot.lane.b32.xlu0 %v289, 56
    %v465 = vpop.permute.xlu0 %464
    %v467 = vsel %vm293, %v463, 0
    %v470 = vsel %vm357, %v465, 0
    %472 = vmatprep.subr.bf16.mxu0 0
    %473 = vmatpush1.bf16.msra.mxu0 %v470
    %474 = vmatprep.subr.bf16.mxu0 0
    %475 = vmatpush1.bf16.msra.mxu0 0
    %476 = vmatprep.subr.bf16.mxu0 0
    %477 = vmatpush1.bf16.msra.mxu0 0
    %478 = vmatprep.subr.bf16.mxu0 0
    %479 = vmatpush1.bf16.msra.mxu0 0
    %480 = vmatprep.subr.bf16.mxu0 0
    %481 = vmatpush1.bf16.msra.mxu0 0
    %482 = vmatprep.subr.bf16.mxu0 0
    %483 = vmatpush1.bf16.msra.mxu0 0
    %484 = vmatprep.subr.bf16.mxu0 0
    %485 = vmatpush1.bf16.msra.mxu0 0
    %486 = vmatprep.subr.bf16.mxu0 0
    %487 = vmatpush1.bf16.msra.mxu0 0
    %488 = vmatprep.subr.bf16.mxu0 0
    %489 = vmatpush1.bf16.msra.mxu0 0
    %490 = vmatprep.subr.bf16.mxu0 0
    %491 = vmatpush1.bf16.msra.mxu0 0
    %492 = vmatprep.subr.bf16.mxu0 0
    %493 = vmatpush1.bf16.msra.mxu0 0
    %494 = vmatprep.subr.bf16.mxu0 0
    %495 = vmatpush1.bf16.msra.mxu0 0
    %496 = vmatprep.subr.bf16.mxu0 0
    %497 = vmatpush1.bf16.msra.mxu0 0
    %498 = vmatprep.subr.bf16.mxu0 0
    %499 = vmatpush1.bf16.msra.mxu0 0
    %500 = vmatprep.subr.bf16.mxu0 0
    %501 = vmatpush1.bf16.msra.mxu0 0
    %502 = vmatprep.subr.bf16.mxu0 0
    %503 = vmatpush1.bf16.msra.mxu0 0
    %504 = vmatprep.mubr.bf16.mxu0 0
    %505 = vmatmul.mubr.bf16.gmra.mrb[0].mxu0 %v467
    %v506 = vpop.f32.mrb[0].mxu0
    %v507 = vadd.f32 0.0, %v506
    %v508 = vpop.f32.mrb[0].mxu0
    %v509 = vpop.f32.mrb[0].mxu0
    %v510 = vpop.f32.mrb[0].mxu0
    %511 = vdwg.mxu0
    %513 = vrot.lane.b32.xlu0 %v507, 8
    %v514 = vpop.permute.xlu0 %513
    %vm516 = vcmask 130112
    %517 = vst.msk [vmem:[#allocation3] sm:$0xff] %vm516, %v514
    %518 = vrot.lane.b32.xlu0 %v289, 112
    %v519 = vpop.permute.xlu0 %518
    %520 = vrot.lane.b32.xlu0 %v289, 80
    %v521 = vpop.permute.xlu0 %520
    %v523 = vsel %vm293, %v519, 0
    %v526 = vsel %vm293, %v521, 0
    %528 = vmatprep.subr.bf16.mxu0 0
    %529 = vmatpush1.bf16.xpose.msra.mxu0 %v526
    %530 = vmatprep.subr.bf16.mxu0 0
    %531 = vmatpush1.bf16.xpose.msra.mxu0 0
    %532 = vmatprep.subr.bf16.mxu0 0
    %533 = vmatpush1.bf16.xpose.msra.mxu0 0
    %534 = vmatprep.subr.bf16.mxu0 0
    %535 = vmatpush1.bf16.xpose.msra.mxu0 0
    %536 = vmatprep.subr.bf16.mxu0 0
    %537 = vmatpush1.bf16.xpose.msra.mxu0 0
    %538 = vmatprep.subr.bf16.mxu0 0
    %539 = vmatpush1.bf16.xpose.msra.mxu0 0
    %540 = vmatprep.subr.bf16.mxu0 0
    %541 = vmatpush1.bf16.xpose.msra.mxu0 0
    %542 = vmatprep.subr.bf16.mxu0 0
    %543 = vmatpush1.bf16.xpose.msra.mxu0 0
    %544 = vmatprep.subr.bf16.mxu0 0
    %545 = vmatpush1.bf16.xpose.msra.mxu0 0
    %546 = vmatprep.subr.bf16.mxu0 0
    %547 = vmatpush1.bf16.xpose.msra.mxu0 0
    %548 = vmatprep.subr.bf16.mxu0 0
    %549 = vmatpush1.bf16.xpose.msra.mxu0 0
    %550 = vmatprep.subr.bf16.mxu0 0
    %551 = vmatpush1.bf16.xpose.msra.mxu0 0
    %552 = vmatprep.subr.bf16.mxu0 0
    %553 = vmatpush1.bf16.xpose.msra.mxu0 0
    %554 = vmatprep.subr.bf16.mxu0 0
    %555 = vmatpush1.bf16.xpose.msra.mxu0 0
    %556 = vmatprep.subr.bf16.mxu0 0
    %557 = vmatpush1.bf16.xpose.msra.mxu0 0
    %558 = vmatprep.subr.bf16.mxu0 0
    %559 = vmatpush1.bf16.xpose.msra.mxu0 0
    %560 = vmatprep.mubr.bf16.mxu0 0
    %561 = vmatmul.mubr.bf16.gmra.mrb[0].mxu0 %v523
    %v562 = vpop.f32.mrb[0].mxu0
    %v563 = vadd.f32 %v218, %v562
    %v564 = vpop.f32.mrb[0].mxu0
    %v565 = vpop.f32.mrb[0].mxu0
    %v566 = vpop.f32.mrb[0].mxu0
    %567 = vdwg.mxu0
    %v568 = vsel %vm293, %v563, -inf
    %569 = vmax.xlane.f32.xlu0 %v568
    %v570 = vpop.xlane.xlu0 %569
    %v571 = vsub.f32 %v563, %v570
    %v572 = vmul.f32 %v571, 1.442695
    %v573 = vpow.pop %v572
    %v574 = vsel %vm293, %v573, 0.0
    %575 = vadd.xlane.f32.xlu0 %v574
    %v576 = vpop.xlane.xlu0 %575
    %v577 = vrcp.pop %v576
    %v578 = vmul.f32 %v573, %v577
    %v579 = vpack.c.bf16 %v578, %v578
    %580 = vrot.lane.b32.xlu0 %v289, 48
    %v581 = vpop.permute.xlu0 %580
    %v583 = vsel %vm293, %v579, 0
    %v586 = vsel %vm357, %v581, 0
    %588 = vmatprep.subr.bf16.mxu0 0
    %589 = vmatpush1.bf16.msra.mxu0 %v586
    %590 = vmatprep.subr.bf16.mxu0 0
    %591 = vmatpush1.bf16.msra.mxu0 0
    %592 = vmatprep.subr.bf16.mxu0 0
    %593 = vmatpush1.bf16.msra.mxu0 0
    %594 = vmatprep.subr.bf16.mxu0 0
    %595 = vmatpush1.bf16.msra.mxu0 0
    %596 = vmatprep.subr.bf16.mxu0 0
    %597 = vmatpush1.bf16.msra.mxu0 0
    %598 = vmatprep.subr.bf16.mxu0 0
    %599 = vmatpush1.bf16.msra.mxu0 0
    %600 = vmatprep.subr.bf16.mxu0 0
    %601 = vmatpush1.bf16.msra.mxu0 0
    %602 = vmatprep.subr.bf16.mxu0 0
    %603 = vmatpush1.bf16.msra.mxu0 0
    %604 = vmatprep.subr.bf16.mxu0 0
    %605 = vmatpush1.bf16.msra.mxu0 0
    %606 = vmatprep.subr.bf16.mxu0 0
    %607 = vmatpush1.bf16.msra.mxu0 0
    %608 = vmatprep.subr.bf16.mxu0 0
    %609 = vmatpush1.bf16.msra.mxu0 0
    %610 = vmatprep.subr.bf16.mxu0 0
    %611 = vmatpush1.bf16.msra.mxu0 0
    %612 = vmatprep.subr.bf16.mxu0 0
    %613 = vmatpush1.bf16.msra.mxu0 0
    %614 = vmatprep.subr.bf16.mxu0 0
    %615 = vmatpush1.bf16.msra.mxu0 0
    %616 = vmatprep.subr.bf16.mxu0 0
    %617 = vmatpush1.bf16.msra.mxu0 0
    %618 = vmatprep.subr.bf16.mxu0 0
    %619 = vmatpush1.bf16.msra.mxu0 0
    %620 = vmatprep.mubr.bf16.mxu0 0
    %621 = vmatmul.mubr.bf16.gmra.mrb[0].mxu0 %v583
    %v622 = vpop.f32.mrb[0].mxu0
    %v623 = vadd.f32 0.0, %v622
    %v624 = vpop.f32.mrb[0].mxu0
    %v625 = vpop.f32.mrb[0].mxu0
    %v626 = vpop.f32.mrb[0].mxu0
    %627 = vdwg.mxu0
    %629 = vrot.lane.b32.xlu0 %v623, 16
    %v630 = vpop.permute.xlu0 %629
    %vm632 = vcmask 195712
    %633 = vst.msk [vmem:[#allocation3] sm:$0xff] %vm632, %v630
    %634 = vrot.lane.b32.xlu0 %v289, 104
    %v635 = vpop.permute.xlu0 %634
    %636 = vrot.lane.b32.xlu0 %v289, 72
    %v637 = vpop.permute.xlu0 %636
    %v639 = vsel %vm293, %v635, 0
    %v642 = vsel %vm293, %v637, 0
    %644 = vmatprep.subr.bf16.mxu0 0
    %645 = vmatpush1.bf16.xpose.msra.mxu0 %v642
    %646 = vmatprep.subr.bf16.mxu0 0
    %647 = vmatpush1.bf16.xpose.msra.mxu0 0
    %648 = vmatprep.subr.bf16.mxu0 0
    %649 = vmatpush1.bf16.xpose.msra.mxu0 0
    %650 = vmatprep.subr.bf16.mxu0 0
    %651 = vmatpush1.bf16.xpose.msra.mxu0 0
    %652 = vmatprep.subr.bf16.mxu0 0
    %653 = vmatpush1.bf16.xpose.msra.mxu0 0
    %654 = vmatprep.subr.bf16.mxu0 0
    %655 = vmatpush1.bf16.xpose.msra.mxu0 0
    %656 = vmatprep.subr.bf16.mxu0 0
    %657 = vmatpush1.bf16.xpose.msra.mxu0 0
    %658 = vmatprep.subr.bf16.mxu0 0
    %659 = vmatpush1.bf16.xpose.msra.mxu0 0
    %660 = vmatprep.subr.bf16.mxu0 0
    %661 = vmatpush1.bf16.xpose.msra.mxu0 0
    %662 = vmatprep.subr.bf16.mxu0 0
    %663 = vmatpush1.bf16.xpose.msra.mxu0 0
    %664 = vmatprep.subr.bf16.mxu0 0
    %665 = vmatpush1.bf16.xpose.msra.mxu0 0
    %666 = vmatprep.subr.bf16.mxu0 0
    %667 = vmatpush1.bf16.xpose.msra.mxu0 0
    %668 = vmatprep.subr.bf16.mxu0 0
    %669 = vmatpush1.bf16.xpose.msra.mxu0 0
    %670 = vmatprep.subr.bf16.mxu0 0
    %671 = vmatpush1.bf16.xpose.msra.mxu0 0
    %672 = vmatprep.subr.bf16.mxu0 0
    %673 = vmatpush1.bf16.xpose.msra.mxu0 0
    %674 = vmatprep.subr.bf16.mxu0 0
    %675 = vmatpush1.bf16.xpose.msra.mxu0 0
    %676 = vmatprep.mubr.bf16.mxu0 0
    %677 = vmatmul.mubr.bf16.gmra.mrb[0].mxu0 %v639
    %v678 = vpop.f32.mrb[0].mxu0
    %v679 = vadd.f32 %v218, %v678
    %v680 = vpop.f32.mrb[0].mxu0
    %v681 = vpop.f32.mrb[0].mxu0
    %v682 = vpop.f32.mrb[0].mxu0
    %683 = vdwg.mxu0
    %v684 = vsel %vm293, %v679, -inf
    %685 = vmax.xlane.f32.xlu0 %v684
    %v686 = vpop.xlane.xlu0 %685
    %v687 = vsub.f32 %v679, %v686
    %v688 = vmul.f32 %v687, 1.442695
    %v689 = vpow.pop %v688
    %v690 = vsel %vm293, %v689, 0.0
    %691 = vadd.xlane.f32.xlu0 %v690
    %v692 = vpop.xlane.xlu0 %691
    %v693 = vrcp.pop %v692
    %v694 = vmul.f32 %v689, %v693
    %v695 = vpack.c.bf16 %v694, %v694
    %696 = vrot.lane.b32.xlu0 %v289, 40
    %v697 = vpop.permute.xlu0 %696
    %v699 = vsel %vm293, %v695, 0
    %v702 = vsel %vm357, %v697, 0
    %704 = vmatprep.subr.bf16.mxu0 0
    %705 = vmatpush1.bf16.msra.mxu0 %v702
    %706 = vmatprep.subr.bf16.mxu0 0
    %707 = vmatpush1.bf16.msra.mxu0 0
    %708 = vmatprep.subr.bf16.mxu0 0
    %709 = vmatpush1.bf16.msra.mxu0 0
    %710 = vmatprep.subr.bf16.mxu0 0
    %711 = vmatpush1.bf16.msra.mxu0 0
    %712 = vmatprep.subr.bf16.mxu0 0
    %713 = vmatpush1.bf16.msra.mxu0 0
    %714 = vmatprep.subr.bf16.mxu0 0
    %715 = vmatpush1.bf16.msra.mxu0 0
    %716 = vmatprep.subr.bf16.mxu0 0
    %717 = vmatpush1.bf16.msra.mxu0 0
    %718 = vmatprep.subr.bf16.mxu0 0
    %719 = vmatpush1.bf16.msra.mxu0 0
    %720 = vmatprep.subr.bf16.mxu0 0
    %721 = vmatpush1.bf16.msra.mxu0 0
    %722 = vmatprep.subr.bf16.mxu0 0
    %723 = vmatpush1.bf16.msra.mxu0 0
    %724 = vmatprep.subr.bf16.mxu0 0
    %725 = vmatpush1.bf16.msra.mxu0 0
    %726 = vmatprep.subr.bf16.mxu0 0
    %727 = vmatpush1.bf16.msra.mxu0 0
    %728 = vmatprep.subr.bf16.mxu0 0
    %729 = vmatpush1.bf16.msra.mxu0 0
    %730 = vmatprep.subr.bf16.mxu0 0
    %731 = vmatpush1.bf16.msra.mxu0 0
    %732 = vmatprep.subr.bf16.mxu0 0
    %733 = vmatpush1.bf16.msra.mxu0 0
    %734 = vmatprep.subr.bf16.mxu0 0
    %735 = vmatpush1.bf16.msra.mxu0 0
    %736 = vmatprep.mubr.bf16.mxu0 0
    %737 = vmatmul.mubr.bf16.gmra.mrb[0].mxu0 %v699
    %v738 = vpop.f32.mrb[0].mxu0
    %v739 = vadd.f32 0.0, %v738
    %v740 = vpop.f32.mrb[0].mxu0
    %v741 = vpop.f32.mrb[0].mxu0
    %v742 = vpop.f32.mrb[0].mxu0
    %743 = vdwg.mxu0
    %745 = vrot.lane.b32.xlu0 %v739, 24
    %v746 = vpop.permute.xlu0 %745
    %vm748 = vcmask 261312
    %749 = vst.msk [vmem:[#allocation3] sm:$0xff] %vm748, %v746
    %v750 = vpack.c.bf16 %v286, %v286
    %752 = vrot.lane.b32.xlu0 %v750, 96
    %v753 = vpop.permute.xlu0 %752
    %v755 = vsel %vm293, %v750, 0
    %v758 = vsel %vm293, %v753, 0
    %760 = vmatprep.subr.bf16.mxu0 0
    %761 = vmatpush1.bf16.xpose.msra.mxu0 %v758
    %762 = vmatprep.subr.bf16.mxu0 0
    %763 = vmatpush1.bf16.xpose.msra.mxu0 0
    %764 = vmatprep.subr.bf16.mxu0 0
    %765 = vmatpush1.bf16.xpose.msra.mxu0 0
    %766 = vmatprep.subr.bf16.mxu0 0
    %767 = vmatpush1.bf16.xpose.msra.mxu0 0
    %768 = vmatprep.subr.bf16.mxu0 0
    %769 = vmatpush1.bf16.xpose.msra.mxu0 0
    %770 = vmatprep.subr.bf16.mxu0 0
    %771 = vmatpush1.bf16.xpose.msra.mxu0 0
    %772 = vmatprep.subr.bf16.mxu0 0
    %773 = vmatpush1.bf16.xpose.msra.mxu0 0
    %774 = vmatprep.subr.bf16.mxu0 0
    %775 = vmatpush1.bf16.xpose.msra.mxu0 0
    %776 = vmatprep.subr.bf16.mxu0 0
    %777 = vmatpush1.bf16.xpose.msra.mxu0 0
    %778 = vmatprep.subr.bf16.mxu0 0
    %779 = vmatpush1.bf16.xpose.msra.mxu0 0
    %780 = vmatprep.subr.bf16.mxu0 0
    %781 = vmatpush1.bf16.xpose.msra.mxu0 0
    %782 = vmatprep.subr.bf16.mxu0 0
    %783 = vmatpush1.bf16.xpose.msra.mxu0 0
    %784 = vmatprep.subr.bf16.mxu0 0
    %785 = vmatpush1.bf16.xpose.msra.mxu0 0
    %786 = vmatprep.subr.bf16.mxu0 0
    %787 = vmatpush1.bf16.xpose.msra.mxu0 0
    %788 = vmatprep.subr.bf16.mxu0 0
    %789 = vmatpush1.bf16.xpose.msra.mxu0 0
    %790 = vmatprep.subr.bf16.mxu0 0
    %791 = vmatpush1.bf16.xpose.msra.mxu0 0
    %792 = vmatprep.mubr.bf16.mxu0 0
    %793 = vmatmul.mubr.bf16.gmra.mrb[0].mxu0 %v755
    %v794 = vpop.f32.mrb[0].mxu0
    %v795 = vadd.f32 %v223, %v794
    %v796 = vpop.f32.mrb[0].mxu0
    %v797 = vpop.f32.mrb[0].mxu0
    %v798 = vpop.f32.mrb[0].mxu0
    %799 = vdwg.mxu0
    %v800 = vsel %vm293, %v795, -inf
    %801 = vmax.xlane.f32.xlu0 %v800
    %v802 = vpop.xlane.xlu0 %801
    %v803 = vsub.f32 %v795, %v802
    %v804 = vmul.f32 %v803, 1.442695
    %v805 = vpow.pop %v804
    %v806 = vsel %vm293, %v805, 0.0
    %807 = vadd.xlane.f32.xlu0 %v806
    %v808 = vpop.xlane.xlu0 %807
    %v809 = vrcp.pop %v808
    %v810 = vmul.f32 %v805, %v809
    %v811 = vpack.c.bf16 %v810, %v810
    %812 = vrot.lane.b32.xlu0 %v750, 64
    %v813 = vpop.permute.xlu0 %812
    %v815 = vsel %vm293, %v811, 0
    %v818 = vsel %vm357, %v813, 0
    %820 = vmatprep.subr.bf16.mxu0 0
    %821 = vmatpush1.bf16.msra.mxu0 %v818
    %822 = vmatprep.subr.bf16.mxu0 0
    %823 = vmatpush1.bf16.msra.mxu0 0
    %824 = vmatprep.subr.bf16.mxu0 0
    %825 = vmatpush1.bf16.msra.mxu0 0
    %826 = vmatprep.subr.bf16.mxu0 0
    %827 = vmatpush1.bf16.msra.mxu0 0
    %828 = vmatprep.subr.bf16.mxu0 0
    %829 = vmatpush1.bf16.msra.mxu0 0
    %830 = vmatprep.subr.bf16.mxu0 0
    %831 = vmatpush1.bf16.msra.mxu0 0
    %832 = vmatprep.subr.bf16.mxu0 0
    %833 = vmatpush1.bf16.msra.mxu0 0
    %834 = vmatprep.subr.bf16.mxu0 0
    %835 = vmatpush1.bf16.msra.mxu0 0
    %836 = vmatprep.subr.bf16.mxu0 0
    %837 = vmatpush1.bf16.msra.mxu0 0
    %838 = vmatprep.subr.bf16.mxu0 0
    %839 = vmatpush1.bf16.msra.mxu0 0
    %840 = vmatprep.subr.bf16.mxu0 0
    %841 = vmatpush1.bf16.msra.mxu0 0
    %842 = vmatprep.subr.bf16.mxu0 0
    %843 = vmatpush1.bf16.msra.mxu0 0
    %844 = vmatprep.subr.bf16.mxu0 0
    %845 = vmatpush1.bf16.msra.mxu0 0
    %846 = vmatprep.subr.bf16.mxu0 0
    %847 = vmatpush1.bf16.msra.mxu0 0
    %848 = vmatprep.subr.bf16.mxu0 0
    %849 = vmatpush1.bf16.msra.mxu0 0
    %850 = vmatprep.subr.bf16.mxu0 0
    %851 = vmatpush1.bf16.msra.mxu0 0
    %852 = vmatprep.mubr.bf16.mxu0 0
    %853 = vmatmul.mubr.bf16.gmra.mrb[0].mxu0 %v815
    %v854 = vpop.f32.mrb[0].mxu0
    %v855 = vadd.f32 0.0, %v854
    %v856 = vpop.f32.mrb[0].mxu0
    %v857 = vpop.f32.mrb[0].mxu0
    %v858 = vpop.f32.mrb[0].mxu0
    %859 = vdwg.mxu0
    %860 = vst.msk [vmem:[#allocation3 + $0x8] sm:$0xff] %vm293, %v855
    %861 = vrot.lane.b32.xlu0 %v750, 120
    %v862 = vpop.permute.xlu0 %861
    %863 = vrot.lane.b32.xlu0 %v750, 88
    %v864 = vpop.permute.xlu0 %863
    %v866 = vsel %vm293, %v862, 0
    %v869 = vsel %vm293, %v864, 0
    %871 = vmatprep.subr.bf16.mxu0 0
    %872 = vmatpush1.bf16.xpose.msra.mxu0 %v869
    %873 = vmatprep.subr.bf16.mxu0 0
    %874 = vmatpush1.bf16.xpose.msra.mxu0 0
    %875 = vmatprep.subr.bf16.mxu0 0
    %876 = vmatpush1.bf16.xpose.msra.mxu0 0
    %877 = vmatprep.subr.bf16.mxu0 0
    %878 = vmatpush1.bf16.xpose.msra.mxu0 0
    %879 = vmatprep.subr.bf16.mxu0 0
    %880 = vmatpush1.bf16.xpose.msra.mxu0 0
    %881 = vmatprep.subr.bf16.mxu0 0
    %882 = vmatpush1.bf16.xpose.msra.mxu0 0
    %883 = vmatprep.subr.bf16.mxu0 0
    %884 = vmatpush1.bf16.xpose.msra.mxu0 0
    %885 = vmatprep.subr.bf16.mxu0 0
    %886 = vmatpush1.bf16.xpose.msra.mxu0 0
    %887 = vmatprep.subr.bf16.mxu0 0
    %888 = vmatpush1.bf16.xpose.msra.mxu0 0
    %889 = vmatprep.subr.bf16.mxu0 0
    %890 = vmatpush1.bf16.xpose.msra.mxu0 0
    %891 = vmatprep.subr.bf16.mxu0 0
    %892 = vmatpush1.bf16.xpose.msra.mxu0 0
    %893 = vmatprep.subr.bf16.mxu0 0
    %894 = vmatpush1.bf16.xpose.msra.mxu0 0
    %895 = vmatprep.subr.bf16.mxu0 0
    %896 = vmatpush1.bf16.xpose.msra.mxu0 0
    %897 = vmatprep.subr.bf16.mxu0 0
    %898 = vmatpush1.bf16.xpose.msra.mxu0 0
    %899 = vmatprep.subr.bf16.mxu0 0
    %900 = vmatpush1.bf16.xpose.msra.mxu0 0
    %901 = vmatprep.subr.bf16.mxu0 0
    %902 = vmatpush1.bf16.xpose.msra.mxu0 0
    %903 = vmatprep.mubr.bf16.mxu0 0
    %904 = vmatmul.mubr.bf16.gmra.mrb[0].mxu0 %v866
    %v905 = vpop.f32.mrb[0].mxu0
    %v906 = vadd.f32 %v223, %v905
    %v907 = vpop.f32.mrb[0].mxu0
    %v908 = vpop.f32.mrb[0].mxu0
    %v909 = vpop.f32.mrb[0].mxu0
    %910 = vdwg.mxu0
    %v911 = vsel %vm293, %v906, -inf
    %912 = vmax.xlane.f32.xlu0 %v911
    %v913 = vpop.xlane.xlu0 %912
    %v914 = vsub.f32 %v906, %v913
    %v915 = vmul.f32 %v914, 1.442695
    %v916 = vpow.pop %v915
    %v917 = vsel %vm293, %v916, 0.0
    %918 = vadd.xlane.f32.xlu0 %v917
    %v919 = vpop.xlane.xlu0 %918
    %v920 = vrcp.pop %v919
    %v921 = vmul.f32 %v916, %v920
    %v922 = vpack.c.bf16 %v921, %v921
    %923 = vrot.lane.b32.xlu0 %v750, 56
    %v924 = vpop.permute.xlu0 %923
    %v926 = vsel %vm293, %v922, 0
    %v929 = vsel %vm357, %v924, 0
    %931 = vmatprep.subr.bf16.mxu0 0
    %932 = vmatpush1.bf16.msra.mxu0 %v929
    %933 = vmatprep.subr.bf16.mxu0 0
    %934 = vmatpush1.bf16.msra.mxu0 0
    %935 = vmatprep.subr.bf16.mxu0 0
    %936 = vmatpush1.bf16.msra.mxu0 0
    %937 = vmatprep.subr.bf16.mxu0 0
    %938 = vmatpush1.bf16.msra.mxu0 0
    %939 = vmatprep.subr.bf16.mxu0 0
    %940 = vmatpush1.bf16.msra.mxu0 0
    %941 = vmatprep.subr.bf16.mxu0 0
    %942 = vmatpush1.bf16.msra.mxu0 0
    %943 = vmatprep.subr.bf16.mxu0 0
    %944 = vmatpush1.bf16.msra.mxu0 0
    %945 = vmatprep.subr.bf16.mxu0 0
    %946 = vmatpush1.bf16.msra.mxu0 0
    %947 = vmatprep.subr.bf16.mxu0 0
    %948 = vmatpush1.bf16.msra.mxu0 0
    %949 = vmatprep.subr.bf16.mxu0 0
    %950 = vmatpush1.bf16.msra.mxu0 0
    %951 = vmatprep.subr.bf16.mxu0 0
    %952 = vmatpush1.bf16.msra.mxu0 0
    %953 = vmatprep.subr.bf16.mxu0 0
    %954 = vmatpush1.bf16.msra.mxu0 0
    %955 = vmatprep.subr.bf16.mxu0 0
    %956 = vmatpush1.bf16.msra.mxu0 0
    %957 = vmatprep.subr.bf16.mxu0 0
    %958 = vmatpush1.bf16.msra.mxu0 0
    %959 = vmatprep.subr.bf16.mxu0 0
    %960 = vmatpush1.bf16.msra.mxu0 0
    %961 = vmatprep.subr.bf16.mxu0 0
    %962 = vmatpush1.bf16.msra.mxu0 0
    %963 = vmatprep.mubr.bf16.mxu0 0
    %964 = vmatmul.mubr.bf16.gmra.mrb[0].mxu0 %v926
    %v965 = vpop.f32.mrb[0].mxu0
    %v966 = vadd.f32 0.0, %v965
    %v967 = vpop.f32.mrb[0].mxu0
    %v968 = vpop.f32.mrb[0].mxu0
    %v969 = vpop.f32.mrb[0].mxu0
    %970 = vdwg.mxu0
    %972 = vrot.lane.b32.xlu0 %v966, 8
    %v973 = vpop.permute.xlu0 %972
    %975 = vst.msk [vmem:[#allocation3 + $0x8] sm:$0xff] %vm516, %v973
    %976 = vrot.lane.b32.xlu0 %v750, 112
    %v977 = vpop.permute.xlu0 %976
    %978 = vrot.lane.b32.xlu0 %v750, 80
    %v979 = vpop.permute.xlu0 %978
    %v981 = vsel %vm293, %v977, 0
    %v984 = vsel %vm293, %v979, 0
    %986 = vmatprep.subr.bf16.mxu0 0
    %987 = vmatpush1.bf16.xpose.msra.mxu0 %v984
    %988 = vmatprep.subr.bf16.mxu0 0
    %989 = vmatpush1.bf16.xpose.msra.mxu0 0
    %990 = vmatprep.subr.bf16.mxu0 0
    %991 = vmatpush1.bf16.xpose.msra.mxu0 0
    %992 = vmatprep.subr.bf16.mxu0 0
    %993 = vmatpush1.bf16.xpose.msra.mxu0 0
    %994 = vmatprep.subr.bf16.mxu0 0
    %995 = vmatpush1.bf16.xpose.msra.mxu0 0
    %996 = vmatprep.subr.bf16.mxu0 0
    %997 = vmatpush1.bf16.xpose.msra.mxu0 0
    %998 = vmatprep.subr.bf16.mxu0 0
    %999 = vmatpush1.bf16.xpose.msra.mxu0 0
    %1000 = vmatprep.subr.bf16.mxu0 0
    %1001 = vmatpush1.bf16.xpose.msra.mxu0 0
    %1002 = vmatprep.subr.bf16.mxu0 0
    %1003 = vmatpush1.bf16.xpose.msra.mxu0 0
    %1004 = vmatprep.subr.bf16.mxu0 0
    %1005 = vmatpush1.bf16.xpose.msra.mxu0 0
    %1006 = vmatprep.subr.bf16.mxu0 0
    %1007 = vmatpush1.bf16.xpose.msra.mxu0 0
    %1008 = vmatprep.subr.bf16.mxu0 0
    %1009 = vmatpush1.bf16.xpose.msra.mxu0 0
    %1010 = vmatprep.subr.bf16.mxu0 0
    %1011 = vmatpush1.bf16.xpose.msra.mxu0 0
    %1012 = vmatprep.subr.bf16.mxu0 0
    %1013 = vmatpush1.bf16.xpose.msra.mxu0 0
    %1014 = vmatprep.subr.bf16.mxu0 0
    %1015 = vmatpush1.bf16.xpose.msra.mxu0 0
    %1016 = vmatprep.subr.bf16.mxu0 0
    %1017 = vmatpush1.bf16.xpose.msra.mxu0 0
    %1018 = vmatprep.mubr.bf16.mxu0 0
    %1019 = vmatmul.mubr.bf16.gmra.mrb[0].mxu0 %v981
    %v1020 = vpop.f32.mrb[0].mxu0
    %v1021 = vadd.f32 %v223, %v1020
    %v1022 = vpop.f32.mrb[0].mxu0
    %v1023 = vpop.f32.mrb[0].mxu0
    %v1024 = vpop.f32.mrb[0].mxu0
    %1025 = vdwg.mxu0
    %v1026 = vsel %vm293, %v1021, -inf
    %1027 = vmax.xlane.f32.xlu0 %v1026
    %v1028 = vpop.xlane.xlu0 %1027
    %v1029 = vsub.f32 %v1021, %v1028
    %v1030 = vmul.f32 %v1029, 1.442695
    %v1031 = vpow.pop %v1030
    %v1032 = vsel %vm293, %v1031, 0.0
    %1033 = vadd.xlane.f32.xlu0 %v1032
    %v1034 = vpop.xlane.xlu0 %1033
    %v1035 = vrcp.pop %v1034
    %v1036 = vmul.f32 %v1031, %v1035
    %v1037 = vpack.c.bf16 %v1036, %v1036
    %1038 = vrot.lane.b32.xlu0 %v750, 48
    %v1039 = vpop.permute.xlu0 %1038
    %v1041 = vsel %vm293, %v1037, 0
    %v1044 = vsel %vm357, %v1039, 0
    %1046 = vmatprep.subr.bf16.mxu0 0
    %1047 = vmatpush1.bf16.msra.mxu0 %v1044
    %1048 = vmatprep.subr.bf16.mxu0 0
    %1049 = vmatpush1.bf16.msra.mxu0 0
    %1050 = vmatprep.subr.bf16.mxu0 0
    %1051 = vmatpush1.bf16.msra.mxu0 0
    %1052 = vmatprep.subr.bf16.mxu0 0
    %1053 = vmatpush1.bf16.msra.mxu0 0
    %1054 = vmatprep.subr.bf16.mxu0 0
    %1055 = vmatpush1.bf16.msra.mxu0 0
    %1056 = vmatprep.subr.bf16.mxu0 0
    %1057 = vmatpush1.bf16.msra.mxu0 0
    %1058 = vmatprep.subr.bf16.mxu0 0
    %1059 = vmatpush1.bf16.msra.mxu0 0
    %1060 = vmatprep.subr.bf16.mxu0 0
    %1061 = vmatpush1.bf16.msra.mxu0 0
    %1062 = vmatprep.subr.bf16.mxu0 0
    %1063 = vmatpush1.bf16.msra.mxu0 0
    %1064 = vmatprep.subr.bf16.mxu0 0
    %1065 = vmatpush1.bf16.msra.mxu0 0
    %1066 = vmatprep.subr.bf16.mxu0 0
    %1067 = vmatpush1.bf16.msra.mxu0 0
    %1068 = vmatprep.subr.bf16.mxu0 0
    %1069 = vmatpush1.bf16.msra.mxu0 0
    %1070 = vmatprep.subr.bf16.mxu0 0
    %1071 = vmatpush1.bf16.msra.mxu0 0
    %1072 = vmatprep.subr.bf16.mxu0 0
    %1073 = vmatpush1.bf16.msra.mxu0 0
    %1074 = vmatprep.subr.bf16.mxu0 0
    %1075 = vmatpush1.bf16.msra.mxu0 0
    %1076 = vmatprep.subr.bf16.mxu0 0
    %1077 = vmatpush1.bf16.msra.mxu0 0
    %1078 = vmatprep.mubr.bf16.mxu0 0
    %1079 = vmatmul.mubr.bf16.gmra.mrb[0].mxu0 %v1041
    %v1080 = vpop.f32.mrb[0].mxu0
    %v1081 = vadd.f32 0.0, %v1080
    %v1082 = vpop.f32.mrb[0].mxu0
    %v1083 = vpop.f32.mrb[0].mxu0
    %v1084 = vpop.f32.mrb[0].mxu0
    %1085 = vdwg.mxu0
    %1087 = vrot.lane.b32.xlu0 %v1081, 16
    %v1088 = vpop.permute.xlu0 %1087
    %1090 = vst.msk [vmem:[#allocation3 + $0x8] sm:$0xff] %vm632, %v1088
    %1091 = vrot.lane.b32.xlu0 %v750, 104
    %v1092 = vpop.permute.xlu0 %1091
    %1093 = vrot.lane.b32.xlu0 %v750, 72
    %v1094 = vpop.permute.xlu0 %1093
    %v1096 = vsel %vm293, %v1092, 0
    %v1099 = vsel %vm293, %v1094, 0
    %1101 = vmatprep.subr.bf16.mxu0 0
    %1102 = vmatpush1.bf16.xpose.msra.mxu0 %v1099
    %1103 = vmatprep.subr.bf16.mxu0 0
    %1104 = vmatpush1.bf16.xpose.msra.mxu0 0
    %1105 = vmatprep.subr.bf16.mxu0 0
    %1106 = vmatpush1.bf16.xpose.msra.mxu0 0
    %1107 = vmatprep.subr.bf16.mxu0 0
    %1108 = vmatpush1.bf16.xpose.msra.mxu0 0
    %1109 = vmatprep.subr.bf16.mxu0 0
    %1110 = vmatpush1.bf16.xpose.msra.mxu0 0
    %1111 = vmatprep.subr.bf16.mxu0 0
    %1112 = vmatpush1.bf16.xpose.msra.mxu0 0
    %1113 = vmatprep.subr.bf16.mxu0 0
    %1114 = vmatpush1.bf16.xpose.msra.mxu0 0
    %1115 = vmatprep.subr.bf16.mxu0 0
    %1116 = vmatpush1.bf16.xpose.msra.mxu0 0
    %1117 = vmatprep.subr.bf16.mxu0 0
    %1118 = vmatpush1.bf16.xpose.msra.mxu0 0
    %1119 = vmatprep.subr.bf16.mxu0 0
    %1120 = vmatpush1.bf16.xpose.msra.mxu0 0
    %1121 = vmatprep.subr.bf16.mxu0 0
    %1122 = vmatpush1.bf16.xpose.msra.mxu0 0
    %1123 = vmatprep.subr.bf16.mxu0 0
    %1124 = vmatpush1.bf16.xpose.msra.mxu0 0
    %1125 = vmatprep.subr.bf16.mxu0 0
    %1126 = vmatpush1.bf16.xpose.msra.mxu0 0
    %1127 = vmatprep.subr.bf16.mxu0 0
    %1128 = vmatpush1.bf16.xpose.msra.mxu0 0
    %1129 = vmatprep.subr.bf16.mxu0 0
    %1130 = vmatpush1.bf16.xpose.msra.mxu0 0
    %1131 = vmatprep.subr.bf16.mxu0 0
    %1132 = vmatpush1.bf16.xpose.msra.mxu0 0
    %1133 = vmatprep.mubr.bf16.mxu0 0
    %1134 = vmatmul.mubr.bf16.gmra.mrb[0].mxu0 %v1096
    %v1135 = vpop.f32.mrb[0].mxu0
    %v1136 = vadd.f32 %v223, %v1135
    %v1137 = vpop.f32.mrb[0].mxu0
    %v1138 = vpop.f32.mrb[0].mxu0
    %v1139 = vpop.f32.mrb[0].mxu0
    %1140 = vdwg.mxu0
    %v1141 = vsel %vm293, %v1136, -inf
    %1142 = vmax.xlane.f32.xlu0 %v1141
    %v1143 = vpop.xlane.xlu0 %1142
    %v1144 = vsub.f32 %v1136, %v1143
    %v1145 = vmul.f32 %v1144, 1.442695
    %v1146 = vpow.pop %v1145
    %v1147 = vsel %vm293, %v1146, 0.0
    %1148 = vadd.xlane.f32.xlu0 %v1147
    %v1149 = vpop.xlane.xlu0 %1148
    %v1150 = vrcp.pop %v1149
    %v1151 = vmul.f32 %v1146, %v1150
    %v1152 = vpack.c.bf16 %v1151, %v1151
    %1153 = vrot.lane.b32.xlu0 %v750, 40
    %v1154 = vpop.permute.xlu0 %1153
    %v1156 = vsel %vm293, %v1152, 0
    %v1159 = vsel %vm357, %v1154, 0
    %1161 = vmatprep.subr.bf16.mxu0 0
    %1162 = vmatpush1.bf16.msra.mxu0 %v1159
    %1163 = vmatprep.subr.bf16.mxu0 0
    %1164 = vmatpush1.bf16.msra.mxu0 0
    %1165 = vmatprep.subr.bf16.mxu0 0
    %1166 = vmatpush1.bf16.msra.mxu0 0
    %1167 = vmatprep.subr.bf16.mxu0 0
    %1168 = vmatpush1.bf16.msra.mxu0 0
    %1169 = vmatprep.subr.bf16.mxu0 0
    %1170 = vmatpush1.bf16.msra.mxu0 0
    %1171 = vmatprep.subr.bf16.mxu0 0
    %1172 = vmatpush1.bf16.msra.mxu0 0
    %1173 = vmatprep.subr.bf16.mxu0 0
    %1174 = vmatpush1.bf16.msra.mxu0 0
    %1175 = vmatprep.subr.bf16.mxu0 0
    %1176 = vmatpush1.bf16.msra.mxu0 0
    %1177 = vmatprep.subr.bf16.mxu0 0
    %1178 = vmatpush1.bf16.msra.mxu0 0
    %1179 = vmatprep.subr.bf16.mxu0 0
    %1180 = vmatpush1.bf16.msra.mxu0 0
    %1181 = vmatprep.subr.bf16.mxu0 0
    %1182 = vmatpush1.bf16.msra.mxu0 0
    %1183 = vmatprep.subr.bf16.mxu0 0
    %1184 = vmatpush1.bf16.msra.mxu0 0
    %1185 = vmatprep.subr.bf16.mxu0 0
    %1186 = vmatpush1.bf16.msra.mxu0 0
    %1187 = vmatprep.subr.bf16.mxu0 0
    %1188 = vmatpush1.bf16.msra.mxu0 0
    %1189 = vmatprep.subr.bf16.mxu0 0
    %1190 = vmatpush1.bf16.msra.mxu0 0
    %1191 = vmatprep.subr.bf16.mxu0 0
    %1192 = vmatpush1.bf16.msra.mxu0 0
    %1193 = vmatprep.mubr.bf16.mxu0 0
    %1194 = vmatmul.mubr.bf16.gmra.mrb[0].mxu0 %v1156
    %v1195 = vpop.f32.mrb[0].mxu0
    %v1196 = vadd.f32 0.0, %v1195
    %v1197 = vpop.f32.mrb[0].mxu0
    %v1198 = vpop.f32.mrb[0].mxu0
    %v1199 = vpop.f32.mrb[0].mxu0
    %1200 = vdwg.mxu0
    %1202 = vrot.lane.b32.xlu0 %v1196, 24
    %v1203 = vpop.permute.xlu0 %1202
    %1205 = vst.msk [vmem:[#allocation3 + $0x8] sm:$0xff] %vm748, %v1203
    %v1206 = vld [vmem:[#allocation3] sm:$0xff]
    %v1207 = vld [vmem:[#allocation3 + $0x8] sm:$0xff]
    %v1208 = vpack.c.bf16 %v1207, %v1206
    %v1209 = vld [vmem:[%s6] sm:$0xf]
    %v1210 = vld [vmem:[%s6 + $0x4] sm:$0xf]
    %v1211 = vld [vmem:[%s6 + $0x8] sm:$0xf]
    %v1212 = vld [vmem:[%s6 + $0xc] sm:$0xf]
    %v1213 = vlaneseq
    %v1214 = vshrl.u32 %v1213, 7
    %v1215 = vsub.s32 5, %v1214
    %v1216 = vrot.slane %v55, %v1215
    %v1221 = vunpack.c.l.b16 %v1209
    %v1222 = vunpack.c.l.b16 %v1210
    %v1223 = vunpack.c.l.b16 %v1211
    %v1224 = vunpack.c.l.b16 %v1212
    %v1225 = vpack.c.b16 %v1222, %v1221
    %v1226 = vpack.c.b16 %v1224, %v1223
    %v1230 = vsel %vm174, %v1208, 0
    %1232 = vmatprep.subr.bf16.mxu0 0
    %1233 = vmatpush1.bf16.msra.mxu0 %v1225
    %1234 = vmatprep.subr.bf16.mxu0 0
    %1235 = vmatpush1.bf16.msra.mxu0 %v1226
    %1236 = vmatprep.subr.bf16.mxu0 0
    %1237 = vmatpush1.bf16.msra.mxu0 0
    %1238 = vmatprep.subr.bf16.mxu0 0
    %1239 = vmatpush1.bf16.msra.mxu0 0
    %1240 = vmatprep.subr.bf16.mxu0 0
    %1241 = vmatpush1.bf16.msra.mxu0 0
    %1242 = vmatprep.subr.bf16.mxu0 0
    %1243 = vmatpush1.bf16.msra.mxu0 0
    %1244 = vmatprep.subr.bf16.mxu0 0
    %1245 = vmatpush1.bf16.msra.mxu0 0
    %1246 = vmatprep.subr.bf16.mxu0 0
    %1247 = vmatpush1.bf16.msra.mxu0 0
    %1248 = vmatprep.subr.bf16.mxu0 0
    %1249 = vmatpush1.bf16.msra.mxu0 0
    %1250 = vmatprep.subr.bf16.mxu0 0
    %1251 = vmatpush1.bf16.msra.mxu0 0
    %1252 = vmatprep.subr.bf16.mxu0 0
    %1253 = vmatpush1.bf16.msra.mxu0 0
    %1254 = vmatprep.subr.bf16.mxu0 0
    %1255 = vmatpush1.bf16.msra.mxu0 0
    %1256 = vmatprep.subr.bf16.mxu0 0
    %1257 = vmatpush1.bf16.msra.mxu0 0
    %1258 = vmatprep.subr.bf16.mxu0 0
    %1259 = vmatpush1.bf16.msra.mxu0 0
    %1260 = vmatprep.subr.bf16.mxu0 0
    %1261 = vmatpush1.bf16.msra.mxu0 0
    %1262 = vmatprep.subr.bf16.mxu0 0
    %1263 = vmatpush1.bf16.msra.mxu0 0
    %1264 = vmatprep.mubr.bf16.mxu0 0
    %1265 = vmatmul.mubr.bf16.gmra.mrb[0].mxu0 %v1230
    %v1266 = vpop.f32.mrb[0].mxu0
    %v1267 = vadd.f32 %v1216, %v1266
    %v1268 = vpop.f32.mrb[0].mxu0
    %v1269 = vpop.f32.mrb[0].mxu0
    %v1270 = vadd.f32 %v1216, %v1269
    %v1271 = vpop.f32.mrb[0].mxu0
    %1272 = vdwg.mxu0
    %v1273 = vadd.f32 %v1267, %v212
    %v1274 = vadd.f32 %v1270, %v213
    %v1275 = vsel %vm174, %v1273, 0.0
    %1276 = vadd.xlane.f32.xlu0 %v1275
    %v1277 = vpop.xlane.xlu0 %1276
    %v1278 = vsel %vm174, %v1274, 0.0
    %1279 = vadd.xlane.f32.xlu0 %v1278
    %v1280 = vpop.xlane.xlu0 %1279
    %v1281 = vmul.f32 %v1277, %v181
    %v1282 = vmul.f32 %v1280, %v181
    %v1283 = vsub.f32 %v1273, %v1281
    %v1284 = vsub.f32 %v1274, %v1282
    %v1285 = vmul.f32 %v1283, %v1283
    %v1286 = vmul.f32 %v1284, %v1284
    %v1287 = vsel %vm174, %v1285, 0.0
    %1288 = vadd.xlane.f32.xlu0 %v1287
    %v1289 = vpop.xlane.xlu0 %1288
    %v1290 = vsel %vm174, %v1286, 0.0
    %1291 = vadd.xlane.f32.xlu0 %v1290
    %v1292 = vpop.xlane.xlu0 %1291
    %v1293 = vmul.f32 %v1289, %v181
    %v1294 = vmul.f32 %v1292, %v181
    %v1295 = vadd.f32 %v1293, 1e-12
    %v1296 = vadd.f32 %v1294, 1e-12
    %v1297 = vrsqrt.pop %v1295
    %v1298 = vrsqrt.pop %v1296
    %v1299 = vmul.f32 %v1283, %v1297
    %v1300 = vmul.f32 %v1284, %v1298
    %v1301 = vlaneseq
    %v1302 = vshrl.u32 %v1301, 7
    %v1303 = vsub.s32 6, %v1302
    %v1304 = vrot.slane %v55, %v1303
    %v1305 = vmul.f32 %v1299, %v1304
    %v1306 = vmul.f32 %v1300, %v1304
    %v1307 = vlaneseq
    %v1308 = vshrl.u32 %v1307, 7
    %v1309 = vsub.s32 7, %v1308
    %v1310 = vrot.slane %v55, %v1309
    %v1311 = vadd.f32 %v1305, %v1310
    %v1312 = vadd.f32 %v1306, %v1310
    %v1313 = vpack.c.bf16 %v1312, %v1311
    %v1314 = vld [vmem:[%s7] sm:$0xf]
    %v1315 = vld [vmem:[%s7 + $0x4] sm:$0xf]
    %v1316 = vld [vmem:[%s7 + $0x8] sm:$0xf]
    %v1317 = vld [vmem:[%s7 + $0xc] sm:$0xf]
    %v1318 = vlaneseq
    %v1319 = vshrl.u32 %v1318, 7
    %v1320 = vsub.s32 0, %v1319
    %v1321 = vrot.slane %v56, %v1320
    %v1326 = vunpack.c.l.b16 %v1314
    %v1327 = vunpack.c.l.b16 %v1315
    %v1328 = vunpack.c.l.b16 %v1316
    %v1329 = vunpack.c.l.b16 %v1317
    %v1330 = vpack.c.b16 %v1327, %v1326
    %v1331 = vpack.c.b16 %v1329, %v1328
    %v1335 = vsel %vm174, %v1313, 0
    %1337 = vmatprep.subr.bf16.mxu0 0
    %1338 = vmatpush1.bf16.msra.mxu0 %v1330
    %1339 = vmatprep.subr.bf16.mxu0 0
    %1340 = vmatpush1.bf16.msra.mxu0 %v1331
    %1341 = vmatprep.subr.bf16.mxu0 0
    %1342 = vmatpush1.bf16.msra.mxu0 0
    %1343 = vmatprep.subr.bf16.mxu0 0
    %1344 = vmatpush1.bf16.msra.mxu0 0
    %1345 = vmatprep.subr.bf16.mxu0 0
    %1346 = vmatpush1.bf16.msra.mxu0 0
    %1347 = vmatprep.subr.bf16.mxu0 0
    %1348 = vmatpush1.bf16.msra.mxu0 0
    %1349 = vmatprep.subr.bf16.mxu0 0
    %1350 = vmatpush1.bf16.msra.mxu0 0
    %1351 = vmatprep.subr.bf16.mxu0 0
    %1352 = vmatpush1.bf16.msra.mxu0 0
    %1353 = vmatprep.subr.bf16.mxu0 0
    %1354 = vmatpush1.bf16.msra.mxu0 0
    %1355 = vmatprep.subr.bf16.mxu0 0
    %1356 = vmatpush1.bf16.msra.mxu0 0
    %1357 = vmatprep.subr.bf16.mxu0 0
    %1358 = vmatpush1.bf16.msra.mxu0 0
    %1359 = vmatprep.subr.bf16.mxu0 0
    %1360 = vmatpush1.bf16.msra.mxu0 0
    %1361 = vmatprep.subr.bf16.mxu0 0
    %1362 = vmatpush1.bf16.msra.mxu0 0
    %1363 = vmatprep.subr.bf16.mxu0 0
    %1364 = vmatpush1.bf16.msra.mxu0 0
    %1365 = vmatprep.subr.bf16.mxu0 0
    %1366 = vmatpush1.bf16.msra.mxu0 0
    %1367 = vmatprep.subr.bf16.mxu0 0
    %1368 = vmatpush1.bf16.msra.mxu0 0
    %1369 = vmatprep.mubr.bf16.mxu0 0
    %1370 = vmatmul.mubr.bf16.gmra.mrb[0].mxu0 %v1335
    %v1371 = vpop.f32.mrb[0].mxu0
    %v1372 = vadd.f32 %v1321, %v1371
    %v1373 = vpop.f32.mrb[0].mxu0
    %v1374 = vpop.f32.mrb[0].mxu0
    %v1375 = vadd.f32 %v1321, %v1374
    %v1376 = vpop.f32.mrb[0].mxu0
    %1377 = vdwg.mxu0
    %v1378 = vmul.f32 %v1372, 0.5
    %v1379 = vmul.f32 %v1375, 0.5
    %v1380 = vmul.f32 %v1372, 0.044715
    %v1381 = vmul.f32 %v1375, 0.044715
    %v1382 = vmul.f32 %v1380, %v1372
    %v1383 = vmul.f32 %v1381, %v1375
    %v1384 = vmul.f32 %v1382, %v1372
    %v1385 = vmul.f32 %v1383, %v1375
    %v1386 = vadd.f32 %v1372, %v1384
    %v1387 = vadd.f32 %v1375, %v1385
    %v1388 = vmul.f32 %v1386, 0.7978846
    %v1389 = vmul.f32 %v1387, 0.7978846
    %v1390 = vtanh.pop %v1388
    %v1391 = vtanh.pop %v1389
    %v1392 = vadd.f32 %v1390, 1.0
    %v1393 = vadd.f32 %v1391, 1.0
    %v1394 = vmul.f32 %v1378, %v1392
    %v1395 = vmul.f32 %v1379, %v1393
    %v1396 = vpack.c.bf16 %v1395, %v1394
    %v1397 = vld [vmem:[%s8] sm:$0xf]
    %v1398 = vld [vmem:[%s8 + $0x4] sm:$0xf]
    %v1399 = vld [vmem:[%s8 + $0x8] sm:$0xf]
    %v1400 = vld [vmem:[%s8 + $0xc] sm:$0xf]
    %v1401 = vld [vmem:[%s8 + $0x10] sm:$0xf]
    %v1402 = vld [vmem:[%s8 + $0x14] sm:$0xf]
    %v1403 = vld [vmem:[%s8 + $0x18] sm:$0xf]
    %v1404 = vld [vmem:[%s8 + $0x1c] sm:$0xf]
    %v1405 = vlaneseq
    %v1406 = vshrl.u32 %v1405, 7
    %v1407 = vsub.s32 1, %v1406
    %v1408 = vrot.slane %v56, %v1407
    %v1417 = vunpack.c.l.b16 %v1397
    %v1418 = vunpack.c.l.b16 %v1398
    %v1419 = vunpack.c.l.b16 %v1399
    %v1420 = vunpack.c.l.b16 %v1400
    %v1421 = vunpack.c.l.b16 %v1401
    %v1422 = vunpack.c.l.b16 %v1402
    %v1423 = vunpack.c.l.b16 %v1403
    %v1424 = vunpack.c.l.b16 %v1404
    %v1425 = vpack.c.b16 %v1418, %v1417
    %v1426 = vpack.c.b16 %v1420, %v1419
    %v1427 = vpack.c.b16 %v1422, %v1421
    %v1428 = vpack.c.b16 %v1424, %v1423
    %vm1433 = vcmask 523264
    %v1435 = vsel %vm1433, %v1396, 0
    %1437 = vmatprep.subr.bf16.mxu0 0
    %1438 = vmatpush1.bf16.msra.mxu0 %v1425
    %1439 = vmatprep.subr.bf16.mxu0 0
    %1440 = vmatpush1.bf16.msra.mxu0 %v1426
    %1441 = vmatprep.subr.bf16.mxu0 0
    %1442 = vmatpush1.bf16.msra.mxu0 %v1427
    %1443 = vmatprep.subr.bf16.mxu0 0
    %1444 = vmatpush1.bf16.msra.mxu0 %v1428
    %1445 = vmatprep.subr.bf16.mxu0 0
    %1446 = vmatpush1.bf16.msra.mxu0 0
    %1447 = vmatprep.subr.bf16.mxu0 0
    %1448 = vmatpush1.bf16.msra.mxu0 0
    %1449 = vmatprep.subr.bf16.mxu0 0
    %1450 = vmatpush1.bf16.msra.mxu0 0
    %1451 = vmatprep.subr.bf16.mxu0 0
    %1452 = vmatpush1.bf16.msra.mxu0 0
    %1453 = vmatprep.subr.bf16.mxu0 0
    %1454 = vmatpush1.bf16.msra.mxu0 0
    %1455 = vmatprep.subr.bf16.mxu0 0
    %1456 = vmatpush1.bf16.msra.mxu0 0
    %1457 = vmatprep.subr.bf16.mxu0 0
    %1458 = vmatpush1.bf16.msra.mxu0 0
    %1459 = vmatprep.subr.bf16.mxu0 0
    %1460 = vmatpush1.bf16.msra.mxu0 0
    %1461 = vmatprep.subr.bf16.mxu0 0
    %1462 = vmatpush1.bf16.msra.mxu0 0
    %1463 = vmatprep.subr.bf16.mxu0 0
    %1464 = vmatpush1.bf16.msra.mxu0 0
    %1465 = vmatprep.subr.bf16.mxu0 0
    %1466 = vmatpush1.bf16.msra.mxu0 0
    %1467 = vmatprep.subr.bf16.mxu0 0
    %1468 = vmatpush1.bf16.msra.mxu0 0
    %1469 = vmatprep.mubr.bf16.mxu0 0
    %1470 = vmatmul.mubr.bf16.gmra.mrb[0].mxu0 %v1435
    %v1471 = vpop.f32.mrb[0].mxu0
    %v1472 = vadd.f32 %v1408, %v1471
    %v1473 = vpop.f32.mrb[0].mxu0
    %v1474 = vpop.f32.mrb[0].mxu0
    %v1475 = vadd.f32 %v1408, %v1474
    %v1476 = vpop.f32.mrb[0].mxu0
    %1477 = vdwg.mxu0
    %v1478 = vadd.f32 %v1472, %v1311
    %v1479 = vadd.f32 %v1475, %v1312
    %v1480 = vsel %vm174, %v1478, 0.0
    %1481 = vadd.xlane.f32.xlu0 %v1480
    %v1482 = vpop.xlane.xlu0 %1481
    %v1483 = vsel %vm174, %v1479, 0.0
    %1484 = vadd.xlane.f32.xlu0 %v1483
    %v1485 = vpop.xlane.xlu0 %1484
    %v1486 = vmul.f32 %v1482, %v181
    %v1487 = vmul.f32 %v1485, %v181
    %v1488 = vsub.f32 %v1478, %v1486
    %v1489 = vsub.f32 %v1479, %v1487
    %v1490 = vmul.f32 %v1488, %v1488
    %v1491 = vmul.f32 %v1489, %v1489
    %v1492 = vsel %vm174, %v1490, 0.0
    %1493 = vadd.xlane.f32.xlu0 %v1492
    %v1494 = vpop.xlane.xlu0 %1493
    %v1495 = vsel %vm174, %v1491, 0.0
    %1496 = vadd.xlane.f32.xlu0 %v1495
    %v1497 = vpop.xlane.xlu0 %1496
    %v1498 = vmul.f32 %v1494, %v181
    %v1499 = vmul.f32 %v1497, %v181
    %v1500 = vadd.f32 %v1498, 1e-12
    %v1501 = vadd.f32 %v1499, 1e-12
    %v1502 = vrsqrt.pop %v1500
    %v1503 = vrsqrt.pop %v1501
    %v1504 = vmul.f32 %v1488, %v1502
    %v1505 = vmul.f32 %v1489, %v1503
    %v1506 = vlaneseq
    %v1507 = vshrl.u32 %v1506, 7
    %v1508 = vsub.s32 2, %v1507
    %v1509 = vrot.slane %v56, %v1508
    %v1510 = vmul.f32 %v1504, %v1509
    %v1511 = vmul.f32 %v1505, %v1509
    %v1512 = vlaneseq
    %v1513 = vshrl.u32 %v1512, 7
    %v1514 = vsub.s32 3, %v1513
    %v1515 = vrot.slane %v56, %v1514
    %v1516 = vadd.f32 %v1510, %v1515
    %v1517 = vadd.f32 %v1511, %v1515
    %v1518 = vpack.c.bf16 %v1517, %v1516
    %s1519 = scalar_lea.vmem %s5, 16
    %v1520 = vld [vmem:[%s1519] sm:$0xf]
    %v1521 = vld [vmem:[%s1519 + $0x4] sm:$0xf]
    %v1522 = vld [vmem:[%s1519 + $0x8] sm:$0xf]
    %v1523 = vld [vmem:[%s1519 + $0xc] sm:$0xf]
    %v1524 = vlaneseq
    %v1525 = vshrl.u32 %v1524, 7
    %v1526 = vsub.s32 4, %v1525
    %v1527 = vrot.slane %v56, %v1526
    %v1532 = vunpack.c.l.b16 %v1520
    %v1533 = vunpack.c.l.b16 %v1521
    %v1534 = vunpack.c.l.b16 %v1522
    %v1535 = vunpack.c.l.b16 %v1523
    %v1536 = vpack.c.b16 %v1533, %v1532
    %v1537 = vpack.c.b16 %v1535, %v1534
    %v1541 = vsel %vm174, %v1518, 0
    %1543 = vmatprep.subr.bf16.mxu0 0
    %1544 = vmatpush1.bf16.msra.mxu0 %v1536
    %1545 = vmatprep.subr.bf16.mxu0 0
    %1546 = vmatpush1.bf16.msra.mxu0 %v1537
    %1547 = vmatprep.subr.bf16.mxu0 0
    %1548 = vmatpush1.bf16.msra.mxu0 0
    %1549 = vmatprep.subr.bf16.mxu0 0
    %1550 = vmatpush1.bf16.msra.mxu0 0
    %1551 = vmatprep.subr.bf16.mxu0 0
    %1552 = vmatpush1.bf16.msra.mxu0 0
    %1553 = vmatprep.subr.bf16.mxu0 0
    %1554 = vmatpush1.bf16.msra.mxu0 0
    %1555 = vmatprep.subr.bf16.mxu0 0
    %1556 = vmatpush1.bf16.msra.mxu0 0
    %1557 = vmatprep.subr.bf16.mxu0 0
    %1558 = vmatpush1.bf16.msra.mxu0 0
    %1559 = vmatprep.subr.bf16.mxu0 0
    %1560 = vmatpush1.bf16.msra.mxu0 0
    %1561 = vmatprep.subr.bf16.mxu0 0
    %1562 = vmatpush1.bf16.msra.mxu0 0
    %1563 = vmatprep.subr.bf16.mxu0 0
    %1564 = vmatpush1.bf16.msra.mxu0 0
    %1565 = vmatprep.subr.bf16.mxu0 0
    %1566 = vmatpush1.bf16.msra.mxu0 0
    %1567 = vmatprep.subr.bf16.mxu0 0
    %1568 = vmatpush1.bf16.msra.mxu0 0
    %1569 = vmatprep.subr.bf16.mxu0 0
    %1570 = vmatpush1.bf16.msra.mxu0 0
    %1571 = vmatprep.subr.bf16.mxu0 0
    %1572 = vmatpush1.bf16.msra.mxu0 0
    %1573 = vmatprep.subr.bf16.mxu0 0
    %1574 = vmatpush1.bf16.msra.mxu0 0
    %1575 = vmatprep.mubr.bf16.mxu0 0
    %1576 = vmatmul.mubr.bf16.gmra.mrb[0].mxu0 %v1541
    %v1577 = vpop.f32.mrb[0].mxu0
    %v1578 = vadd.f32 %v1527, %v1577
    %v1579 = vpop.f32.mrb[0].mxu0
    %v1580 = vpop.f32.mrb[0].mxu0
    %v1581 = vadd.f32 %v1527, %v1580
    %v1582 = vpop.f32.mrb[0].mxu0
    %1583 = vdwg.mxu0
    %v1584 = vpack.c.bf16 %v1578, %v1578
    %1586 = vrot.lane.b32.xlu0 %v1584, 96
    %v1587 = vpop.permute.xlu0 %1586
    %v1589 = vsel %vm293, %v1584, 0
    %v1592 = vsel %vm293, %v1587, 0
    %1594 = vmatprep.subr.bf16.mxu0 0
    %1595 = vmatpush1.bf16.xpose.msra.mxu0 %v1592
    %1596 = vmatprep.subr.bf16.mxu0 0
    %1597 = vmatpush1.bf16.xpose.msra.mxu0 0
    %1598 = vmatprep.subr.bf16.mxu0 0
    %1599 = vmatpush1.bf16.xpose.msra.mxu0 0
    %1600 = vmatprep.subr.bf16.mxu0 0
    %1601 = vmatpush1.bf16.xpose.msra.mxu0 0
    %1602 = vmatprep.subr.bf16.mxu0 0
    %1603 = vmatpush1.bf16.xpose.msra.mxu0 0
    %1604 = vmatprep.subr.bf16.mxu0 0
    %1605 = vmatpush1.bf16.xpose.msra.mxu0 0
    %1606 = vmatprep.subr.bf16.mxu0 0
    %1607 = vmatpush1.bf16.xpose.msra.mxu0 0
    %1608 = vmatprep.subr.bf16.mxu0 0
    %1609 = vmatpush1.bf16.xpose.msra.mxu0 0
    %1610 = vmatprep.subr.bf16.mxu0 0
    %1611 = vmatpush1.bf16.xpose.msra.mxu0 0
    %1612 = vmatprep.subr.bf16.mxu0 0
    %1613 = vmatpush1.bf16.xpose.msra.mxu0 0
    %1614 = vmatprep.subr.bf16.mxu0 0
    %1615 = vmatpush1.bf16.xpose.msra.mxu0 0
    %1616 = vmatprep.subr.bf16.mxu0 0
    %1617 = vmatpush1.bf16.xpose.msra.mxu0 0
    %1618 = vmatprep.subr.bf16.mxu0 0
    %1619 = vmatpush1.bf16.xpose.msra.mxu0 0
    %1620 = vmatprep.subr.bf16.mxu0 0
    %1621 = vmatpush1.bf16.xpose.msra.mxu0 0
    %1622 = vmatprep.subr.bf16.mxu0 0
    %1623 = vmatpush1.bf16.xpose.msra.mxu0 0
    %1624 = vmatprep.subr.bf16.mxu0 0
    %1625 = vmatpush1.bf16.xpose.msra.mxu0 0
    %1626 = vmatprep.mubr.bf16.mxu0 0
    %1627 = vmatmul.mubr.bf16.gmra.mrb[0].mxu0 %v1589
    %v1628 = vpop.f32.mrb[0].mxu0
    %v1629 = vadd.f32 %v218, %v1628
    %v1630 = vpop.f32.mrb[0].mxu0
    %v1631 = vpop.f32.mrb[0].mxu0
    %v1632 = vpop.f32.mrb[0].mxu0
    %1633 = vdwg.mxu0
    %v1634 = vsel %vm293, %v1629, -inf
    %1635 = vmax.xlane.f32.xlu0 %v1634
    %v1636 = vpop.xlane.xlu0 %1635
    %v1637 = vsub.f32 %v1629, %v1636
    %v1638 = vmul.f32 %v1637, 1.442695
    %v1639 = vpow.pop %v1638
    %v1640 = vsel %vm293, %v1639, 0.0
    %1641 = vadd.xlane.f32.xlu0 %v1640
    %v1642 = vpop.xlane.xlu0 %1641
    %v1643 = vrcp.pop %v1642
    %v1644 = vmul.f32 %v1639, %v1643
    %v1645 = vpack.c.bf16 %v1644, %v1644
    %1646 = vrot.lane.b32.xlu0 %v1584, 64
    %v1647 = vpop.permute.xlu0 %1646
    %v1649 = vsel %vm293, %v1645, 0
    %v1652 = vsel %vm357, %v1647, 0
    %1654 = vmatprep.subr.bf16.mxu0 0
    %1655 = vmatpush1.bf16.msra.mxu0 %v1652
    %1656 = vmatprep.subr.bf16.mxu0 0
    %1657 = vmatpush1.bf16.msra.mxu0 0
    %1658 = vmatprep.subr.bf16.mxu0 0
    %1659 = vmatpush1.bf16.msra.mxu0 0
    %1660 = vmatprep.subr.bf16.mxu0 0
    %1661 = vmatpush1.bf16.msra.mxu0 0
    %1662 = vmatprep.subr.bf16.mxu0 0
    %1663 = vmatpush1.bf16.msra.mxu0 0
    %1664 = vmatprep.subr.bf16.mxu0 0
    %1665 = vmatpush1.bf16.msra.mxu0 0
    %1666 = vmatprep.subr.bf16.mxu0 0
    %1667 = vmatpush1.bf16.msra.mxu0 0
    %1668 = vmatprep.subr.bf16.mxu0 0
    %1669 = vmatpush1.bf16.msra.mxu0 0
    %1670 = vmatprep.subr.bf16.mxu0 0
    %1671 = vmatpush1.bf16.msra.mxu0 0
    %1672 = vmatprep.subr.bf16.mxu0 0
    %1673 = vmatpush1.bf16.msra.mxu0 0
    %1674 = vmatprep.subr.bf16.mxu0 0
    %1675 = vmatpush1.bf16.msra.mxu0 0
    %1676 = vmatprep.subr.bf16.mxu0 0
    %1677 = vmatpush1.bf16.msra.mxu0 0
    %1678 = vmatprep.subr.bf16.mxu0 0
    %1679 = vmatpush1.bf16.msra.mxu0 0
    %1680 = vmatprep.subr.bf16.mxu0 0
    %1681 = vmatpush1.bf16.msra.mxu0 0
    %1682 = vmatprep.subr.bf16.mxu0 0
    %1683 = vmatpush1.bf16.msra.mxu0 0
    %1684 = vmatprep.subr.bf16.mxu0 0
    %1685 = vmatpush1.bf16.msra.mxu0 0
    %1686 = vmatprep.mubr.bf16.mxu0 0
    %1687 = vmatmul.mubr.bf16.gmra.mrb[0].mxu0 %v1649
    %v1688 = vpop.f32.mrb[0].mxu0
    %v1689 = vadd.f32 0.0, %v1688
    %v1690 = vpop.f32.mrb[0].mxu0
    %v1691 = vpop.f32.mrb[0].mxu0
    %v1692 = vpop.f32.mrb[0].mxu0
    %1693 = vdwg.mxu0
    %1694 = vst.msk [vmem:[#allocation3] sm:$0xff] %vm293, %v1689
    %1695 = vrot.lane.b32.xlu0 %v1584, 120
    %v1696 = vpop.permute.xlu0 %1695
    %1697 = vrot.lane.b32.xlu0 %v1584, 88
    %v1698 = vpop.permute.xlu0 %1697
    %v1700 = vsel %vm293, %v1696, 0
    %v1703 = vsel %vm293, %v1698, 0
    %1705 = vmatprep.subr.bf16.mxu0 0
    %1706 = vmatpush1.bf16.xpose.msra.mxu0 %v1703
    %1707 = vmatprep.subr.bf16.mxu0 0
    %1708 = vmatpush1.bf16.xpose.msra.mxu0 0
    %1709 = vmatprep.subr.bf16.mxu0 0
    %1710 = vmatpush1.bf16.xpose.msra.mxu0 0
    %1711 = vmatprep.subr.bf16.mxu0 0
    %1712 = vmatpush1.bf16.xpose.msra.mxu0 0
    %1713 = vmatprep.subr.bf16.mxu0 0
    %1714 = vmatpush1.bf16.xpose.msra.mxu0 0
    %1715 = vmatprep.subr.bf16.mxu0 0
    %1716 = vmatpush1.bf16.xpose.msra.mxu0 0
    %1717 = vmatprep.subr.bf16.mxu0 0
    %1718 = vmatpush1.bf16.xpose.msra.mxu0 0
    %1719 = vmatprep.subr.bf16.mxu0 0
    %1720 = vmatpush1.bf16.xpose.msra.mxu0 0
    %1721 = vmatprep.subr.bf16.mxu0 0
    %1722 = vmatpush1.bf16.xpose.msra.mxu0 0
    %1723 = vmatprep.subr.bf16.mxu0 0
    %1724 = vmatpush1.bf16.xpose.msra.mxu0 0
    %1725 = vmatprep.subr.bf16.mxu0 0
    %1726 = vmatpush1.bf16.xpose.msra.mxu0 0
    %1727 = vmatprep.subr.bf16.mxu0 0
    %1728 = vmatpush1.bf16.xpose.msra.mxu0 0
    %1729 = vmatprep.subr.bf16.mxu0 0
    %1730 = vmatpush1.bf16.xpose.msra.mxu0 0
    %1731 = vmatprep.subr.bf16.mxu0 0
    %1732 = vmatpush1.bf16.xpose.msra.mxu0 0
    %1733 = vmatprep.subr.bf16.mxu0 0
    %1734 = vmatpush1.bf16.xpose.msra.mxu0 0
    %1735 = vmatprep.subr.bf16.mxu0 0
    %1736 = vmatpush1.bf16.xpose.msra.mxu0 0
    %1737 = vmatprep.mubr.bf16.mxu0 0
    %1738 = vmatmul.mubr.bf16.gmra.mrb[0].mxu0 %v1700
    %v1739 = vpop.f32.mrb[0].mxu0
    %v1740 = vadd.f32 %v218, %v1739
    %v1741 = vpop.f32.mrb[0].mxu0
    %v1742 = vpop.f32.mrb[0].mxu0
    %v1743 = vpop.f32.mrb[0].mxu0
    %1744 = vdwg.mxu0
    %v1745 = vsel %vm293, %v1740, -inf
    %1746 = vmax.xlane.f32.xlu0 %v1745
    %v1747 = vpop.xlane.xlu0 %1746
    %v1748 = vsub.f32 %v1740, %v1747
    %v1749 = vmul.f32 %v1748, 1.442695
    %v1750 = vpow.pop %v1749
    %v1751 = vsel %vm293, %v1750, 0.0
    %1752 = vadd.xlane.f32.xlu0 %v1751
    %v1753 = vpop.xlane.xlu0 %1752
    %v1754 = vrcp.pop %v1753
    %v1755 = vmul.f32 %v1750, %v1754
    %v1756 = vpack.c.bf16 %v1755, %v1755
    %1757 = vrot.lane.b32.xlu0 %v1584, 56
    %v1758 = vpop.permute.xlu0 %1757
    %v1760 = vsel %vm293, %v1756, 0
    %v1763 = vsel %vm357, %v1758, 0
    %1765 = vmatprep.subr.bf16.mxu0 0
    %1766 = vmatpush1.bf16.msra.mxu0 %v1763
    %1767 = vmatprep.subr.bf16.mxu0 0
    %1768 = vmatpush1.bf16.msra.mxu0 0
    %1769 = vmatprep.subr.bf16.mxu0 0
    %1770 = vmatpush1.bf16.msra.mxu0 0
    %1771 = vmatprep.subr.bf16.mxu0 0
    %1772 = vmatpush1.bf16.msra.mxu0 0
    %1773 = vmatprep.subr.bf16.mxu0 0
    %1774 = vmatpush1.bf16.msra.mxu0 0
    %1775 = vmatprep.subr.bf16.mxu0 0
    %1776 = vmatpush1.bf16.msra.mxu0 0
    %1777 = vmatprep.subr.bf16.mxu0 0
    %1778 = vmatpush1.bf16.msra.mxu0 0
    %1779 = vmatprep.subr.bf16.mxu0 0
    %1780 = vmatpush1.bf16.msra.mxu0 0
    %1781 = vmatprep.subr.bf16.mxu0 0
    %1782 = vmatpush1.bf16.msra.mxu0 0
    %1783 = vmatprep.subr.bf16.mxu0 0
    %1784 = vmatpush1.bf16.msra.mxu0 0
    %1785 = vmatprep.subr.bf16.mxu0 0
    %1786 = vmatpush1.bf16.msra.mxu0 0
    %1787 = vmatprep.subr.bf16.mxu0 0
    %1788 = vmatpush1.bf16.msra.mxu0 0
    %1789 = vmatprep.subr.bf16.mxu0 0
    %1790 = vmatpush1.bf16.msra.mxu0 0
    %1791 = vmatprep.subr.bf16.mxu0 0
    %1792 = vmatpush1.bf16.msra.mxu0 0
    %1793 = vmatprep.subr.bf16.mxu0 0
    %1794 = vmatpush1.bf16.msra.mxu0 0
    %1795 = vmatprep.subr.bf16.mxu0 0
    %1796 = vmatpush1.bf16.msra.mxu0 0
    %1797 = vmatprep.mubr.bf16.mxu0 0
    %1798 = vmatmul.mubr.bf16.gmra.mrb[0].mxu0 %v1760
    %v1799 = vpop.f32.mrb[0].mxu0
    %v1800 = vadd.f32 0.0, %v1799
    %v1801 = vpop.f32.mrb[0].mxu0
    %v1802 = vpop.f32.mrb[0].mxu0
    %v1803 = vpop.f32.mrb[0].mxu0
    %1804 = vdwg.mxu0
    %1806 = vrot.lane.b32.xlu0 %v1800, 8
    %v1807 = vpop.permute.xlu0 %1806
    %1809 = vst.msk [vmem:[#allocation3] sm:$0xff] %vm516, %v1807
    %1810 = vrot.lane.b32.xlu0 %v1584, 112
    %v1811 = vpop.permute.xlu0 %1810
    %1812 = vrot.lane.b32.xlu0 %v1584, 80
    %v1813 = vpop.permute.xlu0 %1812
    %v1815 = vsel %vm293, %v1811, 0
    %v1818 = vsel %vm293, %v1813, 0
    %1820 = vmatprep.subr.bf16.mxu0 0
    %1821 = vmatpush1.bf16.xpose.msra.mxu0 %v1818
    %1822 = vmatprep.subr.bf16.mxu0 0
    %1823 = vmatpush1.bf16.xpose.msra.mxu0 0
    %1824 = vmatprep.subr.bf16.mxu0 0
    %1825 = vmatpush1.bf16.xpose.msra.mxu0 0
    %1826 = vmatprep.subr.bf16.mxu0 0
    %1827 = vmatpush1.bf16.xpose.msra.mxu0 0
    %1828 = vmatprep.subr.bf16.mxu0 0
    %1829 = vmatpush1.bf16.xpose.msra.mxu0 0
    %1830 = vmatprep.subr.bf16.mxu0 0
    %1831 = vmatpush1.bf16.xpose.msra.mxu0 0
    %1832 = vmatprep.subr.bf16.mxu0 0
    %1833 = vmatpush1.bf16.xpose.msra.mxu0 0
    %1834 = vmatprep.subr.bf16.mxu0 0
    %1835 = vmatpush1.bf16.xpose.msra.mxu0 0
    %1836 = vmatprep.subr.bf16.mxu0 0
    %1837 = vmatpush1.bf16.xpose.msra.mxu0 0
    %1838 = vmatprep.subr.bf16.mxu0 0
    %1839 = vmatpush1.bf16.xpose.msra.mxu0 0
    %1840 = vmatprep.subr.bf16.mxu0 0
    %1841 = vmatpush1.bf16.xpose.msra.mxu0 0
    %1842 = vmatprep.subr.bf16.mxu0 0
    %1843 = vmatpush1.bf16.xpose.msra.mxu0 0
    %1844 = vmatprep.subr.bf16.mxu0 0
    %1845 = vmatpush1.bf16.xpose.msra.mxu0 0
    %1846 = vmatprep.subr.bf16.mxu0 0
    %1847 = vmatpush1.bf16.xpose.msra.mxu0 0
    %1848 = vmatprep.subr.bf16.mxu0 0
    %1849 = vmatpush1.bf16.xpose.msra.mxu0 0
    %1850 = vmatprep.subr.bf16.mxu0 0
    %1851 = vmatpush1.bf16.xpose.msra.mxu0 0
    %1852 = vmatprep.mubr.bf16.mxu0 0
    %1853 = vmatmul.mubr.bf16.gmra.mrb[0].mxu0 %v1815
    %v1854 = vpop.f32.mrb[0].mxu0
    %v1855 = vadd.f32 %v218, %v1854
    %v1856 = vpop.f32.mrb[0].mxu0
    %v1857 = vpop.f32.mrb[0].mxu0
    %v1858 = vpop.f32.mrb[0].mxu0
    %1859 = vdwg.mxu0
    %v1860 = vsel %vm293, %v1855, -inf
    %1861 = vmax.xlane.f32.xlu0 %v1860
    %v1862 = vpop.xlane.xlu0 %1861
    %v1863 = vsub.f32 %v1855, %v1862
    %v1864 = vmul.f32 %v1863, 1.442695
    %v1865 = vpow.pop %v1864
    %v1866 = vsel %vm293, %v1865, 0.0
    %1867 = vadd.xlane.f32.xlu0 %v1866
    %v1868 = vpop.xlane.xlu0 %1867
    %v1869 = vrcp.pop %v1868
    %v1870 = vmul.f32 %v1865, %v1869
    %v1871 = vpack.c.bf16 %v1870, %v1870
    %1872 = vrot.lane.b32.xlu0 %v1584, 48
    %v1873 = vpop.permute.xlu0 %1872
    %v1875 = vsel %vm293, %v1871, 0
    %v1878 = vsel %vm357, %v1873, 0
    %1880 = vmatprep.subr.bf16.mxu0 0
    %1881 = vmatpush1.bf16.msra.mxu0 %v1878
    %1882 = vmatprep.subr.bf16.mxu0 0
    %1883 = vmatpush1.bf16.msra.mxu0 0
    %1884 = vmatprep.subr.bf16.mxu0 0
    %1885 = vmatpush1.bf16.msra.mxu0 0
    %1886 = vmatprep.subr.bf16.mxu0 0
    %1887 = vmatpush1.bf16.msra.mxu0 0
    %1888 = vmatprep.subr.bf16.mxu0 0
    %1889 = vmatpush1.bf16.msra.mxu0 0
    %1890 = vmatprep.subr.bf16.mxu0 0
    %1891 = vmatpush1.bf16.msra.mxu0 0
    %1892 = vmatprep.subr.bf16.mxu0 0
    %1893 = vmatpush1.bf16.msra.mxu0 0
    %1894 = vmatprep.subr.bf16.mxu0 0
    %1895 = vmatpush1.bf16.msra.mxu0 0
    %1896 = vmatprep.subr.bf16.mxu0 0
    %1897 = vmatpush1.bf16.msra.mxu0 0
    %1898 = vmatprep.subr.bf16.mxu0 0
    %1899 = vmatpush1.bf16.msra.mxu0 0
    %1900 = vmatprep.subr.bf16.mxu0 0
    %1901 = vmatpush1.bf16.msra.mxu0 0
    %1902 = vmatprep.subr.bf16.mxu0 0
    %1903 = vmatpush1.bf16.msra.mxu0 0
    %1904 = vmatprep.subr.bf16.mxu0 0
    %1905 = vmatpush1.bf16.msra.mxu0 0
    %1906 = vmatprep.subr.bf16.mxu0 0
    %1907 = vmatpush1.bf16.msra.mxu0 0
    %1908 = vmatprep.subr.bf16.mxu0 0
    %1909 = vmatpush1.bf16.msra.mxu0 0
    %1910 = vmatprep.subr.bf16.mxu0 0
    %1911 = vmatpush1.bf16.msra.mxu0 0
    %1912 = vmatprep.mubr.bf16.mxu0 0
    %1913 = vmatmul.mubr.bf16.gmra.mrb[0].mxu0 %v1875
    %v1914 = vpop.f32.mrb[0].mxu0
    %v1915 = vadd.f32 0.0, %v1914
    %v1916 = vpop.f32.mrb[0].mxu0
    %v1917 = vpop.f32.mrb[0].mxu0
    %v1918 = vpop.f32.mrb[0].mxu0
    %1919 = vdwg.mxu0
    %1921 = vrot.lane.b32.xlu0 %v1915, 16
    %v1922 = vpop.permute.xlu0 %1921
    %1924 = vst.msk [vmem:[#allocation3] sm:$0xff] %vm632, %v1922
    %1925 = vrot.lane.b32.xlu0 %v1584, 104
    %v1926 = vpop.permute.xlu0 %1925
    %1927 = vrot.lane.b32.xlu0 %v1584, 72
    %v1928 = vpop.permute.xlu0 %1927
    %v1930 = vsel %vm293, %v1926, 0
    %v1933 = vsel %vm293, %v1928, 0
    %1935 = vmatprep.subr.bf16.mxu0 0
    %1936 = vmatpush1.bf16.xpose.msra.mxu0 %v1933
    %1937 = vmatprep.subr.bf16.mxu0 0
    %1938 = vmatpush1.bf16.xpose.msra.mxu0 0
    %1939 = vmatprep.subr.bf16.mxu0 0
    %1940 = vmatpush1.bf16.xpose.msra.mxu0 0
    %1941 = vmatprep.subr.bf16.mxu0 0
    %1942 = vmatpush1.bf16.xpose.msra.mxu0 0
    %1943 = vmatprep.subr.bf16.mxu0 0
    %1944 = vmatpush1.bf16.xpose.msra.mxu0 0
    %1945 = vmatprep.subr.bf16.mxu0 0
    %1946 = vmatpush1.bf16.xpose.msra.mxu0 0
    %1947 = vmatprep.subr.bf16.mxu0 0
    %1948 = vmatpush1.bf16.xpose.msra.mxu0 0
    %1949 = vmatprep.subr.bf16.mxu0 0
    %1950 = vmatpush1.bf16.xpose.msra.mxu0 0
    %1951 = vmatprep.subr.bf16.mxu0 0
    %1952 = vmatpush1.bf16.xpose.msra.mxu0 0
    %1953 = vmatprep.subr.bf16.mxu0 0
    %1954 = vmatpush1.bf16.xpose.msra.mxu0 0
    %1955 = vmatprep.subr.bf16.mxu0 0
    %1956 = vmatpush1.bf16.xpose.msra.mxu0 0
    %1957 = vmatprep.subr.bf16.mxu0 0
    %1958 = vmatpush1.bf16.xpose.msra.mxu0 0
    %1959 = vmatprep.subr.bf16.mxu0 0
    %1960 = vmatpush1.bf16.xpose.msra.mxu0 0
    %1961 = vmatprep.subr.bf16.mxu0 0
    %1962 = vmatpush1.bf16.xpose.msra.mxu0 0
    %1963 = vmatprep.subr.bf16.mxu0 0
    %1964 = vmatpush1.bf16.xpose.msra.mxu0 0
    %1965 = vmatprep.subr.bf16.mxu0 0
    %1966 = vmatpush1.bf16.xpose.msra.mxu0 0
    %1967 = vmatprep.mubr.bf16.mxu0 0
    %1968 = vmatmul.mubr.bf16.gmra.mrb[0].mxu0 %v1930
    %v1969 = vpop.f32.mrb[0].mxu0
    %v1970 = vadd.f32 %v218, %v1969
    %v1971 = vpop.f32.mrb[0].mxu0
    %v1972 = vpop.f32.mrb[0].mxu0
    %v1973 = vpop.f32.mrb[0].mxu0
    %1974 = vdwg.mxu0
    %v1975 = vsel %vm293, %v1970, -inf
    %1976 = vmax.xlane.f32.xlu0 %v1975
    %v1977 = vpop.xlane.xlu0 %1976
    %v1978 = vsub.f32 %v1970, %v1977
    %v1979 = vmul.f32 %v1978, 1.442695
    %v1980 = vpow.pop %v1979
    %v1981 = vsel %vm293, %v1980, 0.0
    %1982 = vadd.xlane.f32.xlu0 %v1981
    %v1983 = vpop.xlane.xlu0 %1982
    %v1984 = vrcp.pop %v1983
    %v1985 = vmul.f32 %v1980, %v1984
    %v1986 = vpack.c.bf16 %v1985, %v1985
    %1987 = vrot.lane.b32.xlu0 %v1584, 40
    %v1988 = vpop.permute.xlu0 %1987
    %v1990 = vsel %vm293, %v1986, 0
    %v1993 = vsel %vm357, %v1988, 0
    %1995 = vmatprep.subr.bf16.mxu0 0
    %1996 = vmatpush1.bf16.msra.mxu0 %v1993
    %1997 = vmatprep.subr.bf16.mxu0 0
    %1998 = vmatpush1.bf16.msra.mxu0 0
    %1999 = vmatprep.subr.bf16.mxu0 0
    %2000 = vmatpush1.bf16.msra.mxu0 0
    %2001 = vmatprep.subr.bf16.mxu0 0
    %2002 = vmatpush1.bf16.msra.mxu0 0
    %2003 = vmatprep.subr.bf16.mxu0 0
    %2004 = vmatpush1.bf16.msra.mxu0 0
    %2005 = vmatprep.subr.bf16.mxu0 0
    %2006 = vmatpush1.bf16.msra.mxu0 0
    %2007 = vmatprep.subr.bf16.mxu0 0
    %2008 = vmatpush1.bf16.msra.mxu0 0
    %2009 = vmatprep.subr.bf16.mxu0 0
    %2010 = vmatpush1.bf16.msra.mxu0 0
    %2011 = vmatprep.subr.bf16.mxu0 0
    %2012 = vmatpush1.bf16.msra.mxu0 0
    %2013 = vmatprep.subr.bf16.mxu0 0
    %2014 = vmatpush1.bf16.msra.mxu0 0
    %2015 = vmatprep.subr.bf16.mxu0 0
    %2016 = vmatpush1.bf16.msra.mxu0 0
    %2017 = vmatprep.subr.bf16.mxu0 0
    %2018 = vmatpush1.bf16.msra.mxu0 0
    %2019 = vmatprep.subr.bf16.mxu0 0
    %2020 = vmatpush1.bf16.msra.mxu0 0
    %2021 = vmatprep.subr.bf16.mxu0 0
    %2022 = vmatpush1.bf16.msra.mxu0 0
    %2023 = vmatprep.subr.bf16.mxu0 0
    %2024 = vmatpush1.bf16.msra.mxu0 0
    %2025 = vmatprep.subr.bf16.mxu0 0
    %2026 = vmatpush1.bf16.msra.mxu0 0
    %2027 = vmatprep.mubr.bf16.mxu0 0
    %2028 = vmatmul.mubr.bf16.gmra.mrb[0].mxu0 %v1990
    %v2029 = vpop.f32.mrb[0].mxu0
    %v2030 = vadd.f32 0.0, %v2029
    %v2031 = vpop.f32.mrb[0].mxu0
    %v2032 = vpop.f32.mrb[0].mxu0
    %v2033 = vpop.f32.mrb[0].mxu0
    %2034 = vdwg.mxu0
    %2036 = vrot.lane.b32.xlu0 %v2030, 24
    %v2037 = vpop.permute.xlu0 %2036
    %2039 = vst.msk [vmem:[#allocation3] sm:$0xff] %vm748, %v2037
    %v2040 = vpack.c.bf16 %v1581, %v1581
    %2042 = vrot.lane.b32.xlu0 %v2040, 96
    %v2043 = vpop.permute.xlu0 %2042
    %v2045 = vsel %vm293, %v2040, 0
    %v2048 = vsel %vm293, %v2043, 0
    %2050 = vmatprep.subr.bf16.mxu0 0
    %2051 = vmatpush1.bf16.xpose.msra.mxu0 %v2048
    %2052 = vmatprep.subr.bf16.mxu0 0
    %2053 = vmatpush1.bf16.xpose.msra.mxu0 0
    %2054 = vmatprep.subr.bf16.mxu0 0
    %2055 = vmatpush1.bf16.xpose.msra.mxu0 0
    %2056 = vmatprep.subr.bf16.mxu0 0
    %2057 = vmatpush1.bf16.xpose.msra.mxu0 0
    %2058 = vmatprep.subr.bf16.mxu0 0
    %2059 = vmatpush1.bf16.xpose.msra.mxu0 0
    %2060 = vmatprep.subr.bf16.mxu0 0
    %2061 = vmatpush1.bf16.xpose.msra.mxu0 0
    %2062 = vmatprep.subr.bf16.mxu0 0
    %2063 = vmatpush1.bf16.xpose.msra.mxu0 0
    %2064 = vmatprep.subr.bf16.mxu0 0
    %2065 = vmatpush1.bf16.xpose.msra.mxu0 0
    %2066 = vmatprep.subr.bf16.mxu0 0
    %2067 = vmatpush1.bf16.xpose.msra.mxu0 0
    %2068 = vmatprep.subr.bf16.mxu0 0
    %2069 = vmatpush1.bf16.xpose.msra.mxu0 0
    %2070 = vmatprep.subr.bf16.mxu0 0
    %2071 = vmatpush1.bf16.xpose.msra.mxu0 0
    %2072 = vmatprep.subr.bf16.mxu0 0
    %2073 = vmatpush1.bf16.xpose.msra.mxu0 0
    %2074 = vmatprep.subr.bf16.mxu0 0
    %2075 = vmatpush1.bf16.xpose.msra.mxu0 0
    %2076 = vmatprep.subr.bf16.mxu0 0
    %2077 = vmatpush1.bf16.xpose.msra.mxu0 0
    %2078 = vmatprep.subr.bf16.mxu0 0
    %2079 = vmatpush1.bf16.xpose.msra.mxu0 0
    %2080 = vmatprep.subr.bf16.mxu0 0
    %2081 = vmatpush1.bf16.xpose.msra.mxu0 0
    %2082 = vmatprep.mubr.bf16.mxu0 0
    %2083 = vmatmul.mubr.bf16.gmra.mrb[0].mxu0 %v2045
    %v2084 = vpop.f32.mrb[0].mxu0
    %v2085 = vadd.f32 %v223, %v2084
    %v2086 = vpop.f32.mrb[0].mxu0
    %v2087 = vpop.f32.mrb[0].mxu0
    %v2088 = vpop.f32.mrb[0].mxu0
    %2089 = vdwg.mxu0
    %v2090 = vsel %vm293, %v2085, -inf
    %2091 = vmax.xlane.f32.xlu0 %v2090
    %v2092 = vpop.xlane.xlu0 %2091
    %v2093 = vsub.f32 %v2085, %v2092
    %v2094 = vmul.f32 %v2093, 1.442695
    %v2095 = vpow.pop %v2094
    %v2096 = vsel %vm293, %v2095, 0.0
    %2097 = vadd.xlane.f32.xlu0 %v2096
    %v2098 = vpop.xlane.xlu0 %2097
    %v2099 = vrcp.pop %v2098
    %v2100 = vmul.f32 %v2095, %v2099
    %v2101 = vpack.c.bf16 %v2100, %v2100
    %2102 = vrot.lane.b32.xlu0 %v2040, 64
    %v2103 = vpop.permute.xlu0 %2102
    %v2105 = vsel %vm293, %v2101, 0
    %v2108 = vsel %vm357, %v2103, 0
    %2110 = vmatprep.subr.bf16.mxu0 0
    %2111 = vmatpush1.bf16.msra.mxu0 %v2108
    %2112 = vmatprep.subr.bf16.mxu0 0
    %2113 = vmatpush1.bf16.msra.mxu0 0
    %2114 = vmatprep.subr.bf16.mxu0 0
    %2115 = vmatpush1.bf16.msra.mxu0 0
    %2116 = vmatprep.subr.bf16.mxu0 0
    %2117 = vmatpush1.bf16.msra.mxu0 0
    %2118 = vmatprep.subr.bf16.mxu0 0
    %2119 = vmatpush1.bf16.msra.mxu0 0
    %2120 = vmatprep.subr.bf16.mxu0 0
    %2121 = vmatpush1.bf16.msra.mxu0 0
    %2122 = vmatprep.subr.bf16.mxu0 0
    %2123 = vmatpush1.bf16.msra.mxu0 0
    %2124 = vmatprep.subr.bf16.mxu0 0
    %2125 = vmatpush1.bf16.msra.mxu0 0
    %2126 = vmatprep.subr.bf16.mxu0 0
    %2127 = vmatpush1.bf16.msra.mxu0 0
    %2128 = vmatprep.subr.bf16.mxu0 0
    %2129 = vmatpush1.bf16.msra.mxu0 0
    %2130 = vmatprep.subr.bf16.mxu0 0
    %2131 = vmatpush1.bf16.msra.mxu0 0
    %2132 = vmatprep.subr.bf16.mxu0 0
    %2133 = vmatpush1.bf16.msra.mxu0 0
    %2134 = vmatprep.subr.bf16.mxu0 0
    %2135 = vmatpush1.bf16.msra.mxu0 0
    %2136 = vmatprep.subr.bf16.mxu0 0
    %2137 = vmatpush1.bf16.msra.mxu0 0
    %2138 = vmatprep.subr.bf16.mxu0 0
    %2139 = vmatpush1.bf16.msra.mxu0 0
    %2140 = vmatprep.subr.bf16.mxu0 0
    %2141 = vmatpush1.bf16.msra.mxu0 0
    %2142 = vmatprep.mubr.bf16.mxu0 0
    %2143 = vmatmul.mubr.bf16.gmra.mrb[0].mxu0 %v2105
    %v2144 = vpop.f32.mrb[0].mxu0
    %v2145 = vadd.f32 0.0, %v2144
    %v2146 = vpop.f32.mrb[0].mxu0
    %v2147 = vpop.f32.mrb[0].mxu0
    %v2148 = vpop.f32.mrb[0].mxu0
    %2149 = vdwg.mxu0
    %2150 = vst.msk [vmem:[#allocation3 + $0x8] sm:$0xff] %vm293, %v2145
    %2151 = vrot.lane.b32.xlu0 %v2040, 120
    %v2152 = vpop.permute.xlu0 %2151
    %2153 = vrot.lane.b32.xlu0 %v2040, 88
    %v2154 = vpop.permute.xlu0 %2153
    %v2156 = vsel %vm293, %v2152, 0
    %v2159 = vsel %vm293, %v2154, 0
    %2161 = vmatprep.subr.bf16.mxu0 0
    %2162 = vmatpush1.bf16.xpose.msra.mxu0 %v2159
    %2163 = vmatprep.subr.bf16.mxu0 0
    %2164 = vmatpush1.bf16.xpose.msra.mxu0 0
    %2165 = vmatprep.subr.bf16.mxu0 0
    %2166 = vmatpush1.bf16.xpose.msra.mxu0 0
    %2167 = vmatprep.subr.bf16.mxu0 0
    %2168 = vmatpush1.bf16.xpose.msra.mxu0 0
    %2169 = vmatprep.subr.bf16.mxu0 0
    %2170 = vmatpush1.bf16.xpose.msra.mxu0 0
    %2171 = vmatprep.subr.bf16.mxu0 0
    %2172 = vmatpush1.bf16.xpose.msra.mxu0 0
    %2173 = vmatprep.subr.bf16.mxu0 0
    %2174 = vmatpush1.bf16.xpose.msra.mxu0 0
    %2175 = vmatprep.subr.bf16.mxu0 0
    %2176 = vmatpush1.bf16.xpose.msra.mxu0 0
    %2177 = vmatprep.subr.bf16.mxu0 0
    %2178 = vmatpush1.bf16.xpose.msra.mxu0 0
    %2179 = vmatprep.subr.bf16.mxu0 0
    %2180 = vmatpush1.bf16.xpose.msra.mxu0 0
    %2181 = vmatprep.subr.bf16.mxu0 0
    %2182 = vmatpush1.bf16.xpose.msra.mxu0 0
    %2183 = vmatprep.subr.bf16.mxu0 0
    %2184 = vmatpush1.bf16.xpose.msra.mxu0 0
    %2185 = vmatprep.subr.bf16.mxu0 0
    %2186 = vmatpush1.bf16.xpose.msra.mxu0 0
    %2187 = vmatprep.subr.bf16.mxu0 0
    %2188 = vmatpush1.bf16.xpose.msra.mxu0 0
    %2189 = vmatprep.subr.bf16.mxu0 0
    %2190 = vmatpush1.bf16.xpose.msra.mxu0 0
    %2191 = vmatprep.subr.bf16.mxu0 0
    %2192 = vmatpush1.bf16.xpose.msra.mxu0 0
    %2193 = vmatprep.mubr.bf16.mxu0 0
    %2194 = vmatmul.mubr.bf16.gmra.mrb[0].mxu0 %v2156
    %v2195 = vpop.f32.mrb[0].mxu0
    %v2196 = vadd.f32 %v223, %v2195
    %v2197 = vpop.f32.mrb[0].mxu0
    %v2198 = vpop.f32.mrb[0].mxu0
    %v2199 = vpop.f32.mrb[0].mxu0
    %2200 = vdwg.mxu0
    %v2201 = vsel %vm293, %v2196, -inf
    %2202 = vmax.xlane.f32.xlu0 %v2201
    %v2203 = vpop.xlane.xlu0 %2202
    %v2204 = vsub.f32 %v2196, %v2203
    %v2205 = vmul.f32 %v2204, 1.442695
    %v2206 = vpow.pop %v2205
    %v2207 = vsel %vm293, %v2206, 0.0
    %2208 = vadd.xlane.f32.xlu0 %v2207
    %v2209 = vpop.xlane.xlu0 %2208
    %v2210 = vrcp.pop %v2209
    %v2211 = vmul.f32 %v2206, %v2210
    %v2212 = vpack.c.bf16 %v2211, %v2211
    %2213 = vrot.lane.b32.xlu0 %v2040, 56
    %v2214 = vpop.permute.xlu0 %2213
    %v2216 = vsel %vm293, %v2212, 0
    %v2219 = vsel %vm357, %v2214, 0
    %2221 = vmatprep.subr.bf16.mxu0 0
    %2222 = vmatpush1.bf16.msra.mxu0 %v2219
    %2223 = vmatprep.subr.bf16.mxu0 0
    %2224 = vmatpush1.bf16.msra.mxu0 0
    %2225 = vmatprep.subr.bf16.mxu0 0
    %2226 = vmatpush1.bf16.msra.mxu0 0
    %2227 = vmatprep.subr.bf16.mxu0 0
    %2228 = vmatpush1.bf16.msra.mxu0 0
    %2229 = vmatprep.subr.bf16.mxu0 0
    %2230 = vmatpush1.bf16.msra.mxu0 0
    %2231 = vmatprep.subr.bf16.mxu0 0
    %2232 = vmatpush1.bf16.msra.mxu0 0
    %2233 = vmatprep.subr.bf16.mxu0 0
    %2234 = vmatpush1.bf16.msra.mxu0 0
    %2235 = vmatprep.subr.bf16.mxu0 0
    %2236 = vmatpush1.bf16.msra.mxu0 0
    %2237 = vmatprep.subr.bf16.mxu0 0
    %2238 = vmatpush1.bf16.msra.mxu0 0
    %2239 = vmatprep.subr.bf16.mxu0 0
    %2240 = vmatpush1.bf16.msra.mxu0 0
    %2241 = vmatprep.subr.bf16.mxu0 0
    %2242 = vmatpush1.bf16.msra.mxu0 0
    %2243 = vmatprep.subr.bf16.mxu0 0
    %2244 = vmatpush1.bf16.msra.mxu0 0
    %2245 = vmatprep.subr.bf16.mxu0 0
    %2246 = vmatpush1.bf16.msra.mxu0 0
    %2247 = vmatprep.subr.bf16.mxu0 0
    %2248 = vmatpush1.bf16.msra.mxu0 0
    %2249 = vmatprep.subr.bf16.mxu0 0
    %2250 = vmatpush1.bf16.msra.mxu0 0
    %2251 = vmatprep.subr.bf16.mxu0 0
    %2252 = vmatpush1.bf16.msra.mxu0 0
    %2253 = vmatprep.mubr.bf16.mxu0 0
    %2254 = vmatmul.mubr.bf16.gmra.mrb[0].mxu0 %v2216
    %v2255 = vpop.f32.mrb[0].mxu0
    %v2256 = vadd.f32 0.0, %v2255
    %v2257 = vpop.f32.mrb[0].mxu0
    %v2258 = vpop.f32.mrb[0].mxu0
    %v2259 = vpop.f32.mrb[0].mxu0
    %2260 = vdwg.mxu0
    %2262 = vrot.lane.b32.xlu0 %v2256, 8
    %v2263 = vpop.permute.xlu0 %2262
    %2265 = vst.msk [vmem:[#allocation3 + $0x8] sm:$0xff] %vm516, %v2263
    %2266 = vrot.lane.b32.xlu0 %v2040, 112
    %v2267 = vpop.permute.xlu0 %2266
    %2268 = vrot.lane.b32.xlu0 %v2040, 80
    %v2269 = vpop.permute.xlu0 %2268
    %v2271 = vsel %vm293, %v2267, 0
    %v2274 = vsel %vm293, %v2269, 0
    %2276 = vmatprep.subr.bf16.mxu0 0
    %2277 = vmatpush1.bf16.xpose.msra.mxu0 %v2274
    %2278 = vmatprep.subr.bf16.mxu0 0
    %2279 = vmatpush1.bf16.xpose.msra.mxu0 0
    %2280 = vmatprep.subr.bf16.mxu0 0
    %2281 = vmatpush1.bf16.xpose.msra.mxu0 0
    %2282 = vmatprep.subr.bf16.mxu0 0
    %2283 = vmatpush1.bf16.xpose.msra.mxu0 0
    %2284 = vmatprep.subr.bf16.mxu0 0
    %2285 = vmatpush1.bf16.xpose.msra.mxu0 0
    %2286 = vmatprep.subr.bf16.mxu0 0
    %2287 = vmatpush1.bf16.xpose.msra.mxu0 0
    %2288 = vmatprep.subr.bf16.mxu0 0
    %2289 = vmatpush1.bf16.xpose.msra.mxu0 0
    %2290 = vmatprep.subr.bf16.mxu0 0
    %2291 = vmatpush1.bf16.xpose.msra.mxu0 0
    %2292 = vmatprep.subr.bf16.mxu0 0
    %2293 = vmatpush1.bf16.xpose.msra.mxu0 0
    %2294 = vmatprep.subr.bf16.mxu0 0
    %2295 = vmatpush1.bf16.xpose.msra.mxu0 0
    %2296 = vmatprep.subr.bf16.mxu0 0
    %2297 = vmatpush1.bf16.xpose.msra.mxu0 0
    %2298 = vmatprep.subr.bf16.mxu0 0
    %2299 = vmatpush1.bf16.xpose.msra.mxu0 0
    %2300 = vmatprep.subr.bf16.mxu0 0
    %2301 = vmatpush1.bf16.xpose.msra.mxu0 0
    %2302 = vmatprep.subr.bf16.mxu0 0
    %2303 = vmatpush1.bf16.xpose.msra.mxu0 0
    %2304 = vmatprep.subr.bf16.mxu0 0
    %2305 = vmatpush1.bf16.xpose.msra.mxu0 0
    %2306 = vmatprep.subr.bf16.mxu0 0
    %2307 = vmatpush1.bf16.xpose.msra.mxu0 0
    %2308 = vmatprep.mubr.bf16.mxu0 0
    %2309 = vmatmul.mubr.bf16.gmra.mrb[0].mxu0 %v2271
    %v2310 = vpop.f32.mrb[0].mxu0
    %v2311 = vadd.f32 %v223, %v2310
    %v2312 = vpop.f32.mrb[0].mxu0
    %v2313 = vpop.f32.mrb[0].mxu0
    %v2314 = vpop.f32.mrb[0].mxu0
    %2315 = vdwg.mxu0
    %v2316 = vsel %vm293, %v2311, -inf
    %2317 = vmax.xlane.f32.xlu0 %v2316
    %v2318 = vpop.xlane.xlu0 %2317
    %v2319 = vsub.f32 %v2311, %v2318
    %v2320 = vmul.f32 %v2319, 1.442695
    %v2321 = vpow.pop %v2320
    %v2322 = vsel %vm293, %v2321, 0.0
    %2323 = vadd.xlane.f32.xlu0 %v2322
    %v2324 = vpop.xlane.xlu0 %2323
    %v2325 = vrcp.pop %v2324
    %v2326 = vmul.f32 %v2321, %v2325
    %v2327 = vpack.c.bf16 %v2326, %v2326
    %2328 = vrot.lane.b32.xlu0 %v2040, 48
    %v2329 = vpop.permute.xlu0 %2328
    %v2331 = vsel %vm293, %v2327, 0
    %v2334 = vsel %vm357, %v2329, 0
    %2336 = vmatprep.subr.bf16.mxu0 0
    %2337 = vmatpush1.bf16.msra.mxu0 %v2334
    %2338 = vmatprep.subr.bf16.mxu0 0
    %2339 = vmatpush1.bf16.msra.mxu0 0
    %2340 = vmatprep.subr.bf16.mxu0 0
    %2341 = vmatpush1.bf16.msra.mxu0 0
    %2342 = vmatprep.subr.bf16.mxu0 0
    %2343 = vmatpush1.bf16.msra.mxu0 0
    %2344 = vmatprep.subr.bf16.mxu0 0
    %2345 = vmatpush1.bf16.msra.mxu0 0
    %2346 = vmatprep.subr.bf16.mxu0 0
    %2347 = vmatpush1.bf16.msra.mxu0 0
    %2348 = vmatprep.subr.bf16.mxu0 0
    %2349 = vmatpush1.bf16.msra.mxu0 0
    %2350 = vmatprep.subr.bf16.mxu0 0
    %2351 = vmatpush1.bf16.msra.mxu0 0
    %2352 = vmatprep.subr.bf16.mxu0 0
    %2353 = vmatpush1.bf16.msra.mxu0 0
    %2354 = vmatprep.subr.bf16.mxu0 0
    %2355 = vmatpush1.bf16.msra.mxu0 0
    %2356 = vmatprep.subr.bf16.mxu0 0
    %2357 = vmatpush1.bf16.msra.mxu0 0
    %2358 = vmatprep.subr.bf16.mxu0 0
    %2359 = vmatpush1.bf16.msra.mxu0 0
    %2360 = vmatprep.subr.bf16.mxu0 0
    %2361 = vmatpush1.bf16.msra.mxu0 0
    %2362 = vmatprep.subr.bf16.mxu0 0
    %2363 = vmatpush1.bf16.msra.mxu0 0
    %2364 = vmatprep.subr.bf16.mxu0 0
    %2365 = vmatpush1.bf16.msra.mxu0 0
    %2366 = vmatprep.subr.bf16.mxu0 0
    %2367 = vmatpush1.bf16.msra.mxu0 0
    %2368 = vmatprep.mubr.bf16.mxu0 0
    %2369 = vmatmul.mubr.bf16.gmra.mrb[0].mxu0 %v2331
    %v2370 = vpop.f32.mrb[0].mxu0
    %v2371 = vadd.f32 0.0, %v2370
    %v2372 = vpop.f32.mrb[0].mxu0
    %v2373 = vpop.f32.mrb[0].mxu0
    %v2374 = vpop.f32.mrb[0].mxu0
    %2375 = vdwg.mxu0
    %2377 = vrot.lane.b32.xlu0 %v2371, 16
    %v2378 = vpop.permute.xlu0 %2377
    %2380 = vst.msk [vmem:[#allocation3 + $0x8] sm:$0xff] %vm632, %v2378
    %2381 = vrot.lane.b32.xlu0 %v2040, 104
    %v2382 = vpop.permute.xlu0 %2381
    %2383 = vrot.lane.b32.xlu0 %v2040, 72
    %v2384 = vpop.permute.xlu0 %2383
    %v2386 = vsel %vm293, %v2382, 0
    %v2389 = vsel %vm293, %v2384, 0
    %2391 = vmatprep.subr.bf16.mxu0 0
    %2392 = vmatpush1.bf16.xpose.msra.mxu0 %v2389
    %2393 = vmatprep.subr.bf16.mxu0 0
    %2394 = vmatpush1.bf16.xpose.msra.mxu0 0
    %2395 = vmatprep.subr.bf16.mxu0 0
    %2396 = vmatpush1.bf16.xpose.msra.mxu0 0
    %2397 = vmatprep.subr.bf16.mxu0 0
    %2398 = vmatpush1.bf16.xpose.msra.mxu0 0
    %2399 = vmatprep.subr.bf16.mxu0 0
    %2400 = vmatpush1.bf16.xpose.msra.mxu0 0
    %2401 = vmatprep.subr.bf16.mxu0 0
    %2402 = vmatpush1.bf16.xpose.msra.mxu0 0
    %2403 = vmatprep.subr.bf16.mxu0 0
    %2404 = vmatpush1.bf16.xpose.msra.mxu0 0
    %2405 = vmatprep.subr.bf16.mxu0 0
    %2406 = vmatpush1.bf16.xpose.msra.mxu0 0
    %2407 = vmatprep.subr.bf16.mxu0 0
    %2408 = vmatpush1.bf16.xpose.msra.mxu0 0
    %2409 = vmatprep.subr.bf16.mxu0 0
    %2410 = vmatpush1.bf16.xpose.msra.mxu0 0
    %2411 = vmatprep.subr.bf16.mxu0 0
    %2412 = vmatpush1.bf16.xpose.msra.mxu0 0
    %2413 = vmatprep.subr.bf16.mxu0 0
    %2414 = vmatpush1.bf16.xpose.msra.mxu0 0
    %2415 = vmatprep.subr.bf16.mxu0 0
    %2416 = vmatpush1.bf16.xpose.msra.mxu0 0
    %2417 = vmatprep.subr.bf16.mxu0 0
    %2418 = vmatpush1.bf16.xpose.msra.mxu0 0
    %2419 = vmatprep.subr.bf16.mxu0 0
    %2420 = vmatpush1.bf16.xpose.msra.mxu0 0
    %2421 = vmatprep.subr.bf16.mxu0 0
    %2422 = vmatpush1.bf16.xpose.msra.mxu0 0
    %2423 = vmatprep.mubr.bf16.mxu0 0
    %2424 = vmatmul.mubr.bf16.gmra.mrb[0].mxu0 %v2386
    %v2425 = vpop.f32.mrb[0].mxu0
    %v2426 = vadd.f32 %v223, %v2425
    %v2427 = vpop.f32.mrb[0].mxu0
    %v2428 = vpop.f32.mrb[0].mxu0
    %v2429 = vpop.f32.mrb[0].mxu0
    %2430 = vdwg.mxu0
    %v2431 = vsel %vm293, %v2426, -inf
    %2432 = vmax.xlane.f32.xlu0 %v2431
    %v2433 = vpop.xlane.xlu0 %2432
    %v2434 = vsub.f32 %v2426, %v2433
    %v2435 = vmul.f32 %v2434, 1.442695
    %v2436 = vpow.pop %v2435
    %v2437 = vsel %vm293, %v2436, 0.0
    %2438 = vadd.xlane.f32.xlu0 %v2437
    %v2439 = vpop.xlane.xlu0 %2438
    %v2440 = vrcp.pop %v2439
    %v2441 = vmul.f32 %v2436, %v2440
    %v2442 = vpack.c.bf16 %v2441, %v2441
    %2443 = vrot.lane.b32.xlu0 %v2040, 40
    %v2444 = vpop.permute.xlu0 %2443
    %v2446 = vsel %vm293, %v2442, 0
    %v2449 = vsel %vm357, %v2444, 0
    %2451 = vmatprep.subr.bf16.mxu0 0
    %2452 = vmatpush1.bf16.msra.mxu0 %v2449
    %2453 = vmatprep.subr.bf16.mxu0 0
    %2454 = vmatpush1.bf16.msra.mxu0 0
    %2455 = vmatprep.subr.bf16.mxu0 0
    %2456 = vmatpush1.bf16.msra.mxu0 0
    %2457 = vmatprep.subr.bf16.mxu0 0
    %2458 = vmatpush1.bf16.msra.mxu0 0
    %2459 = vmatprep.subr.bf16.mxu0 0
    %2460 = vmatpush1.bf16.msra.mxu0 0
    %2461 = vmatprep.subr.bf16.mxu0 0
    %2462 = vmatpush1.bf16.msra.mxu0 0
    %2463 = vmatprep.subr.bf16.mxu0 0
    %2464 = vmatpush1.bf16.msra.mxu0 0
    %2465 = vmatprep.subr.bf16.mxu0 0
    %2466 = vmatpush1.bf16.msra.mxu0 0
    %2467 = vmatprep.subr.bf16.mxu0 0
    %2468 = vmatpush1.bf16.msra.mxu0 0
    %2469 = vmatprep.subr.bf16.mxu0 0
    %2470 = vmatpush1.bf16.msra.mxu0 0
    %2471 = vmatprep.subr.bf16.mxu0 0
    %2472 = vmatpush1.bf16.msra.mxu0 0
    %2473 = vmatprep.subr.bf16.mxu0 0
    %2474 = vmatpush1.bf16.msra.mxu0 0
    %2475 = vmatprep.subr.bf16.mxu0 0
    %2476 = vmatpush1.bf16.msra.mxu0 0
    %2477 = vmatprep.subr.bf16.mxu0 0
    %2478 = vmatpush1.bf16.msra.mxu0 0
    %2479 = vmatprep.subr.bf16.mxu0 0
    %2480 = vmatpush1.bf16.msra.mxu0 0
    %2481 = vmatprep.subr.bf16.mxu0 0
    %2482 = vmatpush1.bf16.msra.mxu0 0
    %2483 = vmatprep.mubr.bf16.mxu0 0
    %2484 = vmatmul.mubr.bf16.gmra.mrb[0].mxu0 %v2446
    %v2485 = vpop.f32.mrb[0].mxu0
    %v2486 = vadd.f32 0.0, %v2485
    %v2487 = vpop.f32.mrb[0].mxu0
    %v2488 = vpop.f32.mrb[0].mxu0
    %v2489 = vpop.f32.mrb[0].mxu0
    %2490 = vdwg.mxu0
    %2492 = vrot.lane.b32.xlu0 %v2486, 24
    %v2493 = vpop.permute.xlu0 %2492
    %2495 = vst.msk [vmem:[#allocation3 + $0x8] sm:$0xff] %vm748, %v2493
    %v2496 = vld [vmem:[#allocation3] sm:$0xff]
    %v2497 = vld [vmem:[#allocation3 + $0x8] sm:$0xff]
    %v2498 = vpack.c.bf16 %v2497, %v2496
    %s2499 = scalar_lea.vmem %s6, 16
    %v2500 = vld [vmem:[%s2499] sm:$0xf]
    %v2501 = vld [vmem:[%s2499 + $0x4] sm:$0xf]
    %v2502 = vld [vmem:[%s2499 + $0x8] sm:$0xf]
    %v2503 = vld [vmem:[%s2499 + $0xc] sm:$0xf]
    %v2504 = vlaneseq
    %v2505 = vshrl.u32 %v2504, 7
    %v2506 = vsub.s32 5, %v2505
    %v2507 = vrot.slane %v56, %v2506
    %v2512 = vunpack.c.l.b16 %v2500
    %v2513 = vunpack.c.l.b16 %v2501
    %v2514 = vunpack.c.l.b16 %v2502
    %v2515 = vunpack.c.l.b16 %v2503
    %v2516 = vpack.c.b16 %v2513, %v2512
    %v2517 = vpack.c.b16 %v2515, %v2514
    %v2521 = vsel %vm174, %v2498, 0
    %2523 = vmatprep.subr.bf16.mxu0 0
    %2524 = vmatpush1.bf16.msra.mxu0 %v2516
    %2525 = vmatprep.subr.bf16.mxu0 0
    %2526 = vmatpush1.bf16.msra.mxu0 %v2517
    %2527 = vmatprep.subr.bf16.mxu0 0
    %2528 = vmatpush1.bf16.msra.mxu0 0
    %2529 = vmatprep.subr.bf16.mxu0 0
    %2530 = vmatpush1.bf16.msra.mxu0 0
    %2531 = vmatprep.subr.bf16.mxu0 0
    %2532 = vmatpush1.bf16.msra.mxu0 0
    %2533 = vmatprep.subr.bf16.mxu0 0
    %2534 = vmatpush1.bf16.msra.mxu0 0
    %2535 = vmatprep.subr.bf16.mxu0 0
    %2536 = vmatpush1.bf16.msra.mxu0 0
    %2537 = vmatprep.subr.bf16.mxu0 0
    %2538 = vmatpush1.bf16.msra.mxu0 0
    %2539 = vmatprep.subr.bf16.mxu0 0
    %2540 = vmatpush1.bf16.msra.mxu0 0
    %2541 = vmatprep.subr.bf16.mxu0 0
    %2542 = vmatpush1.bf16.msra.mxu0 0
    %2543 = vmatprep.subr.bf16.mxu0 0
    %2544 = vmatpush1.bf16.msra.mxu0 0
    %2545 = vmatprep.subr.bf16.mxu0 0
    %2546 = vmatpush1.bf16.msra.mxu0 0
    %2547 = vmatprep.subr.bf16.mxu0 0
    %2548 = vmatpush1.bf16.msra.mxu0 0
    %2549 = vmatprep.subr.bf16.mxu0 0
    %2550 = vmatpush1.bf16.msra.mxu0 0
    %2551 = vmatprep.subr.bf16.mxu0 0
    %2552 = vmatpush1.bf16.msra.mxu0 0
    %2553 = vmatprep.subr.bf16.mxu0 0
    %2554 = vmatpush1.bf16.msra.mxu0 0
    %2555 = vmatprep.mubr.bf16.mxu0 0
    %2556 = vmatmul.mubr.bf16.gmra.mrb[0].mxu0 %v2521
    %v2557 = vpop.f32.mrb[0].mxu0
    %v2558 = vadd.f32 %v2507, %v2557
    %v2559 = vpop.f32.mrb[0].mxu0
    %v2560 = vpop.f32.mrb[0].mxu0
    %v2561 = vadd.f32 %v2507, %v2560
    %v2562 = vpop.f32.mrb[0].mxu0
    %2563 = vdwg.mxu0
    %v2564 = vadd.f32 %v2558, %v1516
    %v2565 = vadd.f32 %v2561, %v1517
    %v2566 = vsel %vm174, %v2564, 0.0
    %2567 = vadd.xlane.f32.xlu0 %v2566
    %v2568 = vpop.xlane.xlu0 %2567
    %v2569 = vsel %vm174, %v2565, 0.0
    %2570 = vadd.xlane.f32.xlu0 %v2569
    %v2571 = vpop.xlane.xlu0 %2570
    %v2572 = vmul.f32 %v2568, %v181
    %v2573 = vmul.f32 %v2571, %v181
    %v2574 = vsub.f32 %v2564, %v2572
    %v2575 = vsub.f32 %v2565, %v2573
    %v2576 = vmul.f32 %v2574, %v2574
    %v2577 = vmul.f32 %v2575, %v2575
    %v2578 = vsel %vm174, %v2576, 0.0
    %2579 = vadd.xlane.f32.xlu0 %v2578
    %v2580 = vpop.xlane.xlu0 %2579
    %v2581 = vsel %vm174, %v2577, 0.0
    %2582 = vadd.xlane.f32.xlu0 %v2581
    %v2583 = vpop.xlane.xlu0 %2582
    %v2584 = vmul.f32 %v2580, %v181
    %v2585 = vmul.f32 %v2583, %v181
    %v2586 = vadd.f32 %v2584, 1e-12
    %v2587 = vadd.f32 %v2585, 1e-12
    %v2588 = vrsqrt.pop %v2586
    %v2589 = vrsqrt.pop %v2587
    %v2590 = vmul.f32 %v2574, %v2588
    %v2591 = vmul.f32 %v2575, %v2589
    %v2592 = vlaneseq
    %v2593 = vshrl.u32 %v2592, 7
    %v2594 = vsub.s32 6, %v2593
    %v2595 = vrot.slane %v56, %v2594
    %v2596 = vmul.f32 %v2590, %v2595
    %v2597 = vmul.f32 %v2591, %v2595
    %v2598 = vlaneseq
    %v2599 = vshrl.u32 %v2598, 7
    %v2600 = vsub.s32 7, %v2599
    %v2601 = vrot.slane %v56, %v2600
    %v2602 = vadd.f32 %v2596, %v2601
    %v2603 = vadd.f32 %v2597, %v2601
    %v2604 = vpack.c.bf16 %v2603, %v2602
    %s2605 = scalar_lea.vmem %s7, 16
    %v2606 = vld [vmem:[%s2605] sm:$0xf]
    %v2607 = vld [vmem:[%s2605 + $0x4] sm:$0xf]
    %v2608 = vld [vmem:[%s2605 + $0x8] sm:$0xf]
    %v2609 = vld [vmem:[%s2605 + $0xc] sm:$0xf]
    %v2610 = vlaneseq
    %v2611 = vshrl.u32 %v2610, 7
    %v2612 = vsub.s32 0, %v2611
    %v2613 = vrot.slane %v57, %v2612
    %v2618 = vunpack.c.l.b16 %v2606
    %v2619 = vunpack.c.l.b16 %v2607
    %v2620 = vunpack.c.l.b16 %v2608
    %v2621 = vunpack.c.l.b16 %v2609
    %v2622 = vpack.c.b16 %v2619, %v2618
    %v2623 = vpack.c.b16 %v2621, %v2620
    %v2627 = vsel %vm174, %v2604, 0
    %2629 = vmatprep.subr.bf16.mxu0 0
    %2630 = vmatpush1.bf16.msra.mxu0 %v2622
    %2631 = vmatprep.subr.bf16.mxu0 0
    %2632 = vmatpush1.bf16.msra.mxu0 %v2623
    %2633 = vmatprep.subr.bf16.mxu0 0
    %2634 = vmatpush1.bf16.msra.mxu0 0
    %2635 = vmatprep.subr.bf16.mxu0 0
    %2636 = vmatpush1.bf16.msra.mxu0 0
    %2637 = vmatprep.subr.bf16.mxu0 0
    %2638 = vmatpush1.bf16.msra.mxu0 0
    %2639 = vmatprep.subr.bf16.mxu0 0
    %2640 = vmatpush1.bf16.msra.mxu0 0
    %2641 = vmatprep.subr.bf16.mxu0 0
    %2642 = vmatpush1.bf16.msra.mxu0 0
    %2643 = vmatprep.subr.bf16.mxu0 0
    %2644 = vmatpush1.bf16.msra.mxu0 0
    %2645 = vmatprep.subr.bf16.mxu0 0
    %2646 = vmatpush1.bf16.msra.mxu0 0
    %2647 = vmatprep.subr.bf16.mxu0 0
    %2648 = vmatpush1.bf16.msra.mxu0 0
    %2649 = vmatprep.subr.bf16.mxu0 0
    %2650 = vmatpush1.bf16.msra.mxu0 0
    %2651 = vmatprep.subr.bf16.mxu0 0
    %2652 = vmatpush1.bf16.msra.mxu0 0
    %2653 = vmatprep.subr.bf16.mxu0 0
    %2654 = vmatpush1.bf16.msra.mxu0 0
    %2655 = vmatprep.subr.bf16.mxu0 0
    %2656 = vmatpush1.bf16.msra.mxu0 0
    %2657 = vmatprep.subr.bf16.mxu0 0
    %2658 = vmatpush1.bf16.msra.mxu0 0
    %2659 = vmatprep.subr.bf16.mxu0 0
    %2660 = vmatpush1.bf16.msra.mxu0 0
    %2661 = vmatprep.mubr.bf16.mxu0 0
    %2662 = vmatmul.mubr.bf16.gmra.mrb[0].mxu0 %v2627
    %v2663 = vpop.f32.mrb[0].mxu0
    %v2664 = vadd.f32 %v2613, %v2663
    %v2665 = vpop.f32.mrb[0].mxu0
    %v2666 = vpop.f32.mrb[0].mxu0
    %v2667 = vadd.f32 %v2613, %v2666
    %v2668 = vpop.f32.mrb[0].mxu0
    %2669 = vdwg.mxu0
    %v2670 = vmul.f32 %v2664, 0.5
    %v2671 = vmul.f32 %v2667, 0.5
    %v2672 = vmul.f32 %v2664, 0.044715
    %v2673 = vmul.f32 %v2667, 0.044715
    %v2674 = vmul.f32 %v2672, %v2664
    %v2675 = vmul.f32 %v2673, %v2667
    %v2676 = vmul.f32 %v2674, %v2664
    %v2677 = vmul.f32 %v2675, %v2667
    %v2678 = vadd.f32 %v2664, %v2676
    %v2679 = vadd.f32 %v2667, %v2677
    %v2680 = vmul.f32 %v2678, 0.7978846
    %v2681 = vmul.f32 %v2679, 0.7978846
    %v2682 = vtanh.pop %v2680
    %v2683 = vtanh.pop %v2681
    %v2684 = vadd.f32 %v2682, 1.0
    %v2685 = vadd.f32 %v2683, 1.0
    %v2686 = vmul.f32 %v2670, %v2684
    %v2687 = vmul.f32 %v2671, %v2685
    %v2688 = vpack.c.bf16 %v2687, %v2686
    %s2689 = scalar_lea.vmem %s8, 32
    %v2690 = vld [vmem:[%s2689] sm:$0xf]
    %v2691 = vld [vmem:[%s2689 + $0x4] sm:$0xf]
    %v2692 = vld [vmem:[%s2689 + $0x8] sm:$0xf]
    %v2693 = vld [vmem:[%s2689 + $0xc] sm:$0xf]
    %v2694 = vld [vmem:[%s2689 + $0x10] sm:$0xf]
    %v2695 = vld [vmem:[%s2689 + $0x14] sm:$0xf]
    %v2696 = vld [vmem:[%s2689 + $0x18] sm:$0xf]
    %v2697 = vld [vmem:[%s2689 + $0x1c] sm:$0xf]
    %v2698 = vlaneseq
    %v2699 = vshrl.u32 %v2698, 7
    %v2700 = vsub.s32 1, %v2699
    %v2701 = vrot.slane %v57, %v2700
    %v2710 = vunpack.c.l.b16 %v2690
    %v2711 = vunpack.c.l.b16 %v2691
    %v2712 = vunpack.c.l.b16 %v2692
    %v2713 = vunpack.c.l.b16 %v2693
    %v2714 = vunpack.c.l.b16 %v2694
    %v2715 = vunpack.c.l.b16 %v2695
    %v2716 = vunpack.c.l.b16 %v2696
    %v2717 = vunpack.c.l.b16 %v2697
    %v2718 = vpack.c.b16 %v2711, %v2710
    %v2719 = vpack.c.b16 %v2713, %v2712
    %v2720 = vpack.c.b16 %v2715, %v2714
    %v2721 = vpack.c.b16 %v2717, %v2716
    %v2727 = vsel %vm1433, %v2688, 0
    %2729 = vmatprep.subr.bf16.mxu0 0
    %2730 = vmatpush1.bf16.msra.mxu0 %v2718
    %2731 = vmatprep.subr.bf16.mxu0 0
    %2732 = vmatpush1.bf16.msra.mxu0 %v2719
    %2733 = vmatprep.subr.bf16.mxu0 0
    %2734 = vmatpush1.bf16.msra.mxu0 %v2720
    %2735 = vmatprep.subr.bf16.mxu0 0
    %2736 = vmatpush1.bf16.msra.mxu0 %v2721
    %2737 = vmatprep.subr.bf16.mxu0 0
    %2738 = vmatpush1.bf16.msra.mxu0 0
    %2739 = vmatprep.subr.bf16.mxu0 0
    %2740 = vmatpush1.bf16.msra.mxu0 0
    %2741 = vmatprep.subr.bf16.mxu0 0
    %2742 = vmatpush1.bf16.msra.mxu0 0
    %2743 = vmatprep.subr.bf16.mxu0 0
    %2744 = vmatpush1.bf16.msra.mxu0 0
    %2745 = vmatprep.subr.bf16.mxu0 0
    %2746 = vmatpush1.bf16.msra.mxu0 0
    %2747 = vmatprep.subr.bf16.mxu0 0
    %2748 = vmatpush1.bf16.msra.mxu0 0
    %2749 = vmatprep.subr.bf16.mxu0 0
    %2750 = vmatpush1.bf16.msra.mxu0 0
    %2751 = vmatprep.subr.bf16.mxu0 0
    %2752 = vmatpush1.bf16.msra.mxu0 0
    %2753 = vmatprep.subr.bf16.mxu0 0
    %2754 = vmatpush1.bf16.msra.mxu0 0
    %2755 = vmatprep.subr.bf16.mxu0 0
    %2756 = vmatpush1.bf16.msra.mxu0 0
    %2757 = vmatprep.subr.bf16.mxu0 0
    %2758 = vmatpush1.bf16.msra.mxu0 0
    %2759 = vmatprep.subr.bf16.mxu0 0
    %2760 = vmatpush1.bf16.msra.mxu0 0
    %2761 = vmatprep.mubr.bf16.mxu0 0
    %2762 = vmatmul.mubr.bf16.gmra.mrb[0].mxu0 %v2727
    %v2763 = vpop.f32.mrb[0].mxu0
    %v2764 = vadd.f32 %v2701, %v2763
    %v2765 = vpop.f32.mrb[0].mxu0
    %v2766 = vpop.f32.mrb[0].mxu0
    %v2767 = vadd.f32 %v2701, %v2766
    %v2768 = vpop.f32.mrb[0].mxu0
    %2769 = vdwg.mxu0
    %v2770 = vadd.f32 %v2764, %v2602
    %v2771 = vadd.f32 %v2767, %v2603
    %v2772 = vsel %vm174, %v2770, 0.0
    %2773 = vadd.xlane.f32.xlu0 %v2772
    %v2774 = vpop.xlane.xlu0 %2773
    %v2775 = vsel %vm174, %v2771, 0.0
    %2776 = vadd.xlane.f32.xlu0 %v2775
    %v2777 = vpop.xlane.xlu0 %2776
    %v2778 = vmul.f32 %v2774, %v181
    %v2779 = vmul.f32 %v2777, %v181
    %v2780 = vsub.f32 %v2770, %v2778
    %v2781 = vsub.f32 %v2771, %v2779
    %v2782 = vmul.f32 %v2780, %v2780
    %v2783 = vmul.f32 %v2781, %v2781
    %v2784 = vsel %vm174, %v2782, 0.0
    %2785 = vadd.xlane.f32.xlu0 %v2784
    %v2786 = vpop.xlane.xlu0 %2785
    %v2787 = vsel %vm174, %v2783, 0.0
    %2788 = vadd.xlane.f32.xlu0 %v2787
    %v2789 = vpop.xlane.xlu0 %2788
    %v2790 = vmul.f32 %v2786, %v181
    %v2791 = vmul.f32 %v2789, %v181
    %v2792 = vadd.f32 %v2790, 1e-12
    %v2793 = vadd.f32 %v2791, 1e-12
    %v2794 = vrsqrt.pop %v2792
    %v2795 = vrsqrt.pop %v2793
    %v2796 = vmul.f32 %v2780, %v2794
    %v2797 = vmul.f32 %v2781, %v2795
    %v2798 = vlaneseq
    %v2799 = vshrl.u32 %v2798, 7
    %v2800 = vsub.s32 2, %v2799
    %v2801 = vrot.slane %v57, %v2800
    %v2802 = vmul.f32 %v2796, %v2801
    %v2803 = vmul.f32 %v2797, %v2801
    %v2804 = vlaneseq
    %v2805 = vshrl.u32 %v2804, 7
    %v2806 = vsub.s32 3, %v2805
    %v2807 = vrot.slane %v57, %v2806
    %v2808 = vadd.f32 %v2802, %v2807
    %v2809 = vadd.f32 %v2803, %v2807
    %v2810 = vpack.c.bf16 %v2809, %v2808
    %v2811 = vld [vmem:[%s9] sm:$0xf]
    %v2812 = vld [vmem:[%s9 + $0x4] sm:$0xf]
    %v2813 = vld [vmem:[%s9 + $0x8] sm:$0xf]
    %v2814 = vld [vmem:[%s9 + $0xc] sm:$0xf]
    %v2815 = vlaneseq
    %v2816 = vshrl.u32 %v2815, 7
    %v2817 = vsub.s32 2, %v2816
    %v2818 = vrot.slane %v55, %v2817
    %v2823 = vunpack.c.l.b16 %v2811
    %v2824 = vunpack.c.l.b16 %v2812
    %v2825 = vunpack.c.l.b16 %v2813
    %v2826 = vunpack.c.l.b16 %v2814
    %v2827 = vpack.c.b16 %v2824, %v2823
    %v2828 = vpack.c.b16 %v2826, %v2825
    %v2832 = vsel %vm174, %v2810, 0
    %2834 = vmatprep.subr.bf16.mxu0 0
    %2835 = vmatpush1.bf16.msra.mxu0 %v2827
    %2836 = vmatprep.subr.bf16.mxu0 0
    %2837 = vmatpush1.bf16.msra.mxu0 %v2828
    %2838 = vmatprep.subr.bf16.mxu0 0
    %2839 = vmatpush1.bf16.msra.mxu0 0
    %2840 = vmatprep.subr.bf16.mxu0 0
    %2841 = vmatpush1.bf16.msra.mxu0 0
    %2842 = vmatprep.subr.bf16.mxu0 0
    %2843 = vmatpush1.bf16.msra.mxu0 0
    %2844 = vmatprep.subr.bf16.mxu0 0
    %2845 = vmatpush1.bf16.msra.mxu0 0
    %2846 = vmatprep.subr.bf16.mxu0 0
    %2847 = vmatpush1.bf16.msra.mxu0 0
    %2848 = vmatprep.subr.bf16.mxu0 0
    %2849 = vmatpush1.bf16.msra.mxu0 0
    %2850 = vmatprep.subr.bf16.mxu0 0
    %2851 = vmatpush1.bf16.msra.mxu0 0
    %2852 = vmatprep.subr.bf16.mxu0 0
    %2853 = vmatpush1.bf16.msra.mxu0 0
    %2854 = vmatprep.subr.bf16.mxu0 0
    %2855 = vmatpush1.bf16.msra.mxu0 0
    %2856 = vmatprep.subr.bf16.mxu0 0
    %2857 = vmatpush1.bf16.msra.mxu0 0
    %2858 = vmatprep.subr.bf16.mxu0 0
    %2859 = vmatpush1.bf16.msra.mxu0 0
    %2860 = vmatprep.subr.bf16.mxu0 0
    %2861 = vmatpush1.bf16.msra.mxu0 0
    %2862 = vmatprep.subr.bf16.mxu0 0
    %2863 = vmatpush1.bf16.msra.mxu0 0
    %2864 = vmatprep.subr.bf16.mxu0 0
    %2865 = vmatpush1.bf16.msra.mxu0 0
    %2866 = vmatprep.mubr.bf16.mxu0 0
    %2867 = vmatmul.mubr.bf16.gmra.mrb[0].mxu0 %v2832
    %v2868 = vpop.f32.mrb[0].mxu0
    %v2869 = vadd.f32 %v2818, %v2868
    %v2870 = vpop.f32.mrb[0].mxu0
    %v2871 = vpop.f32.mrb[0].mxu0
    %v2872 = vadd.f32 %v2818, %v2871
    %v2873 = vpop.f32.mrb[0].mxu0
    %2874 = vdwg.mxu0
    %v2875 = vtanh.pop %v2869
    %v2876 = vtanh.pop %v2872
    %v2877 = vpack.c.bf16 %v2876, %v2875
    %v2878 = vld [vmem:[%s10] sm:$0xf]
    %v2879 = vld [vmem:[%s10 + $0x4] sm:$0xf]
    %v2880 = vld [vmem:[%s10 + $0x8] sm:$0xf]
    %v2881 = vld [vmem:[%s10 + $0xc] sm:$0xf]
    %v2882 = vlaneseq
    %v2883 = vshrl.u32 %v2882, 7
    %v2884 = vsub.s32 3, %v2883
    %v2885 = vrot.slane %v55, %v2884
    %v2890 = vunpack.c.l.b16 %v2878
    %v2891 = vunpack.c.l.b16 %v2879
    %v2892 = vunpack.c.l.b16 %v2880
    %v2893 = vunpack.c.l.b16 %v2881
    %v2894 = vpack.c.b16 %v2891, %v2890
    %v2895 = vpack.c.b16 %v2893, %v2892
    %v2899 = vsel %vm174, %v2877, 0
    %2901 = vmatprep.subr.bf16.mxu0 0
    %2902 = vmatpush1.bf16.msra.mxu0 %v2894
    %2903 = vmatprep.subr.bf16.mxu0 0
    %2904 = vmatpush1.bf16.msra.mxu0 %v2895
    %2905 = vmatprep.subr.bf16.mxu0 0
    %2906 = vmatpush1.bf16.msra.mxu0 0
    %2907 = vmatprep.subr.bf16.mxu0 0
    %2908 = vmatpush1.bf16.msra.mxu0 0
    %2909 = vmatprep.subr.bf16.mxu0 0
    %2910 = vmatpush1.bf16.msra.mxu0 0
    %2911 = vmatprep.subr.bf16.mxu0 0
    %2912 = vmatpush1.bf16.msra.mxu0 0
    %2913 = vmatprep.subr.bf16.mxu0 0
    %2914 = vmatpush1.bf16.msra.mxu0 0
    %2915 = vmatprep.subr.bf16.mxu0 0
    %2916 = vmatpush1.bf16.msra.mxu0 0
    %2917 = vmatprep.subr.bf16.mxu0 0
    %2918 = vmatpush1.bf16.msra.mxu0 0
    %2919 = vmatprep.subr.bf16.mxu0 0
    %2920 = vmatpush1.bf16.msra.mxu0 0
    %2921 = vmatprep.subr.bf16.mxu0 0
    %2922 = vmatpush1.bf16.msra.mxu0 0
    %2923 = vmatprep.subr.bf16.mxu0 0
    %2924 = vmatpush1.bf16.msra.mxu0 0
    %2925 = vmatprep.subr.bf16.mxu0 0
    %2926 = vmatpush1.bf16.msra.mxu0 0
    %2927 = vmatprep.subr.bf16.mxu0 0
    %2928 = vmatpush1.bf16.msra.mxu0 0
    %2929 = vmatprep.subr.bf16.mxu0 0
    %2930 = vmatpush1.bf16.msra.mxu0 0
    %2931 = vmatprep.subr.bf16.mxu0 0
    %2932 = vmatpush1.bf16.msra.mxu0 0
    %2933 = vmatprep.mubr.bf16.mxu0 0
    %2934 = vmatmul.mubr.bf16.gmra.mrb[0].mxu0 %v2899
    %v2935 = vpop.f32.mrb[0].mxu0
    %v2936 = vadd.f32 %v2885, %v2935
    %v2937 = vpop.f32.mrb[0].mxu0
    %v2938 = vpop.f32.mrb[0].mxu0
    %v2939 = vadd.f32 %v2885, %v2938
    %v2940 = vpop.f32.mrb[0].mxu0
    %2941 = vdwg.mxu0
    %2942 = vst [vmem:[%s12] sm:$0xff] %v2936
    %2943 = vst [vmem:[%s12 + $0x8] sm:$0xff] %v2939
    // Predicated region
    $region54: #{sentiment_classifier_forward.1} parent=1 // pred_check
      _
    $region55: #{sentiment_classifier_forward.1} parent=1 // pred_check_branch
      %2945 = sbr.rel (0) target = $region57
    $region56: #{sentiment_classifier_forward.1} parent=1 // pred_region
      _
    $region57: #{sentiment_classifier_forward.1} parent=1 // pred_fallthru
      _
    // Predicated region
    $region58: #{sentiment_classifier_forward.1} parent=1 // pred_check
      _
    $region59: #{sentiment_classifier_forward.1} parent=1 // pred_check_branch
      %2947 = sbr.rel (0) target = $region61
    $region60: #{sentiment_classifier_forward.1} parent=1 // pred_region
      _
    $region61: #{sentiment_classifier_forward.1} parent=1 // pred_fallthru
      _
    %2948 = vsyncpa [#allocation5], 1

</llo_original>
